<compile_context>
chip_gen: v6e
topology: v6e:2x2x1
jax: 0.10.0
libtpu: 0.0.40
codegen_flags: <defaults>
</compile_context>

<pallas_src>
import functools
import math

import jax
import jax.numpy as jnp
from jax.experimental import pallas as pl
from jax.experimental.pallas import tpu as pltpu

LN_EPS = 1e-5  # PyTorch nn.LayerNorm default


# ---------------------------------------------------------------------------
# in-kernel helpers (f32 math)
# ---------------------------------------------------------------------------
def _layernorm(x, gamma, beta):
    mu = jnp.mean(x, axis=-1, keepdims=True)
    xc = x - mu
    var = jnp.mean(xc * xc, axis=-1, keepdims=True)
    inv = jax.lax.rsqrt(var + LN_EPS)
    return xc * inv * gamma + beta


def _gelu_exact(x):
    # nn.GELU() default = exact erf formulation.
    return 0.5 * x * (1.0 + jax.lax.erf(x * (1.0 / math.sqrt(2.0))))


# ---------------------------------------------------------------------------
# kernel 1: LayerNorm1 -> fused QKV -> MHA -> single proj -> residual
#           (one batch element per "parallel" grid step)
# ---------------------------------------------------------------------------
def _attn_kernel(x_ref, g1_ref, be1_ref, wqkv_ref, bqkv_ref, wo_ref, bo_ref,
                 o_ref, *, num_heads):
    x = x_ref[0]                                         # (S, D) f32
    S, D = x.shape
    hd = D // num_heads

    xn = _layernorm(x, g1_ref[...], be1_ref[...])        # (S, D) f32

    # One fused full-width MXU matmul.  The 1/sqrt(hd) attention scale is
    # already folded into the q columns of wqkv / bqkv (outside the kernel).
    qkv = jnp.dot(xn.astype(jnp.bfloat16), wqkv_ref[...],
                  preferred_element_type=jnp.float32) + bqkv_ref[...]   # (S, 3D)

    def heads(t2d):  # (S, D) -> (H, S, hd), bf16 for the MXU
        return jnp.transpose(t2d.reshape(S, num_heads, hd),
                             (1, 0, 2)).astype(jnp.bfloat16)

    qh = heads(qkv[:, 0 * D:1 * D])
    kh = heads(qkv[:, 1 * D:2 * D])
    vh = heads(qkv[:, 2 * D:3 * D])

    # scores / softmax (f32); exact divide to match torch.softmax closely.
    s = jnp.einsum('hqf,hkf->hqk', qh, kh,
                   preferred_element_type=jnp.float32)                  # (H,S,S)
    s = s - jnp.max(s, axis=-1, keepdims=True)
    e = jnp.exp(s)
    p = e / jnp.sum(e, axis=-1, keepdims=True)

    ctx = jnp.einsum('hqk,hkf->hqf', p.astype(jnp.bfloat16), vh,
                     preferred_element_type=jnp.float32)                # (H,S,hd)
    ctx = jnp.transpose(ctx, (1, 0, 2)).reshape(S, D)                   # (S, D)

    out = jnp.dot(ctx.astype(jnp.bfloat16), wo_ref[...],
                  preferred_element_type=jnp.float32) + bo_ref[...]
    o_ref[0] = x + out                                   # residual 1


# ---------------------------------------------------------------------------
# kernel 2: LayerNorm2 -> MLP (GELU) -> residual   (row-tiled over B*S rows)
# ---------------------------------------------------------------------------
def _mlp_kernel(x_ref, g2_ref, be2_ref, w1_ref, b1_ref, w2_ref, b2_ref, o_ref):
    x = x_ref[...]                                       # (TR, D) f32
    xn = _layernorm(x, g2_ref[...], be2_ref[...])
    h = jnp.dot(xn.astype(jnp.bfloat16), w1_ref[...],
                preferred_element_type=jnp.float32) + b1_ref[...]
    h = _gelu_exact(h)
    h = jnp.dot(h.astype(jnp.bfloat16), w2_ref[...],
                preferred_element_type=jnp.float32) + b2_ref[...]
    o_ref[...] = x + h                                   # residual 2


# ---------------------------------------------------------------------------
# spec / VMEM helpers
# ---------------------------------------------------------------------------
def _const_spec(shape, single_buffer=False):
    """BlockSpec for a grid-invariant operand (weights / biases / gammas)."""
    nd = len(shape)
    index_map = lambda *_: (0,) * nd
    if single_buffer:
        # One resident VMEM copy instead of a dead double buffer.
        return pl.BlockSpec(shape, index_map, pipeline_mode=pl.Buffered(1))
    return pl.BlockSpec(shape, index_map)


def _vmem_capacity_bytes():
    try:
        cap = int(pltpu.get_tpu_info().vmem_capacity_bytes)
        if cap >= (32 << 20):
            return cap
    except Exception:
        pass
    return 64 << 20  # conservative default (v7x per-TC VMEM)


def _compiler_params(step_bytes):
    cap = _vmem_capacity_bytes()
    limit = max(int(step_bytes) + (8 << 20), 32 << 20)
    limit = min(limit, (cap * 7) // 8)   # headroom below the physical cap
    return pltpu.CompilerParams(
        dimension_semantics=("parallel",),   # grid steps are independent
        vmem_limit_bytes=int(limit),
    )


def _default_row_tile():
    # ~256 rows on v7x (64 MiB VMEM), ~512 rows on v5e/v6e (128 MiB VMEM).
    return 256 if _vmem_capacity_bytes() <= (64 << 20) else 512


# ---------------------------------------------------------------------------
# wrappers
# ---------------------------------------------------------------------------
def attention_residual(x, p, num_heads, *, single_buffer_weights=True):
    B, S, D = x.shape
    assert D % num_heads == 0
    hd = D // num_heads
    scale = 1.0 / math.sqrt(hd)

    # Fold the attention scale into the q columns of the fused qkv weight/bias.
    scale_vec = jnp.concatenate([jnp.full((D,), scale, jnp.float32),
                                 jnp.ones((2 * D,), jnp.float32)])
    wqkv = (p["wqkv"].astype(jnp.float32) * scale_vec[None, :]).astype(jnp.bfloat16)
    bqkv = (p["bqkv"].astype(jnp.float32) * scale_vec).reshape(1, 3 * D)
    wo = p["wproj"].astype(jnp.bfloat16)
    bo = p["bproj"].reshape(1, D).astype(jnp.float32)
    g1 = p["g1"].reshape(1, D).astype(jnp.float32)
    be1 = p["be1"].reshape(1, D).astype(jnp.float32)

    weight_bytes = (wqkv.size + wo.size) * 2 \
                 + (bqkv.size + bo.size + g1.size + be1.size) * 4
    resident_weights = weight_bytes * (1 if single_buffer_weights else 2)
    intermediates = (S * 3 * D * 4                      # qkv f32
                     + 3 * S * D * 2                    # qh/kh/vh bf16
                     + 3 * num_heads * S * S * 4        # s, e, p f32
                     + 2 * S * D * 4)                   # ctx + out f32
    step_bytes = resident_weights + 2 * 2 * S * D * 4 + intermediates

    cost = pl.CostEstimate(
        flops=int(B * (8 * S * D * D + 4 * S * S * D)),
        transcendentals=int(B * (num_heads * S * S + S)),
        bytes_accessed=int(2 * B * S * D * 4 + weight_bytes),
    )

    kern = functools.partial(_attn_kernel, num_heads=num_heads)
    wspec = functools.partial(_const_spec, single_buffer=single_buffer_weights)
    return pl.pallas_call(
        kern,
        out_shape=jax.ShapeDtypeStruct((B, S, D), jnp.float32),
        grid=(B,),
        in_specs=[
            pl.BlockSpec((1, S, D), lambda b: (b, 0, 0)),
            wspec((1, D)), wspec((1, D)),
            wspec((D, 3 * D)), wspec((1, 3 * D)),
            wspec((D, D)), wspec((1, D)),
        ],
        out_specs=pl.BlockSpec((1, S, D), lambda b: (b, 0, 0)),
        compiler_params=_compiler_params(step_bytes),
        cost_estimate=cost,
    )(x, g1, be1, wqkv, bqkv, wo, bo)


def mlp_residual(x, p, *, single_buffer_weights=True, row_tile=None):
    B, S, D = x.shape
    Dh = p["w1"].shape[1]
    rows = B * S
    xf = x.reshape(rows, D)

    if row_tile is None:
        row_tile = _default_row_tile()
    tr = min(row_tile, rows)
    if tr < rows:
        tr = max(8, (tr // 8) * 8)          # keep the sublane dim 8-aligned
    grid = (pl.cdiv(rows, tr),)

    w1 = p["w1"].astype(jnp.bfloat16)
    w2 = p["w2"].astype(jnp.bfloat16)
    b1 = p["b1"].reshape(1, Dh).astype(jnp.float32)
    b2 = p["b2"].reshape(1, D).astype(jnp.float32)
    g2 = p["g2"].reshape(1, D).astype(jnp.float32)
    be2 = p["be2"].reshape(1, D).astype(jnp.float32)

    weight_bytes = (w1.size + w2.size) * 2 \
                 + (b1.size + b2.size + g2.size + be2.size) * 4
    resident_weights = weight_bytes * (1 if single_buffer_weights else 2)
    intermediates = tr * Dh * 4 + tr * Dh * 2 + tr * D * 4
    step_bytes = resident_weights + 2 * 2 * tr * D * 4 + intermediates

    cost = pl.CostEstimate(
        flops=int(4 * rows * D * Dh),
        transcendentals=int(rows * Dh + rows),
        bytes_accessed=int(2 * rows * D * 4 + weight_bytes),
    )

    wspec = functools.partial(_const_spec, single_buffer=single_buffer_weights)
    out = pl.pallas_call(
        _mlp_kernel,
        out_shape=jax.ShapeDtypeStruct((rows, D), jnp.float32),
        grid=grid,
        in_specs=[
            pl.BlockSpec((tr, D), lambda i: (i, 0)),
            wspec((1, D)), wspec((1, D)),
            wspec((D, Dh)), wspec((1, Dh)),
            wspec((Dh, D)), wspec((1, D)),
        ],
        out_specs=pl.BlockSpec((tr, D), lambda i: (i, 0)),
        compiler_params=_compiler_params(step_bytes),
        cost_estimate=cost,
    )(xf, g2, be2, w1, b1, w2, b2)
    return out.reshape(B, S, D)


def transformer_block(x, params, num_heads, *, single_buffer_weights=True):
    # Dropout / DropPath: identity in eval mode (matches module.eval()).
    x = attention_residual(x, params, num_heads,
                           single_buffer_weights=single_buffer_weights)
    x = mlp_residual(x, params, single_buffer_weights=single_buffer_weights)
    return x


# ---------------------------------------------------------------------------
# deterministic parameter initialization (PyTorch-style shapes / scales)
# ---------------------------------------------------------------------------
def init_block_params(key, *, embed_dim, num_heads, mlp_ratio=4.0):
    D = embed_dim
    Dh = int(D * mlp_ratio)
    assert D % num_heads == 0
    k = jax.random.split(key, 8)

    def u(kk, shape, fan_in):
        b = 1.0 / math.sqrt(fan_in)
        return jax.random.uniform(kk, shape, jnp.float32, -b, b)

    return dict(
        g1=jnp.ones((D,), jnp.float32),
        be1=jnp.zeros((D,), jnp.float32),
        # weights stored (in_features, out_features) so kernels compute x @ W;
        # qkv output columns laid out as (3, heads, head_dim) like PyTorch.
        wqkv=u(k[0], (D, 3 * D), D),
        bqkv=u(k[1], (3 * D,), D),
        wproj=u(k[2], (D, D), D),
        bproj=u(k[3], (D,), D),
        g2=jnp.ones((D,), jnp.float32),
        be2=jnp.zeros((D,), jnp.float32),
        w1=u(k[4], (D, Dh), D),
        b1=u(k[5], (Dh,), D),
        w2=u(k[6], (Dh, D), Dh),
        b2=u(k[7], (D,), Dh),
    )


# ---------------------------------------------------------------------------
if __name__ == "__main__":
    B, S, D, HEADS = 2, 8, 32, 4

    key = jax.random.PRNGKey(0)
    pkey, xkey = jax.random.split(key)
    params = init_block_params(pkey, embed_dim=D, num_heads=HEADS, mlp_ratio=4.0)
    x = jax.random.normal(xkey, (B, S, D), jnp.float32)

    def _run(single_buffer_weights):
        fn = jax.jit(functools.partial(transformer_block, num_heads=HEADS,
                                       single_buffer_weights=single_buffer_weights))
        return jax.block_until_ready(fn(x, params))

    try:
        # Preferred path: grid-invariant weights single-buffered (pl.Buffered(1)).
        y = _run(True)
    except Exception:
        # Fallback if this JAX/libtpu build rejects pipeline_mode on
        # pallas_call BlockSpecs: default double-buffered weight blocks.
        y = _run(False)

    assert y.shape == (B, S, D), y.shape
    assert bool(jnp.all(jnp.isfinite(y)))
    print("KERNEL_OK")
</pallas_src>

<mosaic_0001>
module attributes {stable_mosaic.version = 11 : i64} {
  func.func @_attn_kernel(%arg0: i32, %arg1: memref<1x8x32xf32, #tpu.memory_space<vmem>>, %arg2: memref<1x32xf32, #tpu.memory_space<vmem>>, %arg3: memref<1x32xf32, #tpu.memory_space<vmem>>, %arg4: memref<32x96xbf16, #tpu.memory_space<vmem>>, %arg5: memref<1x96xf32, #tpu.memory_space<vmem>>, %arg6: memref<32x32xbf16, #tpu.memory_space<vmem>>, %arg7: memref<1x32xf32, #tpu.memory_space<vmem>>, %arg8: memref<1x8x32xf32, #tpu.memory_space<vmem>>) attributes {dimension_semantics = [#tpu.dimension_semantics<parallel>], iteration_bounds = array<i64: 2>, scalar_prefetch = 0 : i64, scratch_operands = 0 : i64, tpu.core_type = #tpu.core_type<tc>, window_params = [{transform_indices = @transform_0, window_bounds = array<i64: 1, 8, 32>}, {pipeline_mode = #tpu.pipeline_mode<synchronous>, transform_indices = @transform_1, window_bounds = array<i64: 1, 32>}, {pipeline_mode = #tpu.pipeline_mode<synchronous>, transform_indices = @transform_2, window_bounds = array<i64: 1, 32>}, {pipeline_mode = #tpu.pipeline_mode<synchronous>, transform_indices = @transform_3, window_bounds = array<i64: 32, 96>}, {pipeline_mode = #tpu.pipeline_mode<synchronous>, transform_indices = @transform_4, window_bounds = array<i64: 1, 96>}, {pipeline_mode = #tpu.pipeline_mode<synchronous>, transform_indices = @transform_5, window_bounds = array<i64: 32, 32>}, {pipeline_mode = #tpu.pipeline_mode<synchronous>, transform_indices = @transform_6, window_bounds = array<i64: 1, 32>}, {transform_indices = @transform_7, window_bounds = array<i64: 1, 8, 32>}]} {
    %c0 = arith.constant 0 : index
    %c0_0 = arith.constant 0 : index
    %c0_1 = arith.constant 0 : index
    %0 = vector.load %arg1[%c0, %c0_0, %c0_1] : memref<1x8x32xf32, #tpu.memory_space<vmem>>, vector<1x8x32xf32>
    %1 = vector.shape_cast %0 : vector<1x8x32xf32> to vector<8x32xf32>
    %c0_2 = arith.constant 0 : index
    %c0_3 = arith.constant 0 : index
    %2 = vector.load %arg2[%c0_2, %c0_3] : memref<1x32xf32, #tpu.memory_space<vmem>>, vector<1x32xf32>
    %c0_4 = arith.constant 0 : index
    %c0_5 = arith.constant 0 : index
    %3 = vector.load %arg3[%c0_4, %c0_5] : memref<1x32xf32, #tpu.memory_space<vmem>>, vector<1x32xf32>
    %cst = arith.constant dense<0.000000e+00> : vector<8xf32>
    %4 = vector.multi_reduction <add>, %1, %cst [1] : vector<8x32xf32> to vector<8xf32>
    %5 = vector.shape_cast %4 : vector<8xf32> to vector<8x1xf32>
    %cst_6 = arith.constant 3.200000e+01 : f32
    %6 = vector.broadcast %cst_6 : f32 to vector<8x1xf32>
    %7 = arith.divf %5, %6 : vector<8x1xf32>
    %8 = vector.broadcast %7 : vector<8x1xf32> to vector<8x32xf32>
    %9 = arith.subf %1, %8 : vector<8x32xf32>
    %10 = arith.mulf %9, %9 : vector<8x32xf32>
    %cst_7 = arith.constant dense<0.000000e+00> : vector<8xf32>
    %11 = vector.multi_reduction <add>, %10, %cst_7 [1] : vector<8x32xf32> to vector<8xf32>
    %12 = vector.shape_cast %11 : vector<8xf32> to vector<8x1xf32>
    %cst_8 = arith.constant 3.200000e+01 : f32
    %13 = vector.broadcast %cst_8 : f32 to vector<8x1xf32>
    %14 = arith.divf %12, %13 : vector<8x1xf32>
    %cst_9 = arith.constant 9.99999974E-6 : f32
    %15 = vector.broadcast %cst_9 : f32 to vector<8x1xf32>
    %16 = arith.addf %14, %15 : vector<8x1xf32>
    %17 = math.rsqrt %16 : vector<8x1xf32>
    %18 = vector.broadcast %17 : vector<8x1xf32> to vector<8x32xf32>
    %19 = arith.mulf %9, %18 : vector<8x32xf32>
    %20 = vector.broadcast %2 : vector<1x32xf32> to vector<8x32xf32>
    %21 = arith.mulf %19, %20 : vector<8x32xf32>
    %22 = vector.broadcast %3 : vector<1x32xf32> to vector<8x32xf32>
    %23 = arith.addf %21, %22 : vector<8x32xf32>
    %24 = arith.truncf %23 : vector<8x32xf32> to vector<8x32xbf16>
    %c0_10 = arith.constant 0 : index
    %c0_11 = arith.constant 0 : index
    %25 = vector.load %arg4[%c0_10, %c0_11] : memref<32x96xbf16, #tpu.memory_space<vmem>>, vector<32x96xbf16>
    %cst_12 = arith.constant dense<0.000000e+00> : vector<8x96xf32>
    %26 = tpu.matmul %24, %25, %cst_12 {dimension_numbers = #tpu.dot_dimension_numbers<[1], [0], [0], [1], [0, 0, 1, 1], [], []>} : vector<8x32xbf16>, vector<32x96xbf16>, vector<8x96xf32> -> vector<8x96xf32>
    %c0_13 = arith.constant 0 : index
    %c0_14 = arith.constant 0 : index
    %27 = vector.load %arg5[%c0_13, %c0_14] : memref<1x96xf32, #tpu.memory_space<vmem>>, vector<1x96xf32>
    %28 = vector.broadcast %27 : vector<1x96xf32> to vector<8x96xf32>
    %29 = arith.addf %26, %28 : vector<8x96xf32>
    %30 = vector.extract_strided_slice %29 {offsets = [0, 0], sizes = [8, 32], strides = [1, 1]} : vector<8x96xf32> to vector<8x32xf32>
    %31 = vector.shape_cast %30 : vector<8x32xf32> to vector<8x4x8xf32>
    %32 = tpu.transpose %31, [1, 0, 2] : vector<8x4x8xf32> -> vector<4x8x8xf32>
    %33 = arith.truncf %32 : vector<4x8x8xf32> to vector<4x8x8xbf16>
    %34 = vector.extract_strided_slice %29 {offsets = [0, 32], sizes = [8, 32], strides = [1, 1]} : vector<8x96xf32> to vector<8x32xf32>
    %35 = vector.shape_cast %34 : vector<8x32xf32> to vector<8x4x8xf32>
    %36 = tpu.transpose %35, [1, 0, 2] : vector<8x4x8xf32> -> vector<4x8x8xf32>
    %37 = arith.truncf %36 : vector<4x8x8xf32> to vector<4x8x8xbf16>
    %38 = vector.extract_strided_slice %29 {offsets = [0, 64], sizes = [8, 32], strides = [1, 1]} : vector<8x96xf32> to vector<8x32xf32>
    %39 = vector.shape_cast %38 : vector<8x32xf32> to vector<8x4x8xf32>
    %40 = tpu.transpose %39, [1, 0, 2] : vector<8x4x8xf32> -> vector<4x8x8xf32>
    %41 = arith.truncf %40 : vector<4x8x8xf32> to vector<4x8x8xbf16>
    "tpu.trace_start"() <{level = 10 : i32, message = "hqf,hkf->hqk"}> : () -> ()
    %cst_15 = arith.constant dense<0.000000e+00> : vector<4x8x8xf32>
    %42 = tpu.matmul %33, %37, %cst_15 {dimension_numbers = #tpu.dot_dimension_numbers<[2], [2], [1], [1], [0, 0, 0, 1, 1, 1], [0], [0]>} : vector<4x8x8xbf16>, vector<4x8x8xbf16>, vector<4x8x8xf32> -> vector<4x8x8xf32>
    "tpu.trace_stop"() : () -> ()
    %cst_16 = arith.constant dense<0xFF800000> : vector<4x8xf32>
    %43 = vector.multi_reduction <maximumf>, %42, %cst_16 [2] : vector<4x8x8xf32> to vector<4x8xf32>
    %44 = vector.shape_cast %43 : vector<4x8xf32> to vector<4x8x1xf32>
    %45 = vector.broadcast %44 : vector<4x8x1xf32> to vector<4x8x8xf32>
    %46 = arith.subf %42, %45 : vector<4x8x8xf32>
    %47 = math.exp %46 : vector<4x8x8xf32>
    %cst_17 = arith.constant dense<0.000000e+00> : vector<4x8xf32>
    %48 = vector.multi_reduction <add>, %47, %cst_17 [2] : vector<4x8x8xf32> to vector<4x8xf32>
    %49 = vector.shape_cast %48 : vector<4x8xf32> to vector<4x8x1xf32>
    %50 = vector.broadcast %49 : vector<4x8x1xf32> to vector<4x8x8xf32>
    %51 = arith.divf %47, %50 : vector<4x8x8xf32>
    %52 = arith.truncf %51 : vector<4x8x8xf32> to vector<4x8x8xbf16>
    "tpu.trace_start"() <{level = 10 : i32, message = "hqk,hkf->hqf"}> : () -> ()
    %cst_18 = arith.constant dense<0.000000e+00> : vector<4x8x8xf32>
    %53 = tpu.matmul %52, %41, %cst_18 {dimension_numbers = #tpu.dot_dimension_numbers<[2], [1], [1], [2], [0, 0, 0, 1, 1, 2], [0], [0]>} : vector<4x8x8xbf16>, vector<4x8x8xbf16>, vector<4x8x8xf32> -> vector<4x8x8xf32>
    "tpu.trace_stop"() : () -> ()
    %54 = tpu.transpose %53, [1, 0, 2] : vector<4x8x8xf32> -> vector<8x4x8xf32>
    %55 = vector.shape_cast %54 : vector<8x4x8xf32> to vector<8x32xf32>
    %56 = arith.truncf %55 : vector<8x32xf32> to vector<8x32xbf16>
    %c0_19 = arith.constant 0 : index
    %c0_20 = arith.constant 0 : index
    %57 = vector.load %arg6[%c0_19, %c0_20] : memref<32x32xbf16, #tpu.memory_space<vmem>>, vector<32x32xbf16>
    %cst_21 = arith.constant dense<0.000000e+00> : vector<8x32xf32>
    %58 = tpu.matmul %56, %57, %cst_21 {dimension_numbers = #tpu.dot_dimension_numbers<[1], [0], [0], [1], [0, 0, 1, 1], [], []>} : vector<8x32xbf16>, vector<32x32xbf16>, vector<8x32xf32> -> vector<8x32xf32>
    %c0_22 = arith.constant 0 : index
    %c0_23 = arith.constant 0 : index
    %59 = vector.load %arg7[%c0_22, %c0_23] : memref<1x32xf32, #tpu.memory_space<vmem>>, vector<1x32xf32>
    %60 = vector.broadcast %59 : vector<1x32xf32> to vector<8x32xf32>
    %61 = arith.addf %58, %60 : vector<8x32xf32>
    %62 = arith.addf %1, %61 : vector<8x32xf32>
    %c0_24 = arith.constant 0 : index
    %c0_25 = arith.constant 0 : index
    %c0_26 = arith.constant 0 : index
    %63 = vector.load %arg8[%c0_24, %c0_25, %c0_26] : memref<1x8x32xf32, #tpu.memory_space<vmem>>, vector<1x8x32xf32>
    %64 = vector.shape_cast %63 : vector<1x8x32xf32> to vector<8x32xf32>
    %65 = vector.shape_cast %62 : vector<8x32xf32> to vector<1x8x32xf32>
    tpu.vector_store %arg8[%c0_24, %c0_25, %c0_26], %65 {strides = array<i32>} : memref<1x8x32xf32, #tpu.memory_space<vmem>>, vector<1x8x32xf32>,
    return
  }
  func.func @transform_0(%arg0: i32) -> (i32, i32, i32) {
    %c0_i32 = arith.constant 0 : i32
    %c0_i32_0 = arith.constant 0 : i32
    %c0_i32_1 = arith.constant 0 : i32
    return %arg0, %c0_i32, %c0_i32_0 : i32, i32, i32
  }
  func.func @transform_1(%arg0: i32) -> (i32, i32) {
    %c0_i32 = arith.constant 0 : i32
    %c0_i32_0 = arith.constant 0 : i32
    %c0_i32_1 = arith.constant 0 : i32
    return %c0_i32, %c0_i32_0 : i32, i32
  }
  func.func @transform_2(%arg0: i32) -> (i32, i32) {
    %c0_i32 = arith.constant 0 : i32
    %c0_i32_0 = arith.constant 0 : i32
    %c0_i32_1 = arith.constant 0 : i32
    return %c0_i32, %c0_i32_0 : i32, i32
  }
  func.func @transform_3(%arg0: i32) -> (i32, i32) {
    %c0_i32 = arith.constant 0 : i32
    %c0_i32_0 = arith.constant 0 : i32
    %c0_i32_1 = arith.constant 0 : i32
    return %c0_i32, %c0_i32_0 : i32, i32
  }
  func.func @transform_4(%arg0: i32) -> (i32, i32) {
    %c0_i32 = arith.constant 0 : i32
    %c0_i32_0 = arith.constant 0 : i32
    %c0_i32_1 = arith.constant 0 : i32
    return %c0_i32, %c0_i32_0 : i32, i32
  }
  func.func @transform_5(%arg0: i32) -> (i32, i32) {
    %c0_i32 = arith.constant 0 : i32
    %c0_i32_0 = arith.constant 0 : i32
    %c0_i32_1 = arith.constant 0 : i32
    return %c0_i32, %c0_i32_0 : i32, i32
  }
  func.func @transform_6(%arg0: i32) -> (i32, i32) {
    %c0_i32 = arith.constant 0 : i32
    %c0_i32_0 = arith.constant 0 : i32
    %c0_i32_1 = arith.constant 0 : i32
    return %c0_i32, %c0_i32_0 : i32, i32
  }
  func.func @transform_7(%arg0: i32) -> (i32, i32, i32) {
    %c0_i32 = arith.constant 0 : i32
    %c0_i32_0 = arith.constant 0 : i32
    %c0_i32_1 = arith.constant 0 : i32
    return %arg0, %c0_i32, %c0_i32_0 : i32, i32, i32
  }
}

module attributes {stable_mosaic.version = 11 : i64} {
  func.func @_mlp_kernel(%arg0: i32, %arg1: memref<16x32xf32, #tpu.memory_space<vmem>>, %arg2: memref<1x32xf32, #tpu.memory_space<vmem>>, %arg3: memref<1x32xf32, #tpu.memory_space<vmem>>, %arg4: memref<32x128xbf16, #tpu.memory_space<vmem>>, %arg5: memref<1x128xf32, #tpu.memory_space<vmem>>, %arg6: memref<128x32xbf16, #tpu.memory_space<vmem>>, %arg7: memref<1x32xf32, #tpu.memory_space<vmem>>, %arg8: memref<16x32xf32, #tpu.memory_space<vmem>>) attributes {dimension_semantics = [#tpu.dimension_semantics<parallel>], iteration_bounds = array<i64: 1>, scalar_prefetch = 0 : i64, scratch_operands = 0 : i64, tpu.core_type = #tpu.core_type<tc>, window_params = [{transform_indices = @transform_0, window_bounds = array<i64: 16, 32>}, {pipeline_mode = #tpu.pipeline_mode<synchronous>, transform_indices = @transform_1, window_bounds = array<i64: 1, 32>}, {pipeline_mode = #tpu.pipeline_mode<synchronous>, transform_indices = @transform_2, window_bounds = array<i64: 1, 32>}, {pipeline_mode = #tpu.pipeline_mode<synchronous>, transform_indices = @transform_3, window_bounds = array<i64: 32, 128>}, {pipeline_mode = #tpu.pipeline_mode<synchronous>, transform_indices = @transform_4, window_bounds = array<i64: 1, 128>}, {pipeline_mode = #tpu.pipeline_mode<synchronous>, transform_indices = @transform_5, window_bounds = array<i64: 128, 32>}, {pipeline_mode = #tpu.pipeline_mode<synchronous>, transform_indices = @transform_6, window_bounds = array<i64: 1, 32>}, {transform_indices = @transform_7, window_bounds = array<i64: 16, 32>}]} {
    %c0 = arith.constant 0 : index
    %c0_0 = arith.constant 0 : index
    %0 = vector.load %arg1[%c0, %c0_0] : memref<16x32xf32, #tpu.memory_space<vmem>>, vector<16x32xf32>
    %c0_1 = arith.constant 0 : index
    %c0_2 = arith.constant 0 : index
    %1 = vector.load %arg2[%c0_1, %c0_2] : memref<1x32xf32, #tpu.memory_space<vmem>>, vector<1x32xf32>
    %c0_3 = arith.constant 0 : index
    %c0_4 = arith.constant 0 : index
    %2 = vector.load %arg3[%c0_3, %c0_4] : memref<1x32xf32, #tpu.memory_space<vmem>>, vector<1x32xf32>
    %cst = arith.constant dense<0.000000e+00> : vector<16xf32>
    %3 = vector.multi_reduction <add>, %0, %cst [1] : vector<16x32xf32> to vector<16xf32>
    %4 = vector.shape_cast %3 : vector<16xf32> to vector<16x1xf32>
    %cst_5 = arith.constant 3.200000e+01 : f32
    %5 = vector.broadcast %cst_5 : f32 to vector<16x1xf32>
    %6 = arith.divf %4, %5 : vector<16x1xf32>
    %7 = vector.broadcast %6 : vector<16x1xf32> to vector<16x32xf32>
    %8 = arith.subf %0, %7 : vector<16x32xf32>
    %9 = arith.mulf %8, %8 : vector<16x32xf32>
    %cst_6 = arith.constant dense<0.000000e+00> : vector<16xf32>
    %10 = vector.multi_reduction <add>, %9, %cst_6 [1] : vector<16x32xf32> to vector<16xf32>
    %11 = vector.shape_cast %10 : vector<16xf32> to vector<16x1xf32>
    %cst_7 = arith.constant 3.200000e+01 : f32
    %12 = vector.broadcast %cst_7 : f32 to vector<16x1xf32>
    %13 = arith.divf %11, %12 : vector<16x1xf32>
    %cst_8 = arith.constant 9.99999974E-6 : f32
    %14 = vector.broadcast %cst_8 : f32 to vector<16x1xf32>
    %15 = arith.addf %13, %14 : vector<16x1xf32>
    %16 = math.rsqrt %15 : vector<16x1xf32>
    %17 = vector.broadcast %16 : vector<16x1xf32> to vector<16x32xf32>
    %18 = arith.mulf %8, %17 : vector<16x32xf32>
    %19 = vector.broadcast %1 : vector<1x32xf32> to vector<16x32xf32>
    %20 = arith.mulf %18, %19 : vector<16x32xf32>
    %21 = vector.broadcast %2 : vector<1x32xf32> to vector<16x32xf32>
    %22 = arith.addf %20, %21 : vector<16x32xf32>
    %23 = arith.truncf %22 : vector<16x32xf32> to vector<16x32xbf16>
    %c0_9 = arith.constant 0 : index
    %c0_10 = arith.constant 0 : index
    %24 = vector.load %arg4[%c0_9, %c0_10] : memref<32x128xbf16, #tpu.memory_space<vmem>>, vector<32x128xbf16>
    %cst_11 = arith.constant dense<0.000000e+00> : vector<16x128xf32>
    %25 = tpu.matmul %23, %24, %cst_11 {dimension_numbers = #tpu.dot_dimension_numbers<[1], [0], [0], [1], [0, 0, 1, 1], [], []>} : vector<16x32xbf16>, vector<32x128xbf16>, vector<16x128xf32> -> vector<16x128xf32>
    %c0_12 = arith.constant 0 : index
    %c0_13 = arith.constant 0 : index
    %26 = vector.load %arg5[%c0_12, %c0_13] : memref<1x128xf32, #tpu.memory_space<vmem>>, vector<1x128xf32>
    %27 = vector.broadcast %26 : vector<1x128xf32> to vector<16x128xf32>
    %28 = arith.addf %25, %27 : vector<16x128xf32>
    %cst_14 = arith.constant 5.000000e-01 : f32
    %29 = vector.broadcast %cst_14 : f32 to vector<16x128xf32>
    %30 = arith.mulf %29, %28 : vector<16x128xf32>
    %cst_15 = arith.constant 0.707106769 : f32
    %31 = vector.broadcast %cst_15 : f32 to vector<16x128xf32>
    %32 = arith.mulf %28, %31 : vector<16x128xf32>
    %33 = math.erf %32 : vector<16x128xf32>
    %cst_16 = arith.constant 1.000000e+00 : f32
    %34 = vector.broadcast %cst_16 : f32 to vector<16x128xf32>
    %35 = arith.addf %34, %33 : vector<16x128xf32>
    %36 = arith.mulf %30, %35 : vector<16x128xf32>
    %37 = arith.truncf %36 : vector<16x128xf32> to vector<16x128xbf16>
    %c0_17 = arith.constant 0 : index
    %c0_18 = arith.constant 0 : index
    %38 = vector.load %arg6[%c0_17, %c0_18] : memref<128x32xbf16, #tpu.memory_space<vmem>>, vector<128x32xbf16>
    %cst_19 = arith.constant dense<0.000000e+00> : vector<16x32xf32>
    %39 = tpu.matmul %37, %38, %cst_19 {dimension_numbers = #tpu.dot_dimension_numbers<[1], [0], [0], [1], [0, 0, 1, 1], [], []>} : vector<16x128xbf16>, vector<128x32xbf16>, vector<16x32xf32> -> vector<16x32xf32>
    %c0_20 = arith.constant 0 : index
    %c0_21 = arith.constant 0 : index
    %40 = vector.load %arg7[%c0_20, %c0_21] : memref<1x32xf32, #tpu.memory_space<vmem>>, vector<1x32xf32>
    %41 = vector.broadcast %40 : vector<1x32xf32> to vector<16x32xf32>
    %42 = arith.addf %39, %41 : vector<16x32xf32>
    %43 = arith.addf %0, %42 : vector<16x32xf32>
    %c0_22 = arith.constant 0 : index
    %c0_23 = arith.constant 0 : index
    %44 = vector.load %arg8[%c0_22, %c0_23] : memref<16x32xf32, #tpu.memory_space<vmem>>, vector<16x32xf32>
    tpu.vector_store %arg8[%c0_22, %c0_23], %43 {strides = array<i32>} : memref<16x32xf32, #tpu.memory_space<vmem>>, vector<16x32xf32>,
    return
  }
  func.func @transform_0(%arg0: i32) -> (i32, i32) {
    %c0_i32 = arith.constant 0 : i32
    %c0_i32_0 = arith.constant 0 : i32
    return %arg0, %c0_i32 : i32, i32
  }
  func.func @transform_1(%arg0: i32) -> (i32, i32) {
    %c0_i32 = arith.constant 0 : i32
    %c0_i32_0 = arith.constant 0 : i32
    %c0_i32_1 = arith.constant 0 : i32
    return %c0_i32, %c0_i32_0 : i32, i32
  }
  func.func @transform_2(%arg0: i32) -> (i32, i32) {
    %c0_i32 = arith.constant 0 : i32
    %c0_i32_0 = arith.constant 0 : i32
    %c0_i32_1 = arith.constant 0 : i32
    return %c0_i32, %c0_i32_0 : i32, i32
  }
  func.func @transform_3(%arg0: i32) -> (i32, i32) {
    %c0_i32 = arith.constant 0 : i32
    %c0_i32_0 = arith.constant 0 : i32
    %c0_i32_1 = arith.constant 0 : i32
    return %c0_i32, %c0_i32_0 : i32, i32
  }
  func.func @transform_4(%arg0: i32) -> (i32, i32) {
    %c0_i32 = arith.constant 0 : i32
    %c0_i32_0 = arith.constant 0 : i32
    %c0_i32_1 = arith.constant 0 : i32
    return %c0_i32, %c0_i32_0 : i32, i32
  }
  func.func @transform_5(%arg0: i32) -> (i32, i32) {
    %c0_i32 = arith.constant 0 : i32
    %c0_i32_0 = arith.constant 0 : i32
    %c0_i32_1 = arith.constant 0 : i32
    return %c0_i32, %c0_i32_0 : i32, i32
  }
  func.func @transform_6(%arg0: i32) -> (i32, i32) {
    %c0_i32 = arith.constant 0 : i32
    %c0_i32_0 = arith.constant 0 : i32
    %c0_i32_1 = arith.constant 0 : i32
    return %c0_i32, %c0_i32_0 : i32, i32
  }
  func.func @transform_7(%arg0: i32) -> (i32, i32) {
    %c0_i32 = arith.constant 0 : i32
    %c0_i32_0 = arith.constant 0 : i32
    return %arg0, %c0_i32 : i32, i32
  }
}

module attributes {stable_mosaic.version = 11 : i64} {
  func.func @_attn_kernel(%arg0: i32, %arg1: memref<1x8x32xf32, #tpu.memory_space<vmem>>, %arg2: memref<1x32xf32, #tpu.memory_space<vmem>>, %arg3: memref<1x32xf32, #tpu.memory_space<vmem>>, %arg4: memref<32x96xbf16, #tpu.memory_space<vmem>>, %arg5: memref<1x96xf32, #tpu.memory_space<vmem>>, %arg6: memref<32x32xbf16, #tpu.memory_space<vmem>>, %arg7: memref<1x32xf32, #tpu.memory_space<vmem>>, %arg8: memref<1x8x32xf32, #tpu.memory_space<vmem>>) attributes {dimension_semantics = [#tpu.dimension_semantics<parallel>], iteration_bounds = array<i64: 2>, scalar_prefetch = 0 : i64, scratch_operands = 0 : i64, tpu.core_type = #tpu.core_type<tc>, window_params = [{transform_indices = @transform_0, window_bounds = array<i64: 1, 8, 32>}, {pipeline_mode = #tpu.pipeline_mode<synchronous>, transform_indices = @transform_1, window_bounds = array<i64: 1, 32>}, {pipeline_mode = #tpu.pipeline_mode<synchronous>, transform_indices = @transform_2, window_bounds = array<i64: 1, 32>}, {pipeline_mode = #tpu.pipeline_mode<synchronous>, transform_indices = @transform_3, window_bounds = array<i64: 32, 96>}, {pipeline_mode = #tpu.pipeline_mode<synchronous>, transform_indices = @transform_4, window_bounds = array<i64: 1, 96>}, {pipeline_mode = #tpu.pipeline_mode<synchronous>, transform_indices = @transform_5, window_bounds = array<i64: 32, 32>}, {pipeline_mode = #tpu.pipeline_mode<synchronous>, transform_indices = @transform_6, window_bounds = array<i64: 1, 32>}, {transform_indices = @transform_7, window_bounds = array<i64: 1, 8, 32>}]} {
    %c0 = arith.constant 0 : index
    %c0_0 = arith.constant 0 : index
    %c0_1 = arith.constant 0 : index
    %0 = vector.load %arg1[%c0, %c0_0, %c0_1] : memref<1x8x32xf32, #tpu.memory_space<vmem>>, vector<1x8x32xf32>
    %1 = vector.shape_cast %0 : vector<1x8x32xf32> to vector<8x32xf32>
    %c0_2 = arith.constant 0 : index
    %c0_3 = arith.constant 0 : index
    %2 = vector.load %arg2[%c0_2, %c0_3] : memref<1x32xf32, #tpu.memory_space<vmem>>, vector<1x32xf32>
    %c0_4 = arith.constant 0 : index
    %c0_5 = arith.constant 0 : index
    %3 = vector.load %arg3[%c0_4, %c0_5] : memref<1x32xf32, #tpu.memory_space<vmem>>, vector<1x32xf32>
    %cst = arith.constant dense<0.000000e+00> : vector<8xf32>
    %4 = vector.multi_reduction <add>, %1, %cst [1] : vector<8x32xf32> to vector<8xf32>
    %5 = vector.shape_cast %4 : vector<8xf32> to vector<8x1xf32>
    %cst_6 = arith.constant 3.200000e+01 : f32
    %6 = vector.broadcast %cst_6 : f32 to vector<8x1xf32>
    %7 = arith.divf %5, %6 : vector<8x1xf32>
    %8 = vector.broadcast %7 : vector<8x1xf32> to vector<8x32xf32>
    %9 = arith.subf %1, %8 : vector<8x32xf32>
    %10 = arith.mulf %9, %9 : vector<8x32xf32>
    %cst_7 = arith.constant dense<0.000000e+00> : vector<8xf32>
    %11 = vector.multi_reduction <add>, %10, %cst_7 [1] : vector<8x32xf32> to vector<8xf32>
    %12 = vector.shape_cast %11 : vector<8xf32> to vector<8x1xf32>
    %cst_8 = arith.constant 3.200000e+01 : f32
    %13 = vector.broadcast %cst_8 : f32 to vector<8x1xf32>
    %14 = arith.divf %12, %13 : vector<8x1xf32>
    %cst_9 = arith.constant 9.99999974E-6 : f32
    %15 = vector.broadcast %cst_9 : f32 to vector<8x1xf32>
    %16 = arith.addf %14, %15 : vector<8x1xf32>
    %17 = math.rsqrt %16 : vector<8x1xf32>
    %18 = vector.broadcast %17 : vector<8x1xf32> to vector<8x32xf32>
    %19 = arith.mulf %9, %18 : vector<8x32xf32>
    %20 = vector.broadcast %2 : vector<1x32xf32> to vector<8x32xf32>
    %21 = arith.mulf %19, %20 : vector<8x32xf32>
    %22 = vector.broadcast %3 : vector<1x32xf32> to vector<8x32xf32>
    %23 = arith.addf %21, %22 : vector<8x32xf32>
    %24 = arith.truncf %23 : vector<8x32xf32> to vector<8x32xbf16>
    %c0_10 = arith.constant 0 : index
    %c0_11 = arith.constant 0 : index
    %25 = vector.load %arg4[%c0_10, %c0_11] : memref<32x96xbf16, #tpu.memory_space<vmem>>, vector<32x96xbf16>
    %cst_12 = arith.constant dense<0.000000e+00> : vector<8x96xf32>
    %26 = tpu.matmul %24, %25, %cst_12 {dimension_numbers = #tpu.dot_dimension_numbers<[1], [0], [0], [1], [0, 0, 1, 1], [], []>} : vector<8x32xbf16>, vector<32x96xbf16>, vector<8x96xf32> -> vector<8x96xf32>
    %c0_13 = arith.constant 0 : index
    %c0_14 = arith.constant 0 : index
    %27 = vector.load %arg5[%c0_13, %c0_14] : memref<1x96xf32, #tpu.memory_space<vmem>>, vector<1x96xf32>
    %28 = vector.broadcast %27 : vector<1x96xf32> to vector<8x96xf32>
    %29 = arith.addf %26, %28 : vector<8x96xf32>
    %30 = vector.extract_strided_slice %29 {offsets = [0, 0], sizes = [8, 32], strides = [1, 1]} : vector<8x96xf32> to vector<8x32xf32>
    %31 = vector.shape_cast %30 : vector<8x32xf32> to vector<8x4x8xf32>
    %32 = tpu.transpose %31, [1, 0, 2] : vector<8x4x8xf32> -> vector<4x8x8xf32>
    %33 = arith.truncf %32 : vector<4x8x8xf32> to vector<4x8x8xbf16>
    %34 = vector.extract_strided_slice %29 {offsets = [0, 32], sizes = [8, 32], strides = [1, 1]} : vector<8x96xf32> to vector<8x32xf32>
    %35 = vector.shape_cast %34 : vector<8x32xf32> to vector<8x4x8xf32>
    %36 = tpu.transpose %35, [1, 0, 2] : vector<8x4x8xf32> -> vector<4x8x8xf32>
    %37 = arith.truncf %36 : vector<4x8x8xf32> to vector<4x8x8xbf16>
    %38 = vector.extract_strided_slice %29 {offsets = [0, 64], sizes = [8, 32], strides = [1, 1]} : vector<8x96xf32> to vector<8x32xf32>
    %39 = vector.shape_cast %38 : vector<8x32xf32> to vector<8x4x8xf32>
    %40 = tpu.transpose %39, [1, 0, 2] : vector<8x4x8xf32> -> vector<4x8x8xf32>
    %41 = arith.truncf %40 : vector<4x8x8xf32> to vector<4x8x8xbf16>
    "tpu.trace_start"() <{level = 10 : i32, message = "hqf,hkf->hqk"}> : () -> ()
    %cst_15 = arith.constant dense<0.000000e+00> : vector<4x8x8xf32>
    %42 = tpu.matmul %33, %37, %cst_15 {dimension_numbers = #tpu.dot_dimension_numbers<[2], [2], [1], [1], [0, 0, 0, 1, 1, 1], [0], [0]>} : vector<4x8x8xbf16>, vector<4x8x8xbf16>, vector<4x8x8xf32> -> vector<4x8x8xf32>
    "tpu.trace_stop"() : () -> ()
    %cst_16 = arith.constant dense<0xFF800000> : vector<4x8xf32>
    %43 = vector.multi_reduction <maximumf>, %42, %cst_16 [2] : vector<4x8x8xf32> to vector<4x8xf32>
    %44 = vector.shape_cast %43 : vector<4x8xf32> to vector<4x8x1xf32>
    %45 = vector.broadcast %44 : vector<4x8x1xf32> to vector<4x8x8xf32>
    %46 = arith.subf %42, %45 : vector<4x8x8xf32>
    %47 = math.exp %46 : vector<4x8x8xf32>
    %cst_17 = arith.constant dense<0.000000e+00> : vector<4x8xf32>
    %48 = vector.multi_reduction <add>, %47, %cst_17 [2] : vector<4x8x8xf32> to vector<4x8xf32>
    %49 = vector.shape_cast %48 : vector<4x8xf32> to vector<4x8x1xf32>
    %50 = vector.broadcast %49 : vector<4x8x1xf32> to vector<4x8x8xf32>
    %51 = arith.divf %47, %50 : vector<4x8x8xf32>
    %52 = arith.truncf %51 : vector<4x8x8xf32> to vector<4x8x8xbf16>
    "tpu.trace_start"() <{level = 10 : i32, message = "hqk,hkf->hqf"}> : () -> ()
    %cst_18 = arith.constant dense<0.000000e+00> : vector<4x8x8xf32>
    %53 = tpu.matmul %52, %41, %cst_18 {dimension_numbers = #tpu.dot_dimension_numbers<[2], [1], [1], [2], [0, 0, 0, 1, 1, 2], [0], [0]>} : vector<4x8x8xbf16>, vector<4x8x8xbf16>, vector<4x8x8xf32> -> vector<4x8x8xf32>
    "tpu.trace_stop"() : () -> ()
    %54 = tpu.transpose %53, [1, 0, 2] : vector<4x8x8xf32> -> vector<8x4x8xf32>
    %55 = vector.shape_cast %54 : vector<8x4x8xf32> to vector<8x32xf32>
    %56 = arith.truncf %55 : vector<8x32xf32> to vector<8x32xbf16>
    %c0_19 = arith.constant 0 : index
    %c0_20 = arith.constant 0 : index
    %57 = vector.load %arg6[%c0_19, %c0_20] : memref<32x32xbf16, #tpu.memory_space<vmem>>, vector<32x32xbf16>
    %cst_21 = arith.constant dense<0.000000e+00> : vector<8x32xf32>
    %58 = tpu.matmul %56, %57, %cst_21 {dimension_numbers = #tpu.dot_dimension_numbers<[1], [0], [0], [1], [0, 0, 1, 1], [], []>} : vector<8x32xbf16>, vector<32x32xbf16>, vector<8x32xf32> -> vector<8x32xf32>
    %c0_22 = arith.constant 0 : index
    %c0_23 = arith.constant 0 : index
    %59 = vector.load %arg7[%c0_22, %c0_23] : memref<1x32xf32, #tpu.memory_space<vmem>>, vector<1x32xf32>
    %60 = vector.broadcast %59 : vector<1x32xf32> to vector<8x32xf32>
    %61 = arith.addf %58, %60 : vector<8x32xf32>
    %62 = arith.addf %1, %61 : vector<8x32xf32>
    %c0_24 = arith.constant 0 : index
    %c0_25 = arith.constant 0 : index
    %c0_26 = arith.constant 0 : index
    %63 = vector.load %arg8[%c0_24, %c0_25, %c0_26] : memref<1x8x32xf32, #tpu.memory_space<vmem>>, vector<1x8x32xf32>
    %64 = vector.shape_cast %63 : vector<1x8x32xf32> to vector<8x32xf32>
    %65 = vector.shape_cast %62 : vector<8x32xf32> to vector<1x8x32xf32>
    tpu.vector_store %arg8[%c0_24, %c0_25, %c0_26], %65 {strides = array<i32>} : memref<1x8x32xf32, #tpu.memory_space<vmem>>, vector<1x8x32xf32>,
    return
  }
  func.func @transform_0(%arg0: i32) -> (i32, i32, i32) {
    %c0_i32 = arith.constant 0 : i32
    %c0_i32_0 = arith.constant 0 : i32
    %c0_i32_1 = arith.constant 0 : i32
    return %arg0, %c0_i32, %c0_i32_0 : i32, i32, i32
  }
  func.func @transform_1(%arg0: i32) -> (i32, i32) {
    %c0_i32 = arith.constant 0 : i32
    %c0_i32_0 = arith.constant 0 : i32
    %c0_i32_1 = arith.constant 0 : i32
    return %c0_i32, %c0_i32_0 : i32, i32
  }
  func.func @transform_2(%arg0: i32) -> (i32, i32) {
    %c0_i32 = arith.constant 0 : i32
    %c0_i32_0 = arith.constant 0 : i32
    %c0_i32_1 = arith.constant 0 : i32
    return %c0_i32, %c0_i32_0 : i32, i32
  }
  func.func @transform_3(%arg0: i32) -> (i32, i32) {
    %c0_i32 = arith.constant 0 : i32
    %c0_i32_0 = arith.constant 0 : i32
    %c0_i32_1 = arith.constant 0 : i32
    return %c0_i32, %c0_i32_0 : i32, i32
  }
  func.func @transform_4(%arg0: i32) -> (i32, i32) {
    %c0_i32 = arith.constant 0 : i32
    %c0_i32_0 = arith.constant 0 : i32
    %c0_i32_1 = arith.constant 0 : i32
    return %c0_i32, %c0_i32_0 : i32, i32
  }
  func.func @transform_5(%arg0: i32) -> (i32, i32) {
    %c0_i32 = arith.constant 0 : i32
    %c0_i32_0 = arith.constant 0 : i32
    %c0_i32_1 = arith.constant 0 : i32
    return %c0_i32, %c0_i32_0 : i32, i32
  }
  func.func @transform_6(%arg0: i32) -> (i32, i32) {
    %c0_i32 = arith.constant 0 : i32
    %c0_i32_0 = arith.constant 0 : i32
    %c0_i32_1 = arith.constant 0 : i32
    return %c0_i32, %c0_i32_0 : i32, i32
  }
  func.func @transform_7(%arg0: i32) -> (i32, i32, i32) {
    %c0_i32 = arith.constant 0 : i32
    %c0_i32_0 = arith.constant 0 : i32
    %c0_i32_1 = arith.constant 0 : i32
    return %arg0, %c0_i32, %c0_i32_0 : i32, i32, i32
  }
}

module attributes {stable_mosaic.version = 11 : i64} {
  func.func @_mlp_kernel(%arg0: i32, %arg1: memref<16x32xf32, #tpu.memory_space<vmem>>, %arg2: memref<1x32xf32, #tpu.memory_space<vmem>>, %arg3: memref<1x32xf32, #tpu.memory_space<vmem>>, %arg4: memref<32x128xbf16, #tpu.memory_space<vmem>>, %arg5: memref<1x128xf32, #tpu.memory_space<vmem>>, %arg6: memref<128x32xbf16, #tpu.memory_space<vmem>>, %arg7: memref<1x32xf32, #tpu.memory_space<vmem>>, %arg8: memref<16x32xf32, #tpu.memory_space<vmem>>) attributes {dimension_semantics = [#tpu.dimension_semantics<parallel>], iteration_bounds = array<i64: 1>, scalar_prefetch = 0 : i64, scratch_operands = 0 : i64, tpu.core_type = #tpu.core_type<tc>, window_params = [{transform_indices = @transform_0, window_bounds = array<i64: 16, 32>}, {pipeline_mode = #tpu.pipeline_mode<synchronous>, transform_indices = @transform_1, window_bounds = array<i64: 1, 32>}, {pipeline_mode = #tpu.pipeline_mode<synchronous>, transform_indices = @transform_2, window_bounds = array<i64: 1, 32>}, {pipeline_mode = #tpu.pipeline_mode<synchronous>, transform_indices = @transform_3, window_bounds = array<i64: 32, 128>}, {pipeline_mode = #tpu.pipeline_mode<synchronous>, transform_indices = @transform_4, window_bounds = array<i64: 1, 128>}, {pipeline_mode = #tpu.pipeline_mode<synchronous>, transform_indices = @transform_5, window_bounds = array<i64: 128, 32>}, {pipeline_mode = #tpu.pipeline_mode<synchronous>, transform_indices = @transform_6, window_bounds = array<i64: 1, 32>}, {transform_indices = @transform_7, window_bounds = array<i64: 16, 32>}]} {
    %c0 = arith.constant 0 : index
    %c0_0 = arith.constant 0 : index
    %0 = vector.load %arg1[%c0, %c0_0] : memref<16x32xf32, #tpu.memory_space<vmem>>, vector<16x32xf32>
    %c0_1 = arith.constant 0 : index
    %c0_2 = arith.constant 0 : index
    %1 = vector.load %arg2[%c0_1, %c0_2] : memref<1x32xf32, #tpu.memory_space<vmem>>, vector<1x32xf32>
    %c0_3 = arith.constant 0 : index
    %c0_4 = arith.constant 0 : index
    %2 = vector.load %arg3[%c0_3, %c0_4] : memref<1x32xf32, #tpu.memory_space<vmem>>, vector<1x32xf32>
    %cst = arith.constant dense<0.000000e+00> : vector<16xf32>
    %3 = vector.multi_reduction <add>, %0, %cst [1] : vector<16x32xf32> to vector<16xf32>
    %4 = vector.shape_cast %3 : vector<16xf32> to vector<16x1xf32>
    %cst_5 = arith.constant 3.200000e+01 : f32
    %5 = vector.broadcast %cst_5 : f32 to vector<16x1xf32>
    %6 = arith.divf %4, %5 : vector<16x1xf32>
    %7 = vector.broadcast %6 : vector<16x1xf32> to vector<16x32xf32>
    %8 = arith.subf %0, %7 : vector<16x32xf32>
    %9 = arith.mulf %8, %8 : vector<16x32xf32>
    %cst_6 = arith.constant dense<0.000000e+00> : vector<16xf32>
    %10 = vector.multi_reduction <add>, %9, %cst_6 [1] : vector<16x32xf32> to vector<16xf32>
    %11 = vector.shape_cast %10 : vector<16xf32> to vector<16x1xf32>
    %cst_7 = arith.constant 3.200000e+01 : f32
    %12 = vector.broadcast %cst_7 : f32 to vector<16x1xf32>
    %13 = arith.divf %11, %12 : vector<16x1xf32>
    %cst_8 = arith.constant 9.99999974E-6 : f32
    %14 = vector.broadcast %cst_8 : f32 to vector<16x1xf32>
    %15 = arith.addf %13, %14 : vector<16x1xf32>
    %16 = math.rsqrt %15 : vector<16x1xf32>
    %17 = vector.broadcast %16 : vector<16x1xf32> to vector<16x32xf32>
    %18 = arith.mulf %8, %17 : vector<16x32xf32>
    %19 = vector.broadcast %1 : vector<1x32xf32> to vector<16x32xf32>
    %20 = arith.mulf %18, %19 : vector<16x32xf32>
    %21 = vector.broadcast %2 : vector<1x32xf32> to vector<16x32xf32>
    %22 = arith.addf %20, %21 : vector<16x32xf32>
    %23 = arith.truncf %22 : vector<16x32xf32> to vector<16x32xbf16>
    %c0_9 = arith.constant 0 : index
    %c0_10 = arith.constant 0 : index
    %24 = vector.load %arg4[%c0_9, %c0_10] : memref<32x128xbf16, #tpu.memory_space<vmem>>, vector<32x128xbf16>
    %cst_11 = arith.constant dense<0.000000e+00> : vector<16x128xf32>
    %25 = tpu.matmul %23, %24, %cst_11 {dimension_numbers = #tpu.dot_dimension_numbers<[1], [0], [0], [1], [0, 0, 1, 1], [], []>} : vector<16x32xbf16>, vector<32x128xbf16>, vector<16x128xf32> -> vector<16x128xf32>
    %c0_12 = arith.constant 0 : index
    %c0_13 = arith.constant 0 : index
    %26 = vector.load %arg5[%c0_12, %c0_13] : memref<1x128xf32, #tpu.memory_space<vmem>>, vector<1x128xf32>
    %27 = vector.broadcast %26 : vector<1x128xf32> to vector<16x128xf32>
    %28 = arith.addf %25, %27 : vector<16x128xf32>
    %cst_14 = arith.constant 5.000000e-01 : f32
    %29 = vector.broadcast %cst_14 : f32 to vector<16x128xf32>
    %30 = arith.mulf %29, %28 : vector<16x128xf32>
    %cst_15 = arith.constant 0.707106769 : f32
    %31 = vector.broadcast %cst_15 : f32 to vector<16x128xf32>
    %32 = arith.mulf %28, %31 : vector<16x128xf32>
    %33 = math.erf %32 : vector<16x128xf32>
    %cst_16 = arith.constant 1.000000e+00 : f32
    %34 = vector.broadcast %cst_16 : f32 to vector<16x128xf32>
    %35 = arith.addf %34, %33 : vector<16x128xf32>
    %36 = arith.mulf %30, %35 : vector<16x128xf32>
    %37 = arith.truncf %36 : vector<16x128xf32> to vector<16x128xbf16>
    %c0_17 = arith.constant 0 : index
    %c0_18 = arith.constant 0 : index
    %38 = vector.load %arg6[%c0_17, %c0_18] : memref<128x32xbf16, #tpu.memory_space<vmem>>, vector<128x32xbf16>
    %cst_19 = arith.constant dense<0.000000e+00> : vector<16x32xf32>
    %39 = tpu.matmul %37, %38, %cst_19 {dimension_numbers = #tpu.dot_dimension_numbers<[1], [0], [0], [1], [0, 0, 1, 1], [], []>} : vector<16x128xbf16>, vector<128x32xbf16>, vector<16x32xf32> -> vector<16x32xf32>
    %c0_20 = arith.constant 0 : index
    %c0_21 = arith.constant 0 : index
    %40 = vector.load %arg7[%c0_20, %c0_21] : memref<1x32xf32, #tpu.memory_space<vmem>>, vector<1x32xf32>
    %41 = vector.broadcast %40 : vector<1x32xf32> to vector<16x32xf32>
    %42 = arith.addf %39, %41 : vector<16x32xf32>
    %43 = arith.addf %0, %42 : vector<16x32xf32>
    %c0_22 = arith.constant 0 : index
    %c0_23 = arith.constant 0 : index
    %44 = vector.load %arg8[%c0_22, %c0_23] : memref<16x32xf32, #tpu.memory_space<vmem>>, vector<16x32xf32>
    tpu.vector_store %arg8[%c0_22, %c0_23], %43 {strides = array<i32>} : memref<16x32xf32, #tpu.memory_space<vmem>>, vector<16x32xf32>,
    return
  }
  func.func @transform_0(%arg0: i32) -> (i32, i32) {
    %c0_i32 = arith.constant 0 : i32
    %c0_i32_0 = arith.constant 0 : i32
    return %arg0, %c0_i32 : i32, i32
  }
  func.func @transform_1(%arg0: i32) -> (i32, i32) {
    %c0_i32 = arith.constant 0 : i32
    %c0_i32_0 = arith.constant 0 : i32
    %c0_i32_1 = arith.constant 0 : i32
    return %c0_i32, %c0_i32_0 : i32, i32
  }
  func.func @transform_2(%arg0: i32) -> (i32, i32) {
    %c0_i32 = arith.constant 0 : i32
    %c0_i32_0 = arith.constant 0 : i32
    %c0_i32_1 = arith.constant 0 : i32
    return %c0_i32, %c0_i32_0 : i32, i32
  }
  func.func @transform_3(%arg0: i32) -> (i32, i32) {
    %c0_i32 = arith.constant 0 : i32
    %c0_i32_0 = arith.constant 0 : i32
    %c0_i32_1 = arith.constant 0 : i32
    return %c0_i32, %c0_i32_0 : i32, i32
  }
  func.func @transform_4(%arg0: i32) -> (i32, i32) {
    %c0_i32 = arith.constant 0 : i32
    %c0_i32_0 = arith.constant 0 : i32
    %c0_i32_1 = arith.constant 0 : i32
    return %c0_i32, %c0_i32_0 : i32, i32
  }
  func.func @transform_5(%arg0: i32) -> (i32, i32) {
    %c0_i32 = arith.constant 0 : i32
    %c0_i32_0 = arith.constant 0 : i32
    %c0_i32_1 = arith.constant 0 : i32
    return %c0_i32, %c0_i32_0 : i32, i32
  }
  func.func @transform_6(%arg0: i32) -> (i32, i32) {
    %c0_i32 = arith.constant 0 : i32
    %c0_i32_0 = arith.constant 0 : i32
    %c0_i32_1 = arith.constant 0 : i32
    return %c0_i32, %c0_i32_0 : i32, i32
  }
  func.func @transform_7(%arg0: i32) -> (i32, i32) {
    %c0_i32 = arith.constant 0 : i32
    %c0_i32_0 = arith.constant 0 : i32
    return %arg0, %c0_i32 : i32, i32
  }
}

</mosaic_0001>

<llo_original>
// kernel: transformer_block.3
$region0: #{transformer_block.3}
  #allocation0 [shape = 'u32[]', space=smem, size = 0x4, offset = 0x4, fixed_abs, tag = 'smem constant byte address 0x4 - core index']
  #allocation1 [shape = 'u32[144,128]{1,0:T(1,128)}', space=vmem, size = 0x12000, scoped, tag = 'internal scratch']
  %s0 = inlined_call_operand.vmem [shape: f32[16,32], index: 0, kind: input, shape index: {}]
  %s1 = inlined_call_operand.vmem [shape: f32[1,32], index: 1, kind: input, shape index: {}]
  %s2 = inlined_call_operand.vmem [shape: f32[1,32], index: 2, kind: input, shape index: {}]
  %s3 = inlined_call_operand.vmem [shape: bf16[32,128], index: 3, kind: input, shape index: {}]
  %s4 = inlined_call_operand.vmem [shape: f32[1,128], index: 4, kind: input, shape index: {}]
  %s5 = inlined_call_operand.vmem [shape: bf16[128,32], index: 5, kind: input, shape index: {}]
  %s6 = inlined_call_operand.vmem [shape: f32[1,32], index: 6, kind: input, shape index: {}]
  %s7 = inlined_call_operand.hbm [shape: f32[16,32], index: 7, kind: output, shape index: {}]
  %s8 = sld [smem:[#allocation0]]
  $region38: #{transformer_block.3} parent=0
    _
  %s10 = ssub.s32 1, %s8
  %s11 = scalar_select 0, %s10, %s8
  $region1: #{transformer_block.3} parent=0
    #allocation2 [shape = 'u8[8192]{0}', space=vmem, size = 0x2000, scoped, tag = 'output window, operand 0, single buffered']
    #allocation3 [shape = 's32[1]{0}', space=sflag, size = 0x4, scoped, tag = 'scoped memory for transformer_block.3']
    %12 = vsyncpa [#allocation3], 0
    // Predicated region
    $region2: #{transformer_block.3} parent=1 // pred_check
      _
    $region3: #{transformer_block.3} parent=1 // pred_check_branch
      %14 = sbr.rel (0) target = $region5
    $region4: #{transformer_block.3} parent=1 // pred_region
      _
    $region5: #{transformer_block.3} parent=1 // pred_fallthru
      _
    // Predicated region
    $region6: #{transformer_block.3} parent=1 // pred_check
      _
    $region7: #{transformer_block.3} parent=1 // pred_check_branch
      %16 = sbr.rel (0) target = $region9
    $region8: #{transformer_block.3} parent=1 // pred_region
      _
    $region9: #{transformer_block.3} parent=1 // pred_fallthru
      _
    // Predicated region
    $region10: #{transformer_block.3} parent=1 // pred_check
      _
    $region11: #{transformer_block.3} parent=1 // pred_check_branch
      %18 = sbr.rel (0) target = $region13
    $region12: #{transformer_block.3} parent=1 // pred_region
      _
    $region13: #{transformer_block.3} parent=1 // pred_fallthru
      _
    // Predicated region
    $region14: #{transformer_block.3} parent=1 // pred_check
      _
    $region15: #{transformer_block.3} parent=1 // pred_check_branch
      %20 = sbr.rel (0) target = $region17
    $region16: #{transformer_block.3} parent=1 // pred_region
      _
    $region17: #{transformer_block.3} parent=1 // pred_fallthru
      _
    // Predicated region
    $region18: #{transformer_block.3} parent=1 // pred_check
      _
    $region19: #{transformer_block.3} parent=1 // pred_check_branch
      %22 = sbr.rel (0) target = $region21
    $region20: #{transformer_block.3} parent=1 // pred_region
      _
    $region21: #{transformer_block.3} parent=1 // pred_fallthru
      _
    // Predicated region
    $region22: #{transformer_block.3} parent=1 // pred_check
      _
    $region23: #{transformer_block.3} parent=1 // pred_check_branch
      %24 = sbr.rel (0) target = $region25
    $region24: #{transformer_block.3} parent=1 // pred_region
      _
    $region25: #{transformer_block.3} parent=1 // pred_fallthru
      _
    // Predicated region
    $region26: #{transformer_block.3} parent=1 // pred_check
      _
    $region27: #{transformer_block.3} parent=1 // pred_check_branch
      %26 = sbr.rel (0) target = $region29
    $region28: #{transformer_block.3} parent=1 // pred_region
      _
    $region29: #{transformer_block.3} parent=1 // pred_fallthru
      _
    %v28 = vld [vmem:[%s0] sm:$0xff]
    %v29 = vld [vmem:[%s0 + $0x8] sm:$0xff]
    %v30 = vld [vmem:[%s1] sm:$0x1]
    %v31 = vld [vmem:[%s2] sm:$0x1]
    %vm32 = vcmask 261120
    %v33 = vsel %vm32, %v28, 0.0
    %34 = vadd.xlane.f32.xlu0 %v33
    %v35 = vpop.xlane.xlu0 %34
    %v36 = vsel %vm32, %v29, 0.0
    %37 = vadd.xlane.f32.xlu0 %v36
    %v38 = vpop.xlane.xlu0 %37
    %v39 = vrcp.pop 32.0
    %v40 = vmul.f32 %v35, %v39
    %v41 = vmul.f32 %v38, %v39
    %v42 = vsub.f32 %v28, %v40
    %v43 = vsub.f32 %v29, %v41
    %v44 = vmul.f32 %v42, %v42
    %v45 = vmul.f32 %v43, %v43
    %v46 = vsel %vm32, %v44, 0.0
    %47 = vadd.xlane.f32.xlu0 %v46
    %v48 = vpop.xlane.xlu0 %47
    %v49 = vsel %vm32, %v45, 0.0
    %50 = vadd.xlane.f32.xlu0 %v49
    %v51 = vpop.xlane.xlu0 %50
    %v52 = vmul.f32 %v48, %v39
    %v53 = vmul.f32 %v51, %v39
    %v54 = vadd.f32 %v52, 1e-05
    %v55 = vadd.f32 %v53, 1e-05
    %v56 = vrsqrt.pop %v54
    %v57 = vrsqrt.pop %v55
    %v58 = vmul.f32 %v42, %v56
    %v59 = vmul.f32 %v43, %v57
    %v61 = vlaneseq
    %v62 = vshrl.u32 %v61, 7
    %v63 = vsub.s32 0, %v62
    %v64 = vrot.slane %v30, %v63
    %v66 = vmul.f32 %v58, %v64
    %v67 = vmul.f32 %v59, %v64
    %v69 = vlaneseq
    %v70 = vshrl.u32 %v69, 7
    %v71 = vsub.s32 0, %v70
    %v72 = vrot.slane %v31, %v71
    %v74 = vadd.f32 %v66, %v72
    %v75 = vadd.f32 %v67, %v72
    %v76 = vpack.c.bf16 %v75, %v74
    %v77 = vld [vmem:[%s3] sm:$0xf]
    %v78 = vld [vmem:[%s3 + $0x4] sm:$0xf]
    %v79 = vld [vmem:[%s3 + $0x8] sm:$0xf]
    %v80 = vld [vmem:[%s3 + $0xc] sm:$0xf]
    %v81 = vld [vmem:[%s4] sm:$0x1]
    %v83 = vlaneseq
    %v84 = vshrl.u32 %v83, 7
    %v85 = vsub.s32 0, %v84
    %v86 = vrot.slane %v81, %v85
    %v92 = vunpack.c.l.b16 %v77
    %v93 = vunpack.c.l.b16 %v78
    %v94 = vunpack.c.l.b16 %v79
    %v95 = vunpack.c.l.b16 %v80
    %v96 = vpack.c.b16 %v93, %v92
    %v97 = vpack.c.b16 %v95, %v94
    %v101 = vsel %vm32, %v76, 0
    %103 = vmatprep.subr.bf16.mxu0 0
    %104 = vmatpush1.bf16.msra.mxu0 0
    %105 = vmatprep.subr.bf16.mxu0 0
    %106 = vmatpush1.bf16.msra.mxu0 0
    %107 = vmatprep.subr.bf16.mxu0 0
    %108 = vmatpush1.bf16.msra.mxu0 0
    %109 = vmatprep.subr.bf16.mxu0 0
    %110 = vmatpush1.bf16.msra.mxu0 0
    %111 = vmatprep.subr.bf16.mxu0 0
    %112 = vmatpush1.bf16.msra.mxu0 0
    %113 = vmatprep.subr.bf16.mxu0 0
    %114 = vmatpush1.bf16.msra.mxu0 0
    %115 = vmatprep.subr.bf16.mxu0 0
    %116 = vmatpush1.bf16.msra.mxu0 %v97
    %117 = vmatprep.subr.bf16.mxu0 0
    %118 = vmatpush1.bf16.msra.mxu0 %v96
    %119 = vmatprep.subr.bf16.mxu0 0
    %120 = vmatpush2.bf16.msra.mxu0 0
    %121 = vmatprep.subr.bf16.mxu0 0
    %122 = vmatpush2.bf16.msra.mxu0 0
    %123 = vmatprep.subr.bf16.mxu0 0
    %124 = vmatpush2.bf16.msra.mxu0 0
    %125 = vmatprep.subr.bf16.mxu0 0
    %126 = vmatpush2.bf16.msra.mxu0 0
    %127 = vmatprep.subr.bf16.mxu0 0
    %128 = vmatpush2.bf16.msra.mxu0 0
    %129 = vmatprep.subr.bf16.mxu0 0
    %130 = vmatpush2.bf16.msra.mxu0 0
    %131 = vmatprep.subr.bf16.mxu0 0
    %132 = vmatpush2.bf16.msra.mxu0 0
    %133 = vmatprep.subr.bf16.mxu0 0
    %134 = vmatpush2.bf16.msra.mxu0 0
    %135 = vmatprep.mubr.bf16.mxu0 0
    %136 = vmatmul.mubr.bf16.gmra.mxu0 %v101
    %v137 = vpop.f32.mrf.mxu0
    %v138 = vadd.f32 %v86, %v137
    %v139 = vpop.f32.mrf.mxu0
    %v140 = vpop.f32.mrf.mxu0
    %v141 = vadd.f32 %v86, %v140
    %v142 = vpop.f32.mrf.mxu0
    %143 = vdwg.mxu0
    %v144 = vmul.f32 %v138, 0.5
    %v145 = vmul.f32 %v141, 0.5
    %v146 = vmul.f32 %v138, 0.70710677
    %v147 = vmul.f32 %v141, 0.70710677
    %v148 = verf.f32.pop %v146
    %v149 = verf.f32.pop %v147
    %v150 = vadd.f32 %v148, 1.0
    %v151 = vadd.f32 %v149, 1.0
    %v152 = vmul.f32 %v144, %v150
    %v153 = vmul.f32 %v145, %v151
    %v154 = vpack.c.bf16 %v153, %v152
    %v155 = vld [vmem:[%s5] sm:$0xf]
    %v156 = vld [vmem:[%s5 + $0x4] sm:$0xf]
    %v157 = vld [vmem:[%s5 + $0x8] sm:$0xf]
    %v158 = vld [vmem:[%s5 + $0xc] sm:$0xf]
    %v159 = vld [vmem:[%s5 + $0x10] sm:$0xf]
    %v160 = vld [vmem:[%s5 + $0x14] sm:$0xf]
    %v161 = vld [vmem:[%s5 + $0x18] sm:$0xf]
    %v162 = vld [vmem:[%s5 + $0x1c] sm:$0xf]
    %v163 = vld [vmem:[%s5 + $0x20] sm:$0xf]
    %v164 = vld [vmem:[%s5 + $0x24] sm:$0xf]
    %v165 = vld [vmem:[%s5 + $0x28] sm:$0xf]
    %v166 = vld [vmem:[%s5 + $0x2c] sm:$0xf]
    %v167 = vld [vmem:[%s5 + $0x30] sm:$0xf]
    %v168 = vld [vmem:[%s5 + $0x34] sm:$0xf]
    %v169 = vld [vmem:[%s5 + $0x38] sm:$0xf]
    %v170 = vld [vmem:[%s5 + $0x3c] sm:$0xf]
    %v171 = vld [vmem:[%s6] sm:$0x1]
    %v173 = vlaneseq
    %v174 = vshrl.u32 %v173, 7
    %v175 = vsub.s32 0, %v174
    %v176 = vrot.slane %v171, %v175
    %v194 = vunpack.c.l.b16 %v155
    %v195 = vunpack.c.l.b16 %v156
    %v196 = vunpack.c.l.b16 %v157
    %v197 = vunpack.c.l.b16 %v158
    %v198 = vunpack.c.l.b16 %v159
    %v199 = vunpack.c.l.b16 %v160
    %v200 = vunpack.c.l.b16 %v161
    %v201 = vunpack.c.l.b16 %v162
    %v202 = vunpack.c.l.b16 %v163
    %v203 = vunpack.c.l.b16 %v164
    %v204 = vunpack.c.l.b16 %v165
    %v205 = vunpack.c.l.b16 %v166
    %v206 = vunpack.c.l.b16 %v167
    %v207 = vunpack.c.l.b16 %v168
    %v208 = vunpack.c.l.b16 %v169
    %v209 = vunpack.c.l.b16 %v170
    %v210 = vpack.c.b16 %v195, %v194
    %v211 = vpack.c.b16 %v197, %v196
    %v212 = vpack.c.b16 %v199, %v198
    %v213 = vpack.c.b16 %v201, %v200
    %v214 = vpack.c.b16 %v203, %v202
    %v215 = vpack.c.b16 %v205, %v204
    %v216 = vpack.c.b16 %v207, %v206
    %v217 = vpack.c.b16 %v209, %v208
    %226 = vmatprep.subr.bf16.mxu0 0
    %227 = vmatpush1.bf16.msra.mxu0 %v217
    %228 = vmatprep.subr.bf16.mxu0 0
    %229 = vmatpush1.bf16.msra.mxu0 %v216
    %230 = vmatprep.subr.bf16.mxu0 0
    %231 = vmatpush1.bf16.msra.mxu0 %v215
    %232 = vmatprep.subr.bf16.mxu0 0
    %233 = vmatpush1.bf16.msra.mxu0 %v214
    %234 = vmatprep.subr.bf16.mxu0 0
    %235 = vmatpush1.bf16.msra.mxu0 %v213
    %236 = vmatprep.subr.bf16.mxu0 0
    %237 = vmatpush1.bf16.msra.mxu0 %v212
    %238 = vmatprep.subr.bf16.mxu0 0
    %239 = vmatpush1.bf16.msra.mxu0 %v211
    %240 = vmatprep.subr.bf16.mxu0 0
    %241 = vmatpush1.bf16.msra.mxu0 %v210
    %242 = vmatprep.subr.bf16.mxu0 0
    %243 = vmatpush2.bf16.msra.mxu0 0
    %244 = vmatprep.subr.bf16.mxu0 0
    %245 = vmatpush2.bf16.msra.mxu0 0
    %246 = vmatprep.subr.bf16.mxu0 0
    %247 = vmatpush2.bf16.msra.mxu0 0
    %248 = vmatprep.subr.bf16.mxu0 0
    %249 = vmatpush2.bf16.msra.mxu0 0
    %250 = vmatprep.subr.bf16.mxu0 0
    %251 = vmatpush2.bf16.msra.mxu0 0
    %252 = vmatprep.subr.bf16.mxu0 0
    %253 = vmatpush2.bf16.msra.mxu0 0
    %254 = vmatprep.subr.bf16.mxu0 0
    %255 = vmatpush2.bf16.msra.mxu0 0
    %256 = vmatprep.subr.bf16.mxu0 0
    %257 = vmatpush2.bf16.msra.mxu0 0
    %258 = vmatprep.mubr.bf16.mxu0 0
    %259 = vmatmul.mubr.bf16.gmra.mxu0 %v154
    %v260 = vpop.f32.mrf.mxu0
    %v261 = vadd.f32 %v176, %v260
    %v262 = vpop.f32.mrf.mxu0
    %v263 = vpop.f32.mrf.mxu0
    %v264 = vadd.f32 %v176, %v263
    %v265 = vpop.f32.mrf.mxu0
    %266 = vdwg.mxu0
    %v267 = vadd.f32 %v28, %v261
    %v268 = vadd.f32 %v29, %v264
    %269 = vst.msk [vmem:[#allocation2] sm:$0xff] %vm32, %v267
    %270 = vst.msk [vmem:[#allocation2 + $0x8] sm:$0xff] %vm32, %v268
    // Predicated region
    $region30: #{transformer_block.3} parent=1 // pred_check
      _
    $region31: #{transformer_block.3} parent=1 // pred_check_branch
      %272 = sbr.rel (0) target = $region33
    $region32: #{transformer_block.3} parent=1 // pred_region
      %s274 = ssub.s32 256, 256
      %275 = vsyncadd [#allocation3], %s274
      %s276 = sshll.u32 [#allocation2], 4
      %s277 = int_to_ptr.vmem [resolvable:$true] %s276
      %282 = dma.vmem_to_hbm [thread:$0]  %s277, 256, %s7, [#allocation3], 128, 128, 8
    $region33: #{transformer_block.3} parent=1 // pred_fallthru
      _
    // Predicated region
    $region34: #{transformer_block.3} parent=1 // pred_check
      _
    $region35: #{transformer_block.3} parent=1 // pred_check_branch
      %284 = sbr.rel (0) target = $region37
    $region36: #{transformer_block.3} parent=1 // pred_region
      %285 = dma.done [#allocation3], 256
    $region37: #{transformer_block.3} parent=1 // pred_fallthru
      _
    %286 = vsyncpa [#allocation3], 1

// kernel: transformer_block.2
$region0: #{transformer_block.2}
  #allocation0 [shape = 'u32[]', space=smem, size = 0x4, offset = 0x4, fixed_abs, tag = 'smem constant byte address 0x4 - core index']
  #allocation1 [shape = 'u32[144,128]{1,0:T(1,128)}', space=vmem, size = 0x12000, scoped, tag = 'internal scratch']
  %s0 = inlined_call_operand.vmem [shape: f32[2,8,32], index: 0, kind: input, shape index: {}]
  %s1 = inlined_call_operand.vmem [shape: f32[1,32], index: 1, kind: input, shape index: {}]
  %s2 = inlined_call_operand.vmem [shape: f32[1,32], index: 2, kind: input, shape index: {}]
  %s3 = inlined_call_operand.vmem [shape: bf16[32,96], index: 3, kind: input, shape index: {}]
  %s4 = inlined_call_operand.vmem [shape: f32[1,96], index: 4, kind: input, shape index: {}]
  %s5 = inlined_call_operand.vmem [shape: bf16[32,32], index: 5, kind: input, shape index: {}]
  %s6 = inlined_call_operand.vmem [shape: f32[1,32], index: 6, kind: input, shape index: {}]
  %s7 = inlined_call_operand.vmem [shape: f32[2,8,32], index: 7, kind: output, shape index: {}]
  %s8 = sld [smem:[#allocation0]]
  $region61: #{transformer_block.2} parent=0
    _
  %s10 = ssub.s32 1, %s8
  %s11 = scalar_select 0, %s10, %s8
  loop: start=0, step=1, limit=4
  $region2: #{transformer_block.2} parent=0 // loop_pre_header
    _
  $region3: #{transformer_block.2} parent=0 // loop_header
    %s13 = sphi 0, %s17
    %p14 = scmp.ge.s32.totalorder %s13, 4
    %s23 = sphi 0, %s25
    %s26 = sphi 0, %s23
    %s27 = sphi 0, %s26
    %s43 = sphi 0, %s27
    %s47 = sphi 0, %s47
    %s49 = sphi 0, %s47
    %s50 = sphi 0, %s49
    %s64 = sphi 0, %s50
    %s68 = sphi 0, %s68
    %s70 = sphi 0, %s68
    %s71 = sphi 0, %s70
    %s85 = sphi 0, %s71
    %s89 = sphi 0, %s89
    %s91 = sphi 0, %s89
    %s92 = sphi 0, %s91
    %s106 = sphi 0, %s92
    %s110 = sphi 0, %s110
    %s112 = sphi 0, %s110
    %s113 = sphi 0, %s112
    %s127 = sphi 0, %s113
    %s131 = sphi 0, %s131
    %s133 = sphi 0, %s131
    %s134 = sphi 0, %s133
    %s148 = sphi 0, %s134
    %s152 = sphi 0, %s152
    %s154 = sphi 0, %s152
    %s155 = sphi 0, %s154
    %s169 = sphi 0, %s155
    %s175 = sphi 0, %s177
    %s178 = sphi 0, %s175
    %s179 = sphi 0, %s178
    %s195 = sphi 0, %s179
  $region4: #{transformer_block.2} parent=0 // loop_header_branch
    %16 = sbr.rel (%p14) target = $region8
  $region5: #{transformer_block.2} parent=0 // loop_body
    %s18 = ssub.s32 %s13, 1
    %s19 = ssub.s32 %s13, 2
    %s20 = sadd.s32 %s13, 1
    %s21 = ssub.s32 %s13, %s20
    %p22 = scmp.eq.s32.totalorder %s21, 0
    %s24 = sadd.s32 %s23, 1
    %s25 = scalar_select %p22, %s23, %s24
    %p28 = pneg %p22
    %p29 = scmp.eq.s32.totalorder %s13, 1
    %p30 = por %p28, %p29
    %p31 = scmp.ne.s32.totalorder %s23, %s26
    %p32 = scmp.eq.s32.totalorder %s13, 0
    %p33 = por %p31, %p32
    %p34 = scmp.ne.s32.totalorder %s23, %s26
    %p35 = scmp.eq.s32.totalorder %s18, 1
    %p36 = por %p34, %p35
    %p37 = scmp.ne.s32.totalorder %s26, %s27
    %p38 = scmp.eq.s32.totalorder %s18, 0
    %p39 = por %p37, %p38
    %p40 = scmp.ne.s32.totalorder %s26, %s27
    %p41 = scmp.eq.s32.totalorder %s19, 1
    %p42 = por %p40, %p41
    %p44 = scmp.ne.s32.totalorder %s27, %s43
    %p45 = scmp.eq.s32.totalorder %s19, 0
    %p46 = por %p44, %p45
    %s48 = sadd.s32 %s47, 1
    %p51 = scmp.eq.s32.totalorder %s13, 1
    %p52 = scmp.ne.s32.totalorder %s47, %s49
    %p53 = scmp.eq.s32.totalorder %s13, 0
    %p54 = por %p52, %p53
    %p55 = scmp.ne.s32.totalorder %s47, %s49
    %p56 = scmp.eq.s32.totalorder %s18, 1
    %p57 = por %p55, %p56
    %p58 = scmp.ne.s32.totalorder %s49, %s50
    %p59 = scmp.eq.s32.totalorder %s18, 0
    %p60 = por %p58, %p59
    %p61 = scmp.ne.s32.totalorder %s49, %s50
    %p62 = scmp.eq.s32.totalorder %s19, 1
    %p63 = por %p61, %p62
    %p65 = scmp.ne.s32.totalorder %s50, %s64
    %p66 = scmp.eq.s32.totalorder %s19, 0
    %p67 = por %p65, %p66
    %s69 = sadd.s32 %s68, 1
    %p72 = scmp.eq.s32.totalorder %s13, 1
    %p73 = scmp.ne.s32.totalorder %s68, %s70
    %p74 = scmp.eq.s32.totalorder %s13, 0
    %p75 = por %p73, %p74
    %p76 = scmp.ne.s32.totalorder %s68, %s70
    %p77 = scmp.eq.s32.totalorder %s18, 1
    %p78 = por %p76, %p77
    %p79 = scmp.ne.s32.totalorder %s70, %s71
    %p80 = scmp.eq.s32.totalorder %s18, 0
    %p81 = por %p79, %p80
    %p82 = scmp.ne.s32.totalorder %s70, %s71
    %p83 = scmp.eq.s32.totalorder %s19, 1
    %p84 = por %p82, %p83
    %p86 = scmp.ne.s32.totalorder %s71, %s85
    %p87 = scmp.eq.s32.totalorder %s19, 0
    %p88 = por %p86, %p87
    %s90 = sadd.s32 %s89, 1
    %p93 = scmp.eq.s32.totalorder %s13, 1
    %p94 = scmp.ne.s32.totalorder %s89, %s91
    %p95 = scmp.eq.s32.totalorder %s13, 0
    %p96 = por %p94, %p95
    %p97 = scmp.ne.s32.totalorder %s89, %s91
    %p98 = scmp.eq.s32.totalorder %s18, 1
    %p99 = por %p97, %p98
    %p100 = scmp.ne.s32.totalorder %s91, %s92
    %p101 = scmp.eq.s32.totalorder %s18, 0
    %p102 = por %p100, %p101
    %p103 = scmp.ne.s32.totalorder %s91, %s92
    %p104 = scmp.eq.s32.totalorder %s19, 1
    %p105 = por %p103, %p104
    %p107 = scmp.ne.s32.totalorder %s92, %s106
    %p108 = scmp.eq.s32.totalorder %s19, 0
    %p109 = por %p107, %p108
    %s111 = sadd.s32 %s110, 1
    %p114 = scmp.eq.s32.totalorder %s13, 1
    %p115 = scmp.ne.s32.totalorder %s110, %s112
    %p116 = scmp.eq.s32.totalorder %s13, 0
    %p117 = por %p115, %p116
    %p118 = scmp.ne.s32.totalorder %s110, %s112
    %p119 = scmp.eq.s32.totalorder %s18, 1
    %p120 = por %p118, %p119
    %p121 = scmp.ne.s32.totalorder %s112, %s113
    %p122 = scmp.eq.s32.totalorder %s18, 0
    %p123 = por %p121, %p122
    %p124 = scmp.ne.s32.totalorder %s112, %s113
    %p125 = scmp.eq.s32.totalorder %s19, 1
    %p126 = por %p124, %p125
    %p128 = scmp.ne.s32.totalorder %s113, %s127
    %p129 = scmp.eq.s32.totalorder %s19, 0
    %p130 = por %p128, %p129
    %s132 = sadd.s32 %s131, 1
    %p135 = scmp.eq.s32.totalorder %s13, 1
    %p136 = scmp.ne.s32.totalorder %s131, %s133
    %p137 = scmp.eq.s32.totalorder %s13, 0
    %p138 = por %p136, %p137
    %p139 = scmp.ne.s32.totalorder %s131, %s133
    %p140 = scmp.eq.s32.totalorder %s18, 1
    %p141 = por %p139, %p140
    %p142 = scmp.ne.s32.totalorder %s133, %s134
    %p143 = scmp.eq.s32.totalorder %s18, 0
    %p144 = por %p142, %p143
    %p145 = scmp.ne.s32.totalorder %s133, %s134
    %p146 = scmp.eq.s32.totalorder %s19, 1
    %p147 = por %p145, %p146
    %p149 = scmp.ne.s32.totalorder %s134, %s148
    %p150 = scmp.eq.s32.totalorder %s19, 0
    %p151 = por %p149, %p150
    %s153 = sadd.s32 %s152, 1
    %p156 = scmp.eq.s32.totalorder %s13, 1
    %p157 = scmp.ne.s32.totalorder %s152, %s154
    %p158 = scmp.eq.s32.totalorder %s13, 0
    %p159 = por %p157, %p158
    %p160 = scmp.ne.s32.totalorder %s152, %s154
    %p161 = scmp.eq.s32.totalorder %s18, 1
    %p162 = por %p160, %p161
    %p163 = scmp.ne.s32.totalorder %s154, %s155
    %p164 = scmp.eq.s32.totalorder %s18, 0
    %p165 = por %p163, %p164
    %p166 = scmp.ne.s32.totalorder %s154, %s155
    %p167 = scmp.eq.s32.totalorder %s19, 1
    %p168 = por %p166, %p167
    %p170 = scmp.ne.s32.totalorder %s155, %s169
    %p171 = scmp.eq.s32.totalorder %s19, 0
    %p172 = por %p170, %p171
    %s173 = ssub.s32 %s13, %s20
    %p174 = scmp.eq.s32.totalorder %s173, 0
    %s176 = sadd.s32 %s175, 1
    %s177 = scalar_select %p174, %s175, %s176
    %p180 = pneg %p174
    %p181 = scmp.eq.s32.totalorder %s13, 1
    %p182 = por %p180, %p181
    %p183 = scmp.ne.s32.totalorder %s175, %s178
    %p184 = scmp.eq.s32.totalorder %s13, 0
    %p185 = por %p183, %p184
    %p186 = scmp.ne.s32.totalorder %s175, %s178
    %p187 = scmp.eq.s32.totalorder %s18, 1
    %p188 = por %p186, %p187
    %p189 = scmp.ne.s32.totalorder %s178, %s179
    %p190 = scmp.eq.s32.totalorder %s18, 0
    %p191 = por %p189, %p190
    %p192 = scmp.ne.s32.totalorder %s178, %s179
    %p193 = scmp.eq.s32.totalorder %s19, 1
    %p194 = por %p192, %p193
    %p196 = scmp.ne.s32.totalorder %s179, %s195
    %p197 = scmp.eq.s32.totalorder %s19, 0
    %p198 = por %p196, %p197
    %p199 = scmp.le.s32.totalorder 1, %s13
    %p200 = scmp.lt.s32.totalorder %s13, 3
    %p201 = pnand %p199, %p200
    %p202 = pneg %p201
    // Predicated region
    $region9: #{transformer_block.2} parent=5 // pred_check
      _
    $region10: #{transformer_block.2} parent=5 // pred_check_branch
      %204 = sbr.rel (%p201) target = $region12
    $region11: #{transformer_block.2} parent=5 // pred_region
      %s205 = ssub.s32 %s13, 1
      // Predicated region
      $region13: #{transformer_block.2} parent=11 // pred_check
        %p206 = pneg %p60
      $region14: #{transformer_block.2} parent=11 // pred_check_branch
        %208 = sbr.rel (%p206) target = $region16
      $region15: #{transformer_block.2} parent=11 // pred_region
        _
      $region16: #{transformer_block.2} parent=11 // pred_fallthru
        _
      // Predicated region
      $region17: #{transformer_block.2} parent=11 // pred_check
        %p209 = pneg %p81
      $region18: #{transformer_block.2} parent=11 // pred_check_branch
        %211 = sbr.rel (%p209) target = $region20
      $region19: #{transformer_block.2} parent=11 // pred_region
        _
      $region20: #{transformer_block.2} parent=11 // pred_fallthru
        _
      // Predicated region
      $region21: #{transformer_block.2} parent=11 // pred_check
        %p212 = pneg %p102
      $region22: #{transformer_block.2} parent=11 // pred_check_branch
        %214 = sbr.rel (%p212) target = $region24
      $region23: #{transformer_block.2} parent=11 // pred_region
        _
      $region24: #{transformer_block.2} parent=11 // pred_fallthru
        _
      // Predicated region
      $region25: #{transformer_block.2} parent=11 // pred_check
        %p215 = pneg %p123
      $region26: #{transformer_block.2} parent=11 // pred_check_branch
        %217 = sbr.rel (%p215) target = $region28
      $region27: #{transformer_block.2} parent=11 // pred_region
        _
      $region28: #{transformer_block.2} parent=11 // pred_fallthru
        _
      // Predicated region
      $region29: #{transformer_block.2} parent=11 // pred_check
        %p218 = pneg %p144
      $region30: #{transformer_block.2} parent=11 // pred_check_branch
        %220 = sbr.rel (%p218) target = $region32
      $region31: #{transformer_block.2} parent=11 // pred_region
        _
      $region32: #{transformer_block.2} parent=11 // pred_fallthru
        _
      // Predicated region
      $region33: #{transformer_block.2} parent=11 // pred_check
        %p221 = pneg %p165
      $region34: #{transformer_block.2} parent=11 // pred_check_branch
        %223 = sbr.rel (%p221) target = $region36
      $region35: #{transformer_block.2} parent=11 // pred_region
        _
      $region36: #{transformer_block.2} parent=11 // pred_fallthru
        _
    $region12: #{transformer_block.2} parent=5 // pred_fallthru
      _
    %p224 = scmp.lt.s32.totalorder %s13, 2
    // Predicated region
    $region37: #{transformer_block.2} parent=5 // pred_check
      %p225 = pneg %p224
    $region38: #{transformer_block.2} parent=5 // pred_check_branch
      %227 = sbr.rel (%p225) target = $region40
    $region39: #{transformer_block.2} parent=5 // pred_region
      // Predicated region
      $region41: #{transformer_block.2} parent=39 // pred_check
        %p228 = pneg %p33
      $region42: #{transformer_block.2} parent=39 // pred_check_branch
        %230 = sbr.rel (%p228) target = $region44
      $region43: #{transformer_block.2} parent=39 // pred_region
        %p231 = scmp.lt.s32.totalorder %s13, 1
        %s232 = scalar_select %p231, %s13, 1
        %s233 = smul.addr %s232, 8
        %s234 = scalar_lea.vmem %s0, %s233
      $region44: #{transformer_block.2} parent=39 // pred_fallthru
        _
    $region40: #{transformer_block.2} parent=5 // pred_fallthru
      _
    %p235 = scmp.le.s32.totalorder 1, %s13
    %p236 = scmp.lt.s32.totalorder %s13, 3
    %p237 = pnand %p235, %p236
    %p238 = pneg %p237
    // Predicated region
    $region45: #{transformer_block.2} parent=5 // pred_check
      _
    $region46: #{transformer_block.2} parent=5 // pred_check_branch
      %240 = sbr.rel (%p237) target = $region48
    $region47: #{transformer_block.2} parent=5 // pred_region
      %s241 = ssub.s32 %s13, 1
      %p242 = scmp.lt.s32.totalorder %s18, 1
      %s243 = scalar_select %p242, %s18, 1
      %s244 = smul.addr %s243, 8
      %s245 = scalar_lea.vmem %s0, %s244
      %p246 = pneg %p39
      %p247 = pneg %p36
      %p248 = pneg %p60
      %p249 = pneg %p57
      %p250 = pneg %p81
      %p251 = pneg %p78
      %p252 = pneg %p102
      %p253 = pneg %p99
      %p254 = pneg %p123
      %p255 = pneg %p120
      %p256 = pneg %p144
      %p257 = pneg %p141
      %p258 = pneg %p165
      %p259 = pneg %p162
      %p260 = pneg %p191
      %p261 = pneg %p188
      %p262 = scmp.lt.s32.totalorder %s18, 1
      %s263 = scalar_select %p262, %s18, 1
      %s264 = smul.addr %s263, 8
      %s265 = scalar_lea.vmem %s7, %s264
      %p266 = scmp.lt.s32.totalorder %s18, 1
      %s267 = scalar_select %p266, %s18, 1
      %s268 = smul.addr %s267, 8
      %s269 = scalar_lea.vmem %s0, %s268
      %p270 = scmp.lt.s32.totalorder %s18, 1
      %s271 = scalar_select %p270, %s18, 1
      %s272 = smul.addr %s271, 8
      %s273 = scalar_lea.vmem %s7, %s272
      %v275 = vld [vmem:[%s269] sm:$0xff]
      %v276 = vld [vmem:[%s1] sm:$0x1]
      %v277 = vld [vmem:[%s2] sm:$0x1]
      %vm278 = vcmask 261120
      %v279 = vsel %vm278, %v275, 0.0
      %280 = vadd.xlane.f32.xlu0 %v279
      %v281 = vpop.xlane.xlu0 %280
      %v282 = vrcp.pop 32.0
      %v283 = vmul.f32 %v281, %v282
      %v284 = vsub.f32 %v275, %v283
      %v285 = vmul.f32 %v284, %v284
      %v286 = vsel %vm278, %v285, 0.0
      %287 = vadd.xlane.f32.xlu0 %v286
      %v288 = vpop.xlane.xlu0 %287
      %v289 = vmul.f32 %v288, %v282
      %v290 = vadd.f32 %v289, 1e-05
      %v291 = vrsqrt.pop %v290
      %v292 = vmul.f32 %v284, %v291
      %v294 = vlaneseq
      %v295 = vshrl.u32 %v294, 7
      %v296 = vsub.s32 0, %v295
      %v297 = vrot.slane %v276, %v296
      %v299 = vmul.f32 %v292, %v297
      %v301 = vlaneseq
      %v302 = vshrl.u32 %v301, 7
      %v303 = vsub.s32 0, %v302
      %v304 = vrot.slane %v277, %v303
      %v306 = vadd.f32 %v299, %v304
      %v307 = vpack.c.bf16 %v306, %v306
      %v308 = vld [vmem:[%s3] sm:$0xf]
      %v309 = vld [vmem:[%s3 + $0x4] sm:$0xf]
      %v310 = vld [vmem:[%s3 + $0x8] sm:$0xf]
      %v311 = vld [vmem:[%s3 + $0xc] sm:$0xf]
      %v312 = vld [vmem:[%s4] sm:$0x1]
      %v314 = vlaneseq
      %v315 = vshrl.u32 %v314, 7
      %v316 = vsub.s32 0, %v315
      %v317 = vrot.slane %v312, %v316
      %v323 = vunpack.c.l.b16 %v308
      %v324 = vunpack.c.l.b16 %v309
      %v325 = vunpack.c.l.b16 %v310
      %v326 = vunpack.c.l.b16 %v311
      %v327 = vpack.c.b16 %v324, %v323
      %v328 = vpack.c.b16 %v326, %v325
      %v332 = vsel %vm278, %v307, 0
      %334 = vmatprep.subr.bf16.mxu0 0
      %335 = vmatpush1.bf16.msra.mxu0 0
      %336 = vmatprep.subr.bf16.mxu0 0
      %337 = vmatpush1.bf16.msra.mxu0 0
      %338 = vmatprep.subr.bf16.mxu0 0
      %339 = vmatpush1.bf16.msra.mxu0 0
      %340 = vmatprep.subr.bf16.mxu0 0
      %341 = vmatpush1.bf16.msra.mxu0 0
      %342 = vmatprep.subr.bf16.mxu0 0
      %343 = vmatpush1.bf16.msra.mxu0 0
      %344 = vmatprep.subr.bf16.mxu0 0
      %345 = vmatpush1.bf16.msra.mxu0 0
      %346 = vmatprep.subr.bf16.mxu0 0
      %347 = vmatpush1.bf16.msra.mxu0 %v328
      %348 = vmatprep.subr.bf16.mxu0 0
      %349 = vmatpush1.bf16.msra.mxu0 %v327
      %350 = vmatprep.subr.bf16.mxu0 0
      %351 = vmatpush2.bf16.msra.mxu0 0
      %352 = vmatprep.subr.bf16.mxu0 0
      %353 = vmatpush2.bf16.msra.mxu0 0
      %354 = vmatprep.subr.bf16.mxu0 0
      %355 = vmatpush2.bf16.msra.mxu0 0
      %356 = vmatprep.subr.bf16.mxu0 0
      %357 = vmatpush2.bf16.msra.mxu0 0
      %358 = vmatprep.subr.bf16.mxu0 0
      %359 = vmatpush2.bf16.msra.mxu0 0
      %360 = vmatprep.subr.bf16.mxu0 0
      %361 = vmatpush2.bf16.msra.mxu0 0
      %362 = vmatprep.subr.bf16.mxu0 0
      %363 = vmatpush2.bf16.msra.mxu0 0
      %364 = vmatprep.subr.bf16.mxu0 0
      %365 = vmatpush2.bf16.msra.mxu0 0
      %366 = vmatprep.mubr.bf16.mxu0 0
      %367 = vmatmul.mubr.bf16.gmra.mxu0 %v332
      %v368 = vpop.f32.mrf.mxu0
      %v369 = vadd.f32 %v317, %v368
      %v370 = vpop.f32.mrf.mxu0
      %v371 = vpop.f32.mrf.mxu0
      %v372 = vpop.f32.mrf.mxu0
      %373 = vdwg.mxu0
      %375 = vrot.lane.b32.xlu0 %v369, 120
      %v376 = vpop.permute.xlu0 %375
      %378 = vrot.lane.b32.xlu0 %v369, 112
      %v379 = vpop.permute.xlu0 %378
      %381 = vrot.lane.b32.xlu0 %v369, 104
      %v382 = vpop.permute.xlu0 %381
      %v384 = vcombine.low %v369, %v379
      %v385 = vcombine.high %v369, %v379
      %v387 = vunpack.c.l.s4 1983009808
      %v388 = vunpack.c.0.s8 %v387
      %v389 = vlaneseq
      %v390 = vshrl.u32 %v389, 7
      %v391 = vsub.s32 %v388, %v390
      %v392 = vrot.slane %v384, %v391
      %v394 = vunpack.c.l.s4 1983009808
      %v395 = vunpack.c.0.s8 %v394
      %v396 = vlaneseq
      %v397 = vshrl.u32 %v396, 7
      %v398 = vsub.s32 %v395, %v397
      %v399 = vrot.slane %v385, %v398
      %v400 = vcombine.low %v376, %v382
      %v401 = vcombine.high %v376, %v382
      %v403 = vunpack.c.l.s4 1983009808
      %v404 = vunpack.c.0.s8 %v403
      %v405 = vlaneseq
      %v406 = vshrl.u32 %v405, 7
      %v407 = vsub.s32 %v404, %v406
      %v408 = vrot.slane %v400, %v407
      %v410 = vunpack.c.l.s4 1983009808
      %v411 = vunpack.c.0.s8 %v410
      %v412 = vlaneseq
      %v413 = vshrl.u32 %v412, 7
      %v414 = vsub.s32 %v411, %v413
      %v415 = vrot.slane %v401, %v414
      %v416 = vcombine.low %v392, %v408
      %v417 = vcombine.high %v392, %v408
      %v419 = vunpack.c.l.s4 1934713408
      %v420 = vunpack.c.0.s8 %v419
      %v421 = vlaneseq
      %v422 = vshrl.u32 %v421, 7
      %v423 = vsub.s32 %v420, %v422
      %v424 = vrot.slane %v416, %v423
      %v426 = vunpack.c.l.s4 1934713408
      %v427 = vunpack.c.0.s8 %v426
      %v428 = vlaneseq
      %v429 = vshrl.u32 %v428, 7
      %v430 = vsub.s32 %v427, %v429
      %v431 = vrot.slane %v417, %v430
      %v432 = vcombine.low %v399, %v415
      %v433 = vcombine.high %v399, %v415
      %v435 = vunpack.c.l.s4 1934713408
      %v436 = vunpack.c.0.s8 %v435
      %v437 = vlaneseq
      %v438 = vshrl.u32 %v437, 7
      %v439 = vsub.s32 %v436, %v438
      %v440 = vrot.slane %v432, %v439
      %v442 = vunpack.c.l.s4 1934713408
      %v443 = vunpack.c.0.s8 %v442
      %v444 = vlaneseq
      %v445 = vshrl.u32 %v444, 7
      %v446 = vsub.s32 %v443, %v445
      %v447 = vrot.slane %v433, %v446
      %v448 = vcombine.high %v424, 0.0
      %v449 = vcombine.high %v431, 0.0
      %v450 = vcombine.high %v440, 0.0
      %v451 = vcombine.high %v447, 0.0
      %v452 = vcombine.low %v424, %v431
      %v454 = vunpack.c.l.s4 1983009808
      %v455 = vunpack.c.0.s8 %v454
      %v456 = vlaneseq
      %v457 = vshrl.u32 %v456, 7
      %v458 = vsub.s32 %v455, %v457
      %v459 = vrot.slane %v452, %v458
      %v460 = vcombine.low %v448, %v449
      %v462 = vunpack.c.l.s4 1983009808
      %v463 = vunpack.c.0.s8 %v462
      %v464 = vlaneseq
      %v465 = vshrl.u32 %v464, 7
      %v466 = vsub.s32 %v463, %v465
      %v467 = vrot.slane %v460, %v466
      %v468 = vcombine.low %v440, %v447
      %v470 = vunpack.c.l.s4 1983009808
      %v471 = vunpack.c.0.s8 %v470
      %v472 = vlaneseq
      %v473 = vshrl.u32 %v472, 7
      %v474 = vsub.s32 %v471, %v473
      %v475 = vrot.slane %v468, %v474
      %v476 = vcombine.low %v450, %v451
      %v478 = vunpack.c.l.s4 1983009808
      %v479 = vunpack.c.0.s8 %v478
      %v480 = vlaneseq
      %v481 = vshrl.u32 %v480, 7
      %v482 = vsub.s32 %v479, %v481
      %v483 = vrot.slane %v476, %v482
      %v484 = vcombine.low %v459, %v467
      %v485 = vcombine.high %v459, %v467
      %v487 = vunpack.c.l.s4 1934713408
      %v488 = vunpack.c.0.s8 %v487
      %v489 = vlaneseq
      %v490 = vshrl.u32 %v489, 7
      %v491 = vsub.s32 %v488, %v490
      %v492 = vrot.slane %v484, %v491
      %v494 = vunpack.c.l.s4 1934713408
      %v495 = vunpack.c.0.s8 %v494
      %v496 = vlaneseq
      %v497 = vshrl.u32 %v496, 7
      %v498 = vsub.s32 %v495, %v497
      %v499 = vrot.slane %v485, %v498
      %v500 = vcombine.low %v475, %v483
      %v501 = vcombine.high %v475, %v483
      %v503 = vunpack.c.l.s4 1934713408
      %v504 = vunpack.c.0.s8 %v503
      %v505 = vlaneseq
      %v506 = vshrl.u32 %v505, 7
      %v507 = vsub.s32 %v504, %v506
      %v508 = vrot.slane %v500, %v507
      %v510 = vunpack.c.l.s4 1934713408
      %v511 = vunpack.c.0.s8 %v510
      %v512 = vlaneseq
      %v513 = vshrl.u32 %v512, 7
      %v514 = vsub.s32 %v511, %v513
      %v515 = vrot.slane %v501, %v514
      %v516 = vcombine.low %v492, %v508
      %v517 = vcombine.high %v492, %v508
      %v518 = vcombine.low %v499, %v515
      %v519 = vcombine.high %v499, %v515
      %v520 = vpack.c.bf16 %v516, %v516
      %v521 = vpack.c.bf16 %v517, %v517
      %v522 = vpack.c.bf16 %v518, %v518
      %v523 = vpack.c.bf16 %v519, %v519
      %524 = vrot.lane.b32.xlu0 %v369, 96
      %v525 = vpop.permute.xlu0 %524
      %526 = vrot.lane.b32.xlu0 %v376, 96
      %v527 = vpop.permute.xlu0 %526
      %528 = vrot.lane.b32.xlu0 %v379, 96
      %v529 = vpop.permute.xlu0 %528
      %530 = vrot.lane.b32.xlu0 %v382, 96
      %v531 = vpop.permute.xlu0 %530
      %v536 = vcombine.low %v525, %v529
      %v537 = vcombine.high %v525, %v529
      %v539 = vunpack.c.l.s4 1983009808
      %v540 = vunpack.c.0.s8 %v539
      %v541 = vlaneseq
      %v542 = vshrl.u32 %v541, 7
      %v543 = vsub.s32 %v540, %v542
      %v544 = vrot.slane %v536, %v543
      %v546 = vunpack.c.l.s4 1983009808
      %v547 = vunpack.c.0.s8 %v546
      %v548 = vlaneseq
      %v549 = vshrl.u32 %v548, 7
      %v550 = vsub.s32 %v547, %v549
      %v551 = vrot.slane %v537, %v550
      %v552 = vcombine.low %v527, %v531
      %v553 = vcombine.high %v527, %v531
      %v555 = vunpack.c.l.s4 1983009808
      %v556 = vunpack.c.0.s8 %v555
      %v557 = vlaneseq
      %v558 = vshrl.u32 %v557, 7
      %v559 = vsub.s32 %v556, %v558
      %v560 = vrot.slane %v552, %v559
      %v562 = vunpack.c.l.s4 1983009808
      %v563 = vunpack.c.0.s8 %v562
      %v564 = vlaneseq
      %v565 = vshrl.u32 %v564, 7
      %v566 = vsub.s32 %v563, %v565
      %v567 = vrot.slane %v553, %v566
      %v568 = vcombine.low %v544, %v560
      %v569 = vcombine.high %v544, %v560
      %v571 = vunpack.c.l.s4 1934713408
      %v572 = vunpack.c.0.s8 %v571
      %v573 = vlaneseq
      %v574 = vshrl.u32 %v573, 7
      %v575 = vsub.s32 %v572, %v574
      %v576 = vrot.slane %v568, %v575
      %v578 = vunpack.c.l.s4 1934713408
      %v579 = vunpack.c.0.s8 %v578
      %v580 = vlaneseq
      %v581 = vshrl.u32 %v580, 7
      %v582 = vsub.s32 %v579, %v581
      %v583 = vrot.slane %v569, %v582
      %v584 = vcombine.low %v551, %v567
      %v585 = vcombine.high %v551, %v567
      %v587 = vunpack.c.l.s4 1934713408
      %v588 = vunpack.c.0.s8 %v587
      %v589 = vlaneseq
      %v590 = vshrl.u32 %v589, 7
      %v591 = vsub.s32 %v588, %v590
      %v592 = vrot.slane %v584, %v591
      %v594 = vunpack.c.l.s4 1934713408
      %v595 = vunpack.c.0.s8 %v594
      %v596 = vlaneseq
      %v597 = vshrl.u32 %v596, 7
      %v598 = vsub.s32 %v595, %v597
      %v599 = vrot.slane %v585, %v598
      %v600 = vcombine.high %v576, 0.0
      %v601 = vcombine.high %v583, 0.0
      %v602 = vcombine.high %v592, 0.0
      %v603 = vcombine.high %v599, 0.0
      %v604 = vcombine.low %v576, %v583
      %v606 = vunpack.c.l.s4 1983009808
      %v607 = vunpack.c.0.s8 %v606
      %v608 = vlaneseq
      %v609 = vshrl.u32 %v608, 7
      %v610 = vsub.s32 %v607, %v609
      %v611 = vrot.slane %v604, %v610
      %v612 = vcombine.low %v600, %v601
      %v614 = vunpack.c.l.s4 1983009808
      %v615 = vunpack.c.0.s8 %v614
      %v616 = vlaneseq
      %v617 = vshrl.u32 %v616, 7
      %v618 = vsub.s32 %v615, %v617
      %v619 = vrot.slane %v612, %v618
      %v620 = vcombine.low %v592, %v599
      %v622 = vunpack.c.l.s4 1983009808
      %v623 = vunpack.c.0.s8 %v622
      %v624 = vlaneseq
      %v625 = vshrl.u32 %v624, 7
      %v626 = vsub.s32 %v623, %v625
      %v627 = vrot.slane %v620, %v626
      %v628 = vcombine.low %v602, %v603
      %v630 = vunpack.c.l.s4 1983009808
      %v631 = vunpack.c.0.s8 %v630
      %v632 = vlaneseq
      %v633 = vshrl.u32 %v632, 7
      %v634 = vsub.s32 %v631, %v633
      %v635 = vrot.slane %v628, %v634
      %v636 = vcombine.low %v611, %v619
      %v637 = vcombine.high %v611, %v619
      %v639 = vunpack.c.l.s4 1934713408
      %v640 = vunpack.c.0.s8 %v639
      %v641 = vlaneseq
      %v642 = vshrl.u32 %v641, 7
      %v643 = vsub.s32 %v640, %v642
      %v644 = vrot.slane %v636, %v643
      %v646 = vunpack.c.l.s4 1934713408
      %v647 = vunpack.c.0.s8 %v646
      %v648 = vlaneseq
      %v649 = vshrl.u32 %v648, 7
      %v650 = vsub.s32 %v647, %v649
      %v651 = vrot.slane %v637, %v650
      %v652 = vcombine.low %v627, %v635
      %v653 = vcombine.high %v627, %v635
      %v655 = vunpack.c.l.s4 1934713408
      %v656 = vunpack.c.0.s8 %v655
      %v657 = vlaneseq
      %v658 = vshrl.u32 %v657, 7
      %v659 = vsub.s32 %v656, %v658
      %v660 = vrot.slane %v652, %v659
      %v662 = vunpack.c.l.s4 1934713408
      %v663 = vunpack.c.0.s8 %v662
      %v664 = vlaneseq
      %v665 = vshrl.u32 %v664, 7
      %v666 = vsub.s32 %v663, %v665
      %v667 = vrot.slane %v653, %v666
      %v668 = vcombine.low %v644, %v660
      %v669 = vcombine.high %v644, %v660
      %v670 = vcombine.low %v651, %v667
      %v671 = vcombine.high %v651, %v667
      %v672 = vpack.c.bf16 %v668, %v668
      %v673 = vpack.c.bf16 %v669, %v669
      %v674 = vpack.c.bf16 %v670, %v670
      %v675 = vpack.c.bf16 %v671, %v671
      %676 = vrot.lane.b32.xlu0 %v369, 64
      %v677 = vpop.permute.xlu0 %676
      %678 = vrot.lane.b32.xlu0 %v376, 64
      %v679 = vpop.permute.xlu0 %678
      %680 = vrot.lane.b32.xlu0 %v379, 64
      %v681 = vpop.permute.xlu0 %680
      %682 = vrot.lane.b32.xlu0 %v382, 64
      %v683 = vpop.permute.xlu0 %682
      %v688 = vcombine.low %v677, %v681
      %v689 = vcombine.high %v677, %v681
      %v691 = vunpack.c.l.s4 1983009808
      %v692 = vunpack.c.0.s8 %v691
      %v693 = vlaneseq
      %v694 = vshrl.u32 %v693, 7
      %v695 = vsub.s32 %v692, %v694
      %v696 = vrot.slane %v688, %v695
      %v698 = vunpack.c.l.s4 1983009808
      %v699 = vunpack.c.0.s8 %v698
      %v700 = vlaneseq
      %v701 = vshrl.u32 %v700, 7
      %v702 = vsub.s32 %v699, %v701
      %v703 = vrot.slane %v689, %v702
      %v704 = vcombine.low %v679, %v683
      %v705 = vcombine.high %v679, %v683
      %v707 = vunpack.c.l.s4 1983009808
      %v708 = vunpack.c.0.s8 %v707
      %v709 = vlaneseq
      %v710 = vshrl.u32 %v709, 7
      %v711 = vsub.s32 %v708, %v710
      %v712 = vrot.slane %v704, %v711
      %v714 = vunpack.c.l.s4 1983009808
      %v715 = vunpack.c.0.s8 %v714
      %v716 = vlaneseq
      %v717 = vshrl.u32 %v716, 7
      %v718 = vsub.s32 %v715, %v717
      %v719 = vrot.slane %v705, %v718
      %v720 = vcombine.low %v696, %v712
      %v721 = vcombine.high %v696, %v712
      %v723 = vunpack.c.l.s4 1934713408
      %v724 = vunpack.c.0.s8 %v723
      %v725 = vlaneseq
      %v726 = vshrl.u32 %v725, 7
      %v727 = vsub.s32 %v724, %v726
      %v728 = vrot.slane %v720, %v727
      %v730 = vunpack.c.l.s4 1934713408
      %v731 = vunpack.c.0.s8 %v730
      %v732 = vlaneseq
      %v733 = vshrl.u32 %v732, 7
      %v734 = vsub.s32 %v731, %v733
      %v735 = vrot.slane %v721, %v734
      %v736 = vcombine.low %v703, %v719
      %v737 = vcombine.high %v703, %v719
      %v739 = vunpack.c.l.s4 1934713408
      %v740 = vunpack.c.0.s8 %v739
      %v741 = vlaneseq
      %v742 = vshrl.u32 %v741, 7
      %v743 = vsub.s32 %v740, %v742
      %v744 = vrot.slane %v736, %v743
      %v746 = vunpack.c.l.s4 1934713408
      %v747 = vunpack.c.0.s8 %v746
      %v748 = vlaneseq
      %v749 = vshrl.u32 %v748, 7
      %v750 = vsub.s32 %v747, %v749
      %v751 = vrot.slane %v737, %v750
      %v752 = vcombine.high %v728, 0.0
      %v753 = vcombine.high %v735, 0.0
      %v754 = vcombine.high %v744, 0.0
      %v755 = vcombine.high %v751, 0.0
      %v756 = vcombine.low %v728, %v735
      %v758 = vunpack.c.l.s4 1983009808
      %v759 = vunpack.c.0.s8 %v758
      %v760 = vlaneseq
      %v761 = vshrl.u32 %v760, 7
      %v762 = vsub.s32 %v759, %v761
      %v763 = vrot.slane %v756, %v762
      %v764 = vcombine.low %v752, %v753
      %v766 = vunpack.c.l.s4 1983009808
      %v767 = vunpack.c.0.s8 %v766
      %v768 = vlaneseq
      %v769 = vshrl.u32 %v768, 7
      %v770 = vsub.s32 %v767, %v769
      %v771 = vrot.slane %v764, %v770
      %v772 = vcombine.low %v744, %v751
      %v774 = vunpack.c.l.s4 1983009808
      %v775 = vunpack.c.0.s8 %v774
      %v776 = vlaneseq
      %v777 = vshrl.u32 %v776, 7
      %v778 = vsub.s32 %v775, %v777
      %v779 = vrot.slane %v772, %v778
      %v780 = vcombine.low %v754, %v755
      %v782 = vunpack.c.l.s4 1983009808
      %v783 = vunpack.c.0.s8 %v782
      %v784 = vlaneseq
      %v785 = vshrl.u32 %v784, 7
      %v786 = vsub.s32 %v783, %v785
      %v787 = vrot.slane %v780, %v786
      %v788 = vcombine.low %v763, %v771
      %v789 = vcombine.high %v763, %v771
      %v791 = vunpack.c.l.s4 1934713408
      %v792 = vunpack.c.0.s8 %v791
      %v793 = vlaneseq
      %v794 = vshrl.u32 %v793, 7
      %v795 = vsub.s32 %v792, %v794
      %v796 = vrot.slane %v788, %v795
      %v798 = vunpack.c.l.s4 1934713408
      %v799 = vunpack.c.0.s8 %v798
      %v800 = vlaneseq
      %v801 = vshrl.u32 %v800, 7
      %v802 = vsub.s32 %v799, %v801
      %v803 = vrot.slane %v789, %v802
      %v804 = vcombine.low %v779, %v787
      %v805 = vcombine.high %v779, %v787
      %v807 = vunpack.c.l.s4 1934713408
      %v808 = vunpack.c.0.s8 %v807
      %v809 = vlaneseq
      %v810 = vshrl.u32 %v809, 7
      %v811 = vsub.s32 %v808, %v810
      %v812 = vrot.slane %v804, %v811
      %v814 = vunpack.c.l.s4 1934713408
      %v815 = vunpack.c.0.s8 %v814
      %v816 = vlaneseq
      %v817 = vshrl.u32 %v816, 7
      %v818 = vsub.s32 %v815, %v817
      %v819 = vrot.slane %v805, %v818
      %v820 = vcombine.low %v796, %v812
      %v821 = vcombine.high %v796, %v812
      %v822 = vcombine.low %v803, %v819
      %v823 = vcombine.high %v803, %v819
      %v824 = vpack.c.bf16 %v820, %v820
      %v825 = vpack.c.bf16 %v821, %v821
      %v826 = vpack.c.bf16 %v822, %v822
      %v827 = vpack.c.bf16 %v823, %v823
      %vm828 = vcmask 64512
      %v830 = vsel %vm828, %v520, 0
      %v833 = vsel %vm828, %v672, 0
      %835 = vmatprep.subr.bf16.mxu0 0
      %836 = vmatpush1.bf16.xpose.msra.mxu0 0
      %837 = vmatprep.subr.bf16.mxu0 0
      %838 = vmatpush1.bf16.xpose.msra.mxu0 0
      %839 = vmatprep.subr.bf16.mxu0 0
      %840 = vmatpush1.bf16.xpose.msra.mxu0 0
      %841 = vmatprep.subr.bf16.mxu0 0
      %842 = vmatpush1.bf16.xpose.msra.mxu0 0
      %843 = vmatprep.subr.bf16.mxu0 0
      %844 = vmatpush1.bf16.xpose.msra.mxu0 0
      %845 = vmatprep.subr.bf16.mxu0 0
      %846 = vmatpush1.bf16.xpose.msra.mxu0 0
      %847 = vmatprep.subr.bf16.mxu0 0
      %848 = vmatpush1.bf16.xpose.msra.mxu0 0
      %849 = vmatprep.subr.bf16.mxu0 0
      %850 = vmatpush1.bf16.xpose.msra.mxu0 %v833
      %851 = vmatprep.subr.bf16.mxu0 0
      %852 = vmatpush2.bf16.xpose.msra.mxu0 0
      %853 = vmatprep.subr.bf16.mxu0 0
      %854 = vmatpush2.bf16.xpose.msra.mxu0 0
      %855 = vmatprep.subr.bf16.mxu0 0
      %856 = vmatpush2.bf16.xpose.msra.mxu0 0
      %857 = vmatprep.subr.bf16.mxu0 0
      %858 = vmatpush2.bf16.xpose.msra.mxu0 0
      %859 = vmatprep.subr.bf16.mxu0 0
      %860 = vmatpush2.bf16.xpose.msra.mxu0 0
      %861 = vmatprep.subr.bf16.mxu0 0
      %862 = vmatpush2.bf16.xpose.msra.mxu0 0
      %863 = vmatprep.subr.bf16.mxu0 0
      %864 = vmatpush2.bf16.xpose.msra.mxu0 0
      %865 = vmatprep.subr.bf16.mxu0 0
      %866 = vmatpush2.bf16.xpose.msra.mxu0 0
      %867 = vmatprep.mubr.bf16.mxu0 0
      %868 = vmatmul.mubr.bf16.gmra.mxu0 %v830
      %v869 = vpop.f32.mrf.mxu0
      %v870 = vadd.f32 0.0, %v869
      %v871 = vpop.f32.mrf.mxu0
      %v872 = vpop.f32.mrf.mxu0
      %v873 = vpop.f32.mrf.mxu0
      %874 = vdwg.mxu0
      %v876 = vsel %vm828, %v521, 0
      %v879 = vsel %vm828, %v673, 0
      %881 = vmatprep.subr.bf16.mxu0 0
      %882 = vmatpush1.bf16.xpose.msra.mxu0 0
      %883 = vmatprep.subr.bf16.mxu0 0
      %884 = vmatpush1.bf16.xpose.msra.mxu0 0
      %885 = vmatprep.subr.bf16.mxu0 0
      %886 = vmatpush1.bf16.xpose.msra.mxu0 0
      %887 = vmatprep.subr.bf16.mxu0 0
      %888 = vmatpush1.bf16.xpose.msra.mxu0 0
      %889 = vmatprep.subr.bf16.mxu0 0
      %890 = vmatpush1.bf16.xpose.msra.mxu0 0
      %891 = vmatprep.subr.bf16.mxu0 0
      %892 = vmatpush1.bf16.xpose.msra.mxu0 0
      %893 = vmatprep.subr.bf16.mxu0 0
      %894 = vmatpush1.bf16.xpose.msra.mxu0 0
      %895 = vmatprep.subr.bf16.mxu0 0
      %896 = vmatpush1.bf16.xpose.msra.mxu0 %v879
      %897 = vmatprep.subr.bf16.mxu0 0
      %898 = vmatpush2.bf16.xpose.msra.mxu0 0
      %899 = vmatprep.subr.bf16.mxu0 0
      %900 = vmatpush2.bf16.xpose.msra.mxu0 0
      %901 = vmatprep.subr.bf16.mxu0 0
      %902 = vmatpush2.bf16.xpose.msra.mxu0 0
      %903 = vmatprep.subr.bf16.mxu0 0
      %904 = vmatpush2.bf16.xpose.msra.mxu0 0
      %905 = vmatprep.subr.bf16.mxu0 0
      %906 = vmatpush2.bf16.xpose.msra.mxu0 0
      %907 = vmatprep.subr.bf16.mxu0 0
      %908 = vmatpush2.bf16.xpose.msra.mxu0 0
      %909 = vmatprep.subr.bf16.mxu0 0
      %910 = vmatpush2.bf16.xpose.msra.mxu0 0
      %911 = vmatprep.subr.bf16.mxu0 0
      %912 = vmatpush2.bf16.xpose.msra.mxu0 0
      %913 = vmatprep.mubr.bf16.mxu0 0
      %914 = vmatmul.mubr.bf16.gmra.mxu0 %v876
      %v915 = vpop.f32.mrf.mxu0
      %v916 = vadd.f32 0.0, %v915
      %v917 = vpop.f32.mrf.mxu0
      %v918 = vpop.f32.mrf.mxu0
      %v919 = vpop.f32.mrf.mxu0
      %920 = vdwg.mxu0
      %v922 = vsel %vm828, %v522, 0
      %v925 = vsel %vm828, %v674, 0
      %927 = vmatprep.subr.bf16.mxu0 0
      %928 = vmatpush1.bf16.xpose.msra.mxu0 0
      %929 = vmatprep.subr.bf16.mxu0 0
      %930 = vmatpush1.bf16.xpose.msra.mxu0 0
      %931 = vmatprep.subr.bf16.mxu0 0
      %932 = vmatpush1.bf16.xpose.msra.mxu0 0
      %933 = vmatprep.subr.bf16.mxu0 0
      %934 = vmatpush1.bf16.xpose.msra.mxu0 0
      %935 = vmatprep.subr.bf16.mxu0 0
      %936 = vmatpush1.bf16.xpose.msra.mxu0 0
      %937 = vmatprep.subr.bf16.mxu0 0
      %938 = vmatpush1.bf16.xpose.msra.mxu0 0
      %939 = vmatprep.subr.bf16.mxu0 0
      %940 = vmatpush1.bf16.xpose.msra.mxu0 0
      %941 = vmatprep.subr.bf16.mxu0 0
      %942 = vmatpush1.bf16.xpose.msra.mxu0 %v925
      %943 = vmatprep.subr.bf16.mxu0 0
      %944 = vmatpush2.bf16.xpose.msra.mxu0 0
      %945 = vmatprep.subr.bf16.mxu0 0
      %946 = vmatpush2.bf16.xpose.msra.mxu0 0
      %947 = vmatprep.subr.bf16.mxu0 0
      %948 = vmatpush2.bf16.xpose.msra.mxu0 0
      %949 = vmatprep.subr.bf16.mxu0 0
      %950 = vmatpush2.bf16.xpose.msra.mxu0 0
      %951 = vmatprep.subr.bf16.mxu0 0
      %952 = vmatpush2.bf16.xpose.msra.mxu0 0
      %953 = vmatprep.subr.bf16.mxu0 0
      %954 = vmatpush2.bf16.xpose.msra.mxu0 0
      %955 = vmatprep.subr.bf16.mxu0 0
      %956 = vmatpush2.bf16.xpose.msra.mxu0 0
      %957 = vmatprep.subr.bf16.mxu0 0
      %958 = vmatpush2.bf16.xpose.msra.mxu0 0
      %959 = vmatprep.mubr.bf16.mxu0 0
      %960 = vmatmul.mubr.bf16.gmra.mxu0 %v922
      %v961 = vpop.f32.mrf.mxu0
      %v962 = vadd.f32 0.0, %v961
      %v963 = vpop.f32.mrf.mxu0
      %v964 = vpop.f32.mrf.mxu0
      %v965 = vpop.f32.mrf.mxu0
      %966 = vdwg.mxu0
      %v968 = vsel %vm828, %v523, 0
      %v971 = vsel %vm828, %v675, 0
      %973 = vmatprep.subr.bf16.mxu0 0
      %974 = vmatpush1.bf16.xpose.msra.mxu0 0
      %975 = vmatprep.subr.bf16.mxu0 0
      %976 = vmatpush1.bf16.xpose.msra.mxu0 0
      %977 = vmatprep.subr.bf16.mxu0 0
      %978 = vmatpush1.bf16.xpose.msra.mxu0 0
      %979 = vmatprep.subr.bf16.mxu0 0
      %980 = vmatpush1.bf16.xpose.msra.mxu0 0
      %981 = vmatprep.subr.bf16.mxu0 0
      %982 = vmatpush1.bf16.xpose.msra.mxu0 0
      %983 = vmatprep.subr.bf16.mxu0 0
      %984 = vmatpush1.bf16.xpose.msra.mxu0 0
      %985 = vmatprep.subr.bf16.mxu0 0
      %986 = vmatpush1.bf16.xpose.msra.mxu0 0
      %987 = vmatprep.subr.bf16.mxu0 0
      %988 = vmatpush1.bf16.xpose.msra.mxu0 %v971
      %989 = vmatprep.subr.bf16.mxu0 0
      %990 = vmatpush2.bf16.xpose.msra.mxu0 0
      %991 = vmatprep.subr.bf16.mxu0 0
      %992 = vmatpush2.bf16.xpose.msra.mxu0 0
      %993 = vmatprep.subr.bf16.mxu0 0
      %994 = vmatpush2.bf16.xpose.msra.mxu0 0
      %995 = vmatprep.subr.bf16.mxu0 0
      %996 = vmatpush2.bf16.xpose.msra.mxu0 0
      %997 = vmatprep.subr.bf16.mxu0 0
      %998 = vmatpush2.bf16.xpose.msra.mxu0 0
      %999 = vmatprep.subr.bf16.mxu0 0
      %1000 = vmatpush2.bf16.xpose.msra.mxu0 0
      %1001 = vmatprep.subr.bf16.mxu0 0
      %1002 = vmatpush2.bf16.xpose.msra.mxu0 0
      %1003 = vmatprep.subr.bf16.mxu0 0
      %1004 = vmatpush2.bf16.xpose.msra.mxu0 0
      %1005 = vmatprep.mubr.bf16.mxu0 0
      %1006 = vmatmul.mubr.bf16.gmra.mxu0 %v968
      %v1007 = vpop.f32.mrf.mxu0
      %v1008 = vadd.f32 0.0, %v1007
      %v1009 = vpop.f32.mrf.mxu0
      %v1010 = vpop.f32.mrf.mxu0
      %v1011 = vpop.f32.mrf.mxu0
      %1012 = vdwg.mxu0
      %v1013 = vsel %vm828, %v870, -inf
      %1014 = vmax.xlane.f32.xlu0 %v1013
      %v1015 = vpop.xlane.xlu0 %1014
      %v1016 = vsel %vm828, %v916, -inf
      %1017 = vmax.xlane.f32.xlu0 %v1016
      %v1018 = vpop.xlane.xlu0 %1017
      %v1019 = vsel %vm828, %v962, -inf
      %1020 = vmax.xlane.f32.xlu0 %v1019
      %v1021 = vpop.xlane.xlu0 %1020
      %v1022 = vsel %vm828, %v1008, -inf
      %1023 = vmax.xlane.f32.xlu0 %v1022
      %v1024 = vpop.xlane.xlu0 %1023
      %v1025 = vsub.f32 %v870, %v1015
      %v1026 = vsub.f32 %v916, %v1018
      %v1027 = vsub.f32 %v962, %v1021
      %v1028 = vsub.f32 %v1008, %v1024
      %v1029 = vmul.f32 %v1025, 1.442695
      %v1030 = vpow.pop %v1029
      %v1031 = vmul.f32 %v1026, 1.442695
      %v1032 = vpow.pop %v1031
      %v1033 = vmul.f32 %v1027, 1.442695
      %v1034 = vpow.pop %v1033
      %v1035 = vmul.f32 %v1028, 1.442695
      %v1036 = vpow.pop %v1035
      %v1037 = vsel %vm828, %v1030, 0.0
      %1038 = vadd.xlane.f32.xlu0 %v1037
      %v1039 = vpop.xlane.xlu0 %1038
      %v1040 = vsel %vm828, %v1032, 0.0
      %1041 = vadd.xlane.f32.xlu0 %v1040
      %v1042 = vpop.xlane.xlu0 %1041
      %v1043 = vsel %vm828, %v1034, 0.0
      %1044 = vadd.xlane.f32.xlu0 %v1043
      %v1045 = vpop.xlane.xlu0 %1044
      %v1046 = vsel %vm828, %v1036, 0.0
      %1047 = vadd.xlane.f32.xlu0 %v1046
      %v1048 = vpop.xlane.xlu0 %1047
      %v1049 = vrcp.pop %v1039
      %v1050 = vmul.f32 %v1030, %v1049
      %v1051 = vrcp.pop %v1042
      %v1052 = vmul.f32 %v1032, %v1051
      %v1053 = vrcp.pop %v1045
      %v1054 = vmul.f32 %v1034, %v1053
      %v1055 = vrcp.pop %v1048
      %v1056 = vmul.f32 %v1036, %v1055
      %v1057 = vpack.c.bf16 %v1050, %v1050
      %v1058 = vpack.c.bf16 %v1052, %v1052
      %v1059 = vpack.c.bf16 %v1054, %v1054
      %v1060 = vpack.c.bf16 %v1056, %v1056
      %v1062 = vsel %vm828, %v1057, 0
      %vm1064 = vcmask 1043456
      %v1066 = vsel %vm1064, %v824, 0
      %1068 = vmatprep.subr.bf16.mxu0 0
      %1069 = vmatpush1.bf16.msra.mxu0 0
      %1070 = vmatprep.subr.bf16.mxu0 0
      %1071 = vmatpush1.bf16.msra.mxu0 0
      %1072 = vmatprep.subr.bf16.mxu0 0
      %1073 = vmatpush1.bf16.msra.mxu0 0
      %1074 = vmatprep.subr.bf16.mxu0 0
      %1075 = vmatpush1.bf16.msra.mxu0 0
      %1076 = vmatprep.subr.bf16.mxu0 0
      %1077 = vmatpush1.bf16.msra.mxu0 0
      %1078 = vmatprep.subr.bf16.mxu0 0
      %1079 = vmatpush1.bf16.msra.mxu0 0
      %1080 = vmatprep.subr.bf16.mxu0 0
      %1081 = vmatpush1.bf16.msra.mxu0 0
      %1082 = vmatprep.subr.bf16.mxu0 0
      %1083 = vmatpush1.bf16.msra.mxu0 %v1066
      %1084 = vmatprep.subr.bf16.mxu0 0
      %1085 = vmatpush2.bf16.msra.mxu0 0
      %1086 = vmatprep.subr.bf16.mxu0 0
      %1087 = vmatpush2.bf16.msra.mxu0 0
      %1088 = vmatprep.subr.bf16.mxu0 0
      %1089 = vmatpush2.bf16.msra.mxu0 0
      %1090 = vmatprep.subr.bf16.mxu0 0
      %1091 = vmatpush2.bf16.msra.mxu0 0
      %1092 = vmatprep.subr.bf16.mxu0 0
      %1093 = vmatpush2.bf16.msra.mxu0 0
      %1094 = vmatprep.subr.bf16.mxu0 0
      %1095 = vmatpush2.bf16.msra.mxu0 0
      %1096 = vmatprep.subr.bf16.mxu0 0
      %1097 = vmatpush2.bf16.msra.mxu0 0
      %1098 = vmatprep.subr.bf16.mxu0 0
      %1099 = vmatpush2.bf16.msra.mxu0 0
      %1100 = vmatprep.mubr.bf16.mxu0 0
      %1101 = vmatmul.mubr.bf16.gmra.mxu0 %v1062
      %v1102 = vpop.f32.mrf.mxu0
      %v1103 = vadd.f32 0.0, %v1102
      %v1104 = vpop.f32.mrf.mxu0
      %v1105 = vpop.f32.mrf.mxu0
      %v1106 = vpop.f32.mrf.mxu0
      %1107 = vdwg.mxu0
      %v1109 = vsel %vm828, %v1058, 0
      %v1112 = vsel %vm1064, %v825, 0
      %1114 = vmatprep.subr.bf16.mxu0 0
      %1115 = vmatpush1.bf16.msra.mxu0 0
      %1116 = vmatprep.subr.bf16.mxu0 0
      %1117 = vmatpush1.bf16.msra.mxu0 0
      %1118 = vmatprep.subr.bf16.mxu0 0
      %1119 = vmatpush1.bf16.msra.mxu0 0
      %1120 = vmatprep.subr.bf16.mxu0 0
      %1121 = vmatpush1.bf16.msra.mxu0 0
      %1122 = vmatprep.subr.bf16.mxu0 0
      %1123 = vmatpush1.bf16.msra.mxu0 0
      %1124 = vmatprep.subr.bf16.mxu0 0
      %1125 = vmatpush1.bf16.msra.mxu0 0
      %1126 = vmatprep.subr.bf16.mxu0 0
      %1127 = vmatpush1.bf16.msra.mxu0 0
      %1128 = vmatprep.subr.bf16.mxu0 0
      %1129 = vmatpush1.bf16.msra.mxu0 %v1112
      %1130 = vmatprep.subr.bf16.mxu0 0
      %1131 = vmatpush2.bf16.msra.mxu0 0
      %1132 = vmatprep.subr.bf16.mxu0 0
      %1133 = vmatpush2.bf16.msra.mxu0 0
      %1134 = vmatprep.subr.bf16.mxu0 0
      %1135 = vmatpush2.bf16.msra.mxu0 0
      %1136 = vmatprep.subr.bf16.mxu0 0
      %1137 = vmatpush2.bf16.msra.mxu0 0
      %1138 = vmatprep.subr.bf16.mxu0 0
      %1139 = vmatpush2.bf16.msra.mxu0 0
      %1140 = vmatprep.subr.bf16.mxu0 0
      %1141 = vmatpush2.bf16.msra.mxu0 0
      %1142 = vmatprep.subr.bf16.mxu0 0
      %1143 = vmatpush2.bf16.msra.mxu0 0
      %1144 = vmatprep.subr.bf16.mxu0 0
      %1145 = vmatpush2.bf16.msra.mxu0 0
      %1146 = vmatprep.mubr.bf16.mxu0 0
      %1147 = vmatmul.mubr.bf16.gmra.mxu0 %v1109
      %v1148 = vpop.f32.mrf.mxu0
      %v1149 = vadd.f32 0.0, %v1148
      %v1150 = vpop.f32.mrf.mxu0
      %v1151 = vpop.f32.mrf.mxu0
      %v1152 = vpop.f32.mrf.mxu0
      %1153 = vdwg.mxu0
      %v1155 = vsel %vm828, %v1059, 0
      %v1158 = vsel %vm1064, %v826, 0
      %1160 = vmatprep.subr.bf16.mxu0 0
      %1161 = vmatpush1.bf16.msra.mxu0 0
      %1162 = vmatprep.subr.bf16.mxu0 0
      %1163 = vmatpush1.bf16.msra.mxu0 0
      %1164 = vmatprep.subr.bf16.mxu0 0
      %1165 = vmatpush1.bf16.msra.mxu0 0
      %1166 = vmatprep.subr.bf16.mxu0 0
      %1167 = vmatpush1.bf16.msra.mxu0 0
      %1168 = vmatprep.subr.bf16.mxu0 0
      %1169 = vmatpush1.bf16.msra.mxu0 0
      %1170 = vmatprep.subr.bf16.mxu0 0
      %1171 = vmatpush1.bf16.msra.mxu0 0
      %1172 = vmatprep.subr.bf16.mxu0 0
      %1173 = vmatpush1.bf16.msra.mxu0 0
      %1174 = vmatprep.subr.bf16.mxu0 0
      %1175 = vmatpush1.bf16.msra.mxu0 %v1158
      %1176 = vmatprep.subr.bf16.mxu0 0
      %1177 = vmatpush2.bf16.msra.mxu0 0
      %1178 = vmatprep.subr.bf16.mxu0 0
      %1179 = vmatpush2.bf16.msra.mxu0 0
      %1180 = vmatprep.subr.bf16.mxu0 0
      %1181 = vmatpush2.bf16.msra.mxu0 0
      %1182 = vmatprep.subr.bf16.mxu0 0
      %1183 = vmatpush2.bf16.msra.mxu0 0
      %1184 = vmatprep.subr.bf16.mxu0 0
      %1185 = vmatpush2.bf16.msra.mxu0 0
      %1186 = vmatprep.subr.bf16.mxu0 0
      %1187 = vmatpush2.bf16.msra.mxu0 0
      %1188 = vmatprep.subr.bf16.mxu0 0
      %1189 = vmatpush2.bf16.msra.mxu0 0
      %1190 = vmatprep.subr.bf16.mxu0 0
      %1191 = vmatpush2.bf16.msra.mxu0 0
      %1192 = vmatprep.mubr.bf16.mxu0 0
      %1193 = vmatmul.mubr.bf16.gmra.mxu0 %v1155
      %v1194 = vpop.f32.mrf.mxu0
      %v1195 = vadd.f32 0.0, %v1194
      %v1196 = vpop.f32.mrf.mxu0
      %v1197 = vpop.f32.mrf.mxu0
      %v1198 = vpop.f32.mrf.mxu0
      %1199 = vdwg.mxu0
      %v1201 = vsel %vm828, %v1060, 0
      %v1204 = vsel %vm1064, %v827, 0
      %1206 = vmatprep.subr.bf16.mxu0 0
      %1207 = vmatpush1.bf16.msra.mxu0 0
      %1208 = vmatprep.subr.bf16.mxu0 0
      %1209 = vmatpush1.bf16.msra.mxu0 0
      %1210 = vmatprep.subr.bf16.mxu0 0
      %1211 = vmatpush1.bf16.msra.mxu0 0
      %1212 = vmatprep.subr.bf16.mxu0 0
      %1213 = vmatpush1.bf16.msra.mxu0 0
      %1214 = vmatprep.subr.bf16.mxu0 0
      %1215 = vmatpush1.bf16.msra.mxu0 0
      %1216 = vmatprep.subr.bf16.mxu0 0
      %1217 = vmatpush1.bf16.msra.mxu0 0
      %1218 = vmatprep.subr.bf16.mxu0 0
      %1219 = vmatpush1.bf16.msra.mxu0 0
      %1220 = vmatprep.subr.bf16.mxu0 0
      %1221 = vmatpush1.bf16.msra.mxu0 %v1204
      %1222 = vmatprep.subr.bf16.mxu0 0
      %1223 = vmatpush2.bf16.msra.mxu0 0
      %1224 = vmatprep.subr.bf16.mxu0 0
      %1225 = vmatpush2.bf16.msra.mxu0 0
      %1226 = vmatprep.subr.bf16.mxu0 0
      %1227 = vmatpush2.bf16.msra.mxu0 0
      %1228 = vmatprep.subr.bf16.mxu0 0
      %1229 = vmatpush2.bf16.msra.mxu0 0
      %1230 = vmatprep.subr.bf16.mxu0 0
      %1231 = vmatpush2.bf16.msra.mxu0 0
      %1232 = vmatprep.subr.bf16.mxu0 0
      %1233 = vmatpush2.bf16.msra.mxu0 0
      %1234 = vmatprep.subr.bf16.mxu0 0
      %1235 = vmatpush2.bf16.msra.mxu0 0
      %1236 = vmatprep.subr.bf16.mxu0 0
      %1237 = vmatpush2.bf16.msra.mxu0 0
      %1238 = vmatprep.mubr.bf16.mxu0 0
      %1239 = vmatmul.mubr.bf16.gmra.mxu0 %v1201
      %v1240 = vpop.f32.mrf.mxu0
      %v1241 = vadd.f32 0.0, %v1240
      %v1242 = vpop.f32.mrf.mxu0
      %v1243 = vpop.f32.mrf.mxu0
      %v1244 = vpop.f32.mrf.mxu0
      %1245 = vdwg.mxu0
      %v1246 = vcombine.low %v1103, %v1195
      %v1247 = vcombine.high %v1103, %v1195
      %v1249 = vunpack.c.l.s4 1983009808
      %v1250 = vunpack.c.0.s8 %v1249
      %v1251 = vlaneseq
      %v1252 = vshrl.u32 %v1251, 7
      %v1253 = vsub.s32 %v1250, %v1252
      %v1254 = vrot.slane %v1246, %v1253
      %v1256 = vunpack.c.l.s4 1983009808
      %v1257 = vunpack.c.0.s8 %v1256
      %v1258 = vlaneseq
      %v1259 = vshrl.u32 %v1258, 7
      %v1260 = vsub.s32 %v1257, %v1259
      %v1261 = vrot.slane %v1247, %v1260
      %v1262 = vcombine.low %v1149, %v1241
      %v1263 = vcombine.high %v1149, %v1241
      %v1265 = vunpack.c.l.s4 1983009808
      %v1266 = vunpack.c.0.s8 %v1265
      %v1267 = vlaneseq
      %v1268 = vshrl.u32 %v1267, 7
      %v1269 = vsub.s32 %v1266, %v1268
      %v1270 = vrot.slane %v1262, %v1269
      %v1272 = vunpack.c.l.s4 1983009808
      %v1273 = vunpack.c.0.s8 %v1272
      %v1274 = vlaneseq
      %v1275 = vshrl.u32 %v1274, 7
      %v1276 = vsub.s32 %v1273, %v1275
      %v1277 = vrot.slane %v1263, %v1276
      %v1278 = vcombine.low %v1254, %v1270
      %v1279 = vcombine.high %v1254, %v1270
      %v1281 = vunpack.c.l.s4 1934713408
      %v1282 = vunpack.c.0.s8 %v1281
      %v1283 = vlaneseq
      %v1284 = vshrl.u32 %v1283, 7
      %v1285 = vsub.s32 %v1282, %v1284
      %v1286 = vrot.slane %v1278, %v1285
      %v1288 = vunpack.c.l.s4 1934713408
      %v1289 = vunpack.c.0.s8 %v1288
      %v1290 = vlaneseq
      %v1291 = vshrl.u32 %v1290, 7
      %v1292 = vsub.s32 %v1289, %v1291
      %v1293 = vrot.slane %v1279, %v1292
      %v1294 = vcombine.low %v1261, %v1277
      %v1295 = vcombine.high %v1261, %v1277
      %v1297 = vunpack.c.l.s4 1934713408
      %v1298 = vunpack.c.0.s8 %v1297
      %v1299 = vlaneseq
      %v1300 = vshrl.u32 %v1299, 7
      %v1301 = vsub.s32 %v1298, %v1300
      %v1302 = vrot.slane %v1294, %v1301
      %v1304 = vunpack.c.l.s4 1934713408
      %v1305 = vunpack.c.0.s8 %v1304
      %v1306 = vlaneseq
      %v1307 = vshrl.u32 %v1306, 7
      %v1308 = vsub.s32 %v1305, %v1307
      %v1309 = vrot.slane %v1295, %v1308
      %v1310 = vcombine.high %v1286, 0.0
      %v1311 = vcombine.high %v1293, 0.0
      %v1312 = vcombine.high %v1302, 0.0
      %v1313 = vcombine.high %v1309, 0.0
      %v1314 = vcombine.low %v1286, %v1293
      %v1316 = vunpack.c.l.s4 1983009808
      %v1317 = vunpack.c.0.s8 %v1316
      %v1318 = vlaneseq
      %v1319 = vshrl.u32 %v1318, 7
      %v1320 = vsub.s32 %v1317, %v1319
      %v1321 = vrot.slane %v1314, %v1320
      %v1322 = vcombine.low %v1310, %v1311
      %v1324 = vunpack.c.l.s4 1983009808
      %v1325 = vunpack.c.0.s8 %v1324
      %v1326 = vlaneseq
      %v1327 = vshrl.u32 %v1326, 7
      %v1328 = vsub.s32 %v1325, %v1327
      %v1329 = vrot.slane %v1322, %v1328
      %v1330 = vcombine.low %v1302, %v1309
      %v1332 = vunpack.c.l.s4 1983009808
      %v1333 = vunpack.c.0.s8 %v1332
      %v1334 = vlaneseq
      %v1335 = vshrl.u32 %v1334, 7
      %v1336 = vsub.s32 %v1333, %v1335
      %v1337 = vrot.slane %v1330, %v1336
      %v1338 = vcombine.low %v1312, %v1313
      %v1340 = vunpack.c.l.s4 1983009808
      %v1341 = vunpack.c.0.s8 %v1340
      %v1342 = vlaneseq
      %v1343 = vshrl.u32 %v1342, 7
      %v1344 = vsub.s32 %v1341, %v1343
      %v1345 = vrot.slane %v1338, %v1344
      %v1346 = vcombine.low %v1321, %v1329
      %v1347 = vcombine.high %v1321, %v1329
      %v1349 = vunpack.c.l.s4 1934713408
      %v1350 = vunpack.c.0.s8 %v1349
      %v1351 = vlaneseq
      %v1352 = vshrl.u32 %v1351, 7
      %v1353 = vsub.s32 %v1350, %v1352
      %v1354 = vrot.slane %v1346, %v1353
      %v1356 = vunpack.c.l.s4 1934713408
      %v1357 = vunpack.c.0.s8 %v1356
      %v1358 = vlaneseq
      %v1359 = vshrl.u32 %v1358, 7
      %v1360 = vsub.s32 %v1357, %v1359
      %v1361 = vrot.slane %v1347, %v1360
      %v1362 = vcombine.low %v1337, %v1345
      %v1363 = vcombine.high %v1337, %v1345
      %v1365 = vunpack.c.l.s4 1934713408
      %v1366 = vunpack.c.0.s8 %v1365
      %v1367 = vlaneseq
      %v1368 = vshrl.u32 %v1367, 7
      %v1369 = vsub.s32 %v1366, %v1368
      %v1370 = vrot.slane %v1362, %v1369
      %v1372 = vunpack.c.l.s4 1934713408
      %v1373 = vunpack.c.0.s8 %v1372
      %v1374 = vlaneseq
      %v1375 = vshrl.u32 %v1374, 7
      %v1376 = vsub.s32 %v1373, %v1375
      %v1377 = vrot.slane %v1363, %v1376
      %v1378 = vcombine.low %v1354, %v1370
      %v1379 = vcombine.high %v1354, %v1370
      %v1380 = vcombine.low %v1361, %v1377
      %v1381 = vcombine.high %v1361, %v1377
      %1383 = vrot.lane.b32.xlu0 %v1379, 8
      %v1384 = vpop.permute.xlu0 %1383
      %1387 = vrot.lane.b32.xlu0 %v1380, 16
      %v1388 = vpop.permute.xlu0 %1387
      %1391 = vrot.lane.b32.xlu0 %v1381, 24
      %v1392 = vpop.permute.xlu0 %1391
      %v1394 = vsel %vm828, %v1378, %v1384
      %vm1395 = vcmask 130048
      %v1396 = vsel %vm1395, %v1394, %v1388
      %vm1397 = vcmask 195584
      %v1398 = vsel %vm1397, %v1396, %v1392
      %v1399 = vpack.c.bf16 %v1398, %v1398
      %v1400 = vld [vmem:[%s5] sm:$0xf]
      %v1401 = vld [vmem:[%s5 + $0x4] sm:$0xf]
      %v1402 = vld [vmem:[%s5 + $0x8] sm:$0xf]
      %v1403 = vld [vmem:[%s5 + $0xc] sm:$0xf]
      %v1404 = vld [vmem:[%s6] sm:$0x1]
      %v1406 = vlaneseq
      %v1407 = vshrl.u32 %v1406, 7
      %v1408 = vsub.s32 0, %v1407
      %v1409 = vrot.slane %v1404, %v1408
      %v1415 = vunpack.c.l.b16 %v1400
      %v1416 = vunpack.c.l.b16 %v1401
      %v1417 = vunpack.c.l.b16 %v1402
      %v1418 = vunpack.c.l.b16 %v1403
      %v1419 = vpack.c.b16 %v1416, %v1415
      %v1420 = vpack.c.b16 %v1418, %v1417
      %v1424 = vsel %vm278, %v1399, 0
      %1426 = vmatprep.subr.bf16.mxu0 0
      %1427 = vmatpush1.bf16.msra.mxu0 0
      %1428 = vmatprep.subr.bf16.mxu0 0
      %1429 = vmatpush1.bf16.msra.mxu0 0
      %1430 = vmatprep.subr.bf16.mxu0 0
      %1431 = vmatpush1.bf16.msra.mxu0 0
      %1432 = vmatprep.subr.bf16.mxu0 0
      %1433 = vmatpush1.bf16.msra.mxu0 0
      %1434 = vmatprep.subr.bf16.mxu0 0
      %1435 = vmatpush1.bf16.msra.mxu0 0
      %1436 = vmatprep.subr.bf16.mxu0 0
      %1437 = vmatpush1.bf16.msra.mxu0 0
      %1438 = vmatprep.subr.bf16.mxu0 0
      %1439 = vmatpush1.bf16.msra.mxu0 %v1420
      %1440 = vmatprep.subr.bf16.mxu0 0
      %1441 = vmatpush1.bf16.msra.mxu0 %v1419
      %1442 = vmatprep.subr.bf16.mxu0 0
      %1443 = vmatpush2.bf16.msra.mxu0 0
      %1444 = vmatprep.subr.bf16.mxu0 0
      %1445 = vmatpush2.bf16.msra.mxu0 0
      %1446 = vmatprep.subr.bf16.mxu0 0
      %1447 = vmatpush2.bf16.msra.mxu0 0
      %1448 = vmatprep.subr.bf16.mxu0 0
      %1449 = vmatpush2.bf16.msra.mxu0 0
      %1450 = vmatprep.subr.bf16.mxu0 0
      %1451 = vmatpush2.bf16.msra.mxu0 0
      %1452 = vmatprep.subr.bf16.mxu0 0
      %1453 = vmatpush2.bf16.msra.mxu0 0
      %1454 = vmatprep.subr.bf16.mxu0 0
      %1455 = vmatpush2.bf16.msra.mxu0 0
      %1456 = vmatprep.subr.bf16.mxu0 0
      %1457 = vmatpush2.bf16.msra.mxu0 0
      %1458 = vmatprep.mubr.bf16.mxu0 0
      %1459 = vmatmul.mubr.bf16.gmra.mxu0 %v1424
      %v1460 = vpop.f32.mrf.mxu0
      %v1461 = vadd.f32 %v1409, %v1460
      %v1462 = vpop.f32.mrf.mxu0
      %v1463 = vpop.f32.mrf.mxu0
      %v1464 = vpop.f32.mrf.mxu0
      %1465 = vdwg.mxu0
      %v1466 = vadd.f32 %v275, %v1461
      %1467 = vst.msk [vmem:[%s273] sm:$0xff] %vm278, %v1466
      %p1468 = scmp.lt.s32.totalorder %s18, 1
      %s1469 = scalar_select %p1468, %s18, 1
      %s1470 = smul.addr %s1469, 8
      %s1471 = scalar_lea.vmem %s7, %s1470
      // Predicated region
      $region49: #{transformer_block.2} parent=47 // pred_check
        %p1472 = pneg %p188
      $region50: #{transformer_block.2} parent=47 // pred_check_branch
        %1474 = sbr.rel (%p1472) target = $region52
      $region51: #{transformer_block.2} parent=47 // pred_region
        _
      $region52: #{transformer_block.2} parent=47 // pred_fallthru
        _
    $region48: #{transformer_block.2} parent=5 // pred_fallthru
      _
    %p1475 = scmp.le.s32.totalorder 2, %s13
    // Predicated region
    $region53: #{transformer_block.2} parent=5 // pred_check
      %p1476 = pneg %p1475
    $region54: #{transformer_block.2} parent=5 // pred_check_branch
      %1478 = sbr.rel (%p1476) target = $region56
    $region55: #{transformer_block.2} parent=5 // pred_region
      %s1479 = ssub.s32 %s13, 2
      // Predicated region
      $region57: #{transformer_block.2} parent=55 // pred_check
        %p1480 = pneg %p194
      $region58: #{transformer_block.2} parent=55 // pred_check_branch
        %1482 = sbr.rel (%p1480) target = $region60
      $region59: #{transformer_block.2} parent=55 // pred_region
        %p1483 = scmp.lt.s32.totalorder %s19, 1
        %s1484 = scalar_select %p1483, %s19, 1
        %s1485 = smul.addr %s1484, 8
        %s1486 = scalar_lea.vmem %s7, %s1485
      $region60: #{transformer_block.2} parent=55 // pred_fallthru
        _
    $region56: #{transformer_block.2} parent=5 // pred_fallthru
      _
  $region6: #{transformer_block.2} parent=0 // loop_footer
    %s17 = sadd.s32 1, %s13
  $region7: #{transformer_block.2} parent=0 // loop_footer_branch
    %12 = sbr.rel target = $region3
  $region8: #{transformer_block.2} parent=0 // loop_exit
    _

// kernel: transformer_block.3
$region0: #{transformer_block.3}
  #allocation0 [shape = 'u32[]', space=smem, size = 0x4, offset = 0x4, fixed_abs, tag = 'smem constant byte address 0x4 - core index']
  #allocation1 [shape = 'u32[144,128]{1,0:T(1,128)}', space=vmem, size = 0x12000, scoped, tag = 'internal scratch']
  %s0 = inlined_call_operand.vmem [shape: f32[16,32], index: 0, kind: input, shape index: {}]
  %s1 = inlined_call_operand.vmem [shape: f32[1,32], index: 1, kind: input, shape index: {}]
  %s2 = inlined_call_operand.vmem [shape: f32[1,32], index: 2, kind: input, shape index: {}]
  %s3 = inlined_call_operand.vmem [shape: bf16[32,128], index: 3, kind: input, shape index: {}]
  %s4 = inlined_call_operand.vmem [shape: f32[1,128], index: 4, kind: input, shape index: {}]
  %s5 = inlined_call_operand.vmem [shape: bf16[128,32], index: 5, kind: input, shape index: {}]
  %s6 = inlined_call_operand.vmem [shape: f32[1,32], index: 6, kind: input, shape index: {}]
  %s7 = inlined_call_operand.hbm [shape: f32[16,32], index: 7, kind: output, shape index: {}]
  %s8 = sld [smem:[#allocation0]]
  $region38: #{transformer_block.3} parent=0
    _
  %s10 = ssub.s32 1, %s8
  %s11 = scalar_select 0, %s10, %s8
  $region1: #{transformer_block.3} parent=0
    #allocation2 [shape = 'u8[8192]{0}', space=vmem, size = 0x2000, scoped, tag = 'output window, operand 0, single buffered']
    #allocation3 [shape = 's32[1]{0}', space=sflag, size = 0x4, scoped, tag = 'scoped memory for transformer_block.3']
    %12 = vsyncpa [#allocation3], 0
    // Predicated region
    $region2: #{transformer_block.3} parent=1 // pred_check
      _
    $region3: #{transformer_block.3} parent=1 // pred_check_branch
      %14 = sbr.rel (0) target = $region5
    $region4: #{transformer_block.3} parent=1 // pred_region
      _
    $region5: #{transformer_block.3} parent=1 // pred_fallthru
      _
    // Predicated region
    $region6: #{transformer_block.3} parent=1 // pred_check
      _
    $region7: #{transformer_block.3} parent=1 // pred_check_branch
      %16 = sbr.rel (0) target = $region9
    $region8: #{transformer_block.3} parent=1 // pred_region
      _
    $region9: #{transformer_block.3} parent=1 // pred_fallthru
      _
    // Predicated region
    $region10: #{transformer_block.3} parent=1 // pred_check
      _
    $region11: #{transformer_block.3} parent=1 // pred_check_branch
      %18 = sbr.rel (0) target = $region13
    $region12: #{transformer_block.3} parent=1 // pred_region
      _
    $region13: #{transformer_block.3} parent=1 // pred_fallthru
      _
    // Predicated region
    $region14: #{transformer_block.3} parent=1 // pred_check
      _
    $region15: #{transformer_block.3} parent=1 // pred_check_branch
      %20 = sbr.rel (0) target = $region17
    $region16: #{transformer_block.3} parent=1 // pred_region
      _
    $region17: #{transformer_block.3} parent=1 // pred_fallthru
      _
    // Predicated region
    $region18: #{transformer_block.3} parent=1 // pred_check
      _
    $region19: #{transformer_block.3} parent=1 // pred_check_branch
      %22 = sbr.rel (0) target = $region21
    $region20: #{transformer_block.3} parent=1 // pred_region
      _
    $region21: #{transformer_block.3} parent=1 // pred_fallthru
      _
    // Predicated region
    $region22: #{transformer_block.3} parent=1 // pred_check
      _
    $region23: #{transformer_block.3} parent=1 // pred_check_branch
      %24 = sbr.rel (0) target = $region25
    $region24: #{transformer_block.3} parent=1 // pred_region
      _
    $region25: #{transformer_block.3} parent=1 // pred_fallthru
      _
    // Predicated region
    $region26: #{transformer_block.3} parent=1 // pred_check
      _
    $region27: #{transformer_block.3} parent=1 // pred_check_branch
      %26 = sbr.rel (0) target = $region29
    $region28: #{transformer_block.3} parent=1 // pred_region
      _
    $region29: #{transformer_block.3} parent=1 // pred_fallthru
      _
    %v28 = vld [vmem:[%s0] sm:$0xff]
    %v29 = vld [vmem:[%s0 + $0x8] sm:$0xff]
    %v30 = vld [vmem:[%s1] sm:$0x1]
    %v31 = vld [vmem:[%s2] sm:$0x1]
    %vm32 = vcmask 261120
    %v33 = vsel %vm32, %v28, 0.0
    %34 = vadd.xlane.f32.xlu0 %v33
    %v35 = vpop.xlane.xlu0 %34
    %v36 = vsel %vm32, %v29, 0.0
    %37 = vadd.xlane.f32.xlu0 %v36
    %v38 = vpop.xlane.xlu0 %37
    %v39 = vrcp.pop 32.0
    %v40 = vmul.f32 %v35, %v39
    %v41 = vmul.f32 %v38, %v39
    %v42 = vsub.f32 %v28, %v40
    %v43 = vsub.f32 %v29, %v41
    %v44 = vmul.f32 %v42, %v42
    %v45 = vmul.f32 %v43, %v43
    %v46 = vsel %vm32, %v44, 0.0
    %47 = vadd.xlane.f32.xlu0 %v46
    %v48 = vpop.xlane.xlu0 %47
    %v49 = vsel %vm32, %v45, 0.0
    %50 = vadd.xlane.f32.xlu0 %v49
    %v51 = vpop.xlane.xlu0 %50
    %v52 = vmul.f32 %v48, %v39
    %v53 = vmul.f32 %v51, %v39
    %v54 = vadd.f32 %v52, 1e-05
    %v55 = vadd.f32 %v53, 1e-05
    %v56 = vrsqrt.pop %v54
    %v57 = vrsqrt.pop %v55
    %v58 = vmul.f32 %v42, %v56
    %v59 = vmul.f32 %v43, %v57
    %v61 = vlaneseq
    %v62 = vshrl.u32 %v61, 7
    %v63 = vsub.s32 0, %v62
    %v64 = vrot.slane %v30, %v63
    %v66 = vmul.f32 %v58, %v64
    %v67 = vmul.f32 %v59, %v64
    %v69 = vlaneseq
    %v70 = vshrl.u32 %v69, 7
    %v71 = vsub.s32 0, %v70
    %v72 = vrot.slane %v31, %v71
    %v74 = vadd.f32 %v66, %v72
    %v75 = vadd.f32 %v67, %v72
    %v76 = vpack.c.bf16 %v75, %v74
    %v77 = vld [vmem:[%s3] sm:$0xf]
    %v78 = vld [vmem:[%s3 + $0x4] sm:$0xf]
    %v79 = vld [vmem:[%s3 + $0x8] sm:$0xf]
    %v80 = vld [vmem:[%s3 + $0xc] sm:$0xf]
    %v81 = vld [vmem:[%s4] sm:$0x1]
    %v83 = vlaneseq
    %v84 = vshrl.u32 %v83, 7
    %v85 = vsub.s32 0, %v84
    %v86 = vrot.slane %v81, %v85
    %v92 = vunpack.c.l.b16 %v77
    %v93 = vunpack.c.l.b16 %v78
    %v94 = vunpack.c.l.b16 %v79
    %v95 = vunpack.c.l.b16 %v80
    %v96 = vpack.c.b16 %v93, %v92
    %v97 = vpack.c.b16 %v95, %v94
    %v101 = vsel %vm32, %v76, 0
    %103 = vmatprep.subr.bf16.mxu0 0
    %104 = vmatpush1.bf16.msra.mxu0 0
    %105 = vmatprep.subr.bf16.mxu0 0
    %106 = vmatpush1.bf16.msra.mxu0 0
    %107 = vmatprep.subr.bf16.mxu0 0
    %108 = vmatpush1.bf16.msra.mxu0 0
    %109 = vmatprep.subr.bf16.mxu0 0
    %110 = vmatpush1.bf16.msra.mxu0 0
    %111 = vmatprep.subr.bf16.mxu0 0
    %112 = vmatpush1.bf16.msra.mxu0 0
    %113 = vmatprep.subr.bf16.mxu0 0
    %114 = vmatpush1.bf16.msra.mxu0 0
    %115 = vmatprep.subr.bf16.mxu0 0
    %116 = vmatpush1.bf16.msra.mxu0 %v97
    %117 = vmatprep.subr.bf16.mxu0 0
    %118 = vmatpush1.bf16.msra.mxu0 %v96
    %119 = vmatprep.subr.bf16.mxu0 0
    %120 = vmatpush2.bf16.msra.mxu0 0
    %121 = vmatprep.subr.bf16.mxu0 0
    %122 = vmatpush2.bf16.msra.mxu0 0
    %123 = vmatprep.subr.bf16.mxu0 0
    %124 = vmatpush2.bf16.msra.mxu0 0
    %125 = vmatprep.subr.bf16.mxu0 0
    %126 = vmatpush2.bf16.msra.mxu0 0
    %127 = vmatprep.subr.bf16.mxu0 0
    %128 = vmatpush2.bf16.msra.mxu0 0
    %129 = vmatprep.subr.bf16.mxu0 0
    %130 = vmatpush2.bf16.msra.mxu0 0
    %131 = vmatprep.subr.bf16.mxu0 0
    %132 = vmatpush2.bf16.msra.mxu0 0
    %133 = vmatprep.subr.bf16.mxu0 0
    %134 = vmatpush2.bf16.msra.mxu0 0
    %135 = vmatprep.mubr.bf16.mxu0 0
    %136 = vmatmul.mubr.bf16.gmra.mxu0 %v101
    %v137 = vpop.f32.mrf.mxu0
    %v138 = vadd.f32 %v86, %v137
    %v139 = vpop.f32.mrf.mxu0
    %v140 = vpop.f32.mrf.mxu0
    %v141 = vadd.f32 %v86, %v140
    %v142 = vpop.f32.mrf.mxu0
    %143 = vdwg.mxu0
    %v144 = vmul.f32 %v138, 0.5
    %v145 = vmul.f32 %v141, 0.5
    %v146 = vmul.f32 %v138, 0.70710677
    %v147 = vmul.f32 %v141, 0.70710677
    %v148 = verf.f32.pop %v146
    %v149 = verf.f32.pop %v147
    %v150 = vadd.f32 %v148, 1.0
    %v151 = vadd.f32 %v149, 1.0
    %v152 = vmul.f32 %v144, %v150
    %v153 = vmul.f32 %v145, %v151
    %v154 = vpack.c.bf16 %v153, %v152
    %v155 = vld [vmem:[%s5] sm:$0xf]
    %v156 = vld [vmem:[%s5 + $0x4] sm:$0xf]
    %v157 = vld [vmem:[%s5 + $0x8] sm:$0xf]
    %v158 = vld [vmem:[%s5 + $0xc] sm:$0xf]
    %v159 = vld [vmem:[%s5 + $0x10] sm:$0xf]
    %v160 = vld [vmem:[%s5 + $0x14] sm:$0xf]
    %v161 = vld [vmem:[%s5 + $0x18] sm:$0xf]
    %v162 = vld [vmem:[%s5 + $0x1c] sm:$0xf]
    %v163 = vld [vmem:[%s5 + $0x20] sm:$0xf]
    %v164 = vld [vmem:[%s5 + $0x24] sm:$0xf]
    %v165 = vld [vmem:[%s5 + $0x28] sm:$0xf]
    %v166 = vld [vmem:[%s5 + $0x2c] sm:$0xf]
    %v167 = vld [vmem:[%s5 + $0x30] sm:$0xf]
    %v168 = vld [vmem:[%s5 + $0x34] sm:$0xf]
    %v169 = vld [vmem:[%s5 + $0x38] sm:$0xf]
    %v170 = vld [vmem:[%s5 + $0x3c] sm:$0xf]
    %v171 = vld [vmem:[%s6] sm:$0x1]
    %v173 = vlaneseq
    %v174 = vshrl.u32 %v173, 7
    %v175 = vsub.s32 0, %v174
    %v176 = vrot.slane %v171, %v175
    %v194 = vunpack.c.l.b16 %v155
    %v195 = vunpack.c.l.b16 %v156
    %v196 = vunpack.c.l.b16 %v157
    %v197 = vunpack.c.l.b16 %v158
    %v198 = vunpack.c.l.b16 %v159
    %v199 = vunpack.c.l.b16 %v160
    %v200 = vunpack.c.l.b16 %v161
    %v201 = vunpack.c.l.b16 %v162
    %v202 = vunpack.c.l.b16 %v163
    %v203 = vunpack.c.l.b16 %v164
    %v204 = vunpack.c.l.b16 %v165
    %v205 = vunpack.c.l.b16 %v166
    %v206 = vunpack.c.l.b16 %v167
    %v207 = vunpack.c.l.b16 %v168
    %v208 = vunpack.c.l.b16 %v169
    %v209 = vunpack.c.l.b16 %v170
    %v210 = vpack.c.b16 %v195, %v194
    %v211 = vpack.c.b16 %v197, %v196
    %v212 = vpack.c.b16 %v199, %v198
    %v213 = vpack.c.b16 %v201, %v200
    %v214 = vpack.c.b16 %v203, %v202
    %v215 = vpack.c.b16 %v205, %v204
    %v216 = vpack.c.b16 %v207, %v206
    %v217 = vpack.c.b16 %v209, %v208
    %226 = vmatprep.subr.bf16.mxu0 0
    %227 = vmatpush1.bf16.msra.mxu0 %v217
    %228 = vmatprep.subr.bf16.mxu0 0
    %229 = vmatpush1.bf16.msra.mxu0 %v216
    %230 = vmatprep.subr.bf16.mxu0 0
    %231 = vmatpush1.bf16.msra.mxu0 %v215
    %232 = vmatprep.subr.bf16.mxu0 0
    %233 = vmatpush1.bf16.msra.mxu0 %v214
    %234 = vmatprep.subr.bf16.mxu0 0
    %235 = vmatpush1.bf16.msra.mxu0 %v213
    %236 = vmatprep.subr.bf16.mxu0 0
    %237 = vmatpush1.bf16.msra.mxu0 %v212
    %238 = vmatprep.subr.bf16.mxu0 0
    %239 = vmatpush1.bf16.msra.mxu0 %v211
    %240 = vmatprep.subr.bf16.mxu0 0
    %241 = vmatpush1.bf16.msra.mxu0 %v210
    %242 = vmatprep.subr.bf16.mxu0 0
    %243 = vmatpush2.bf16.msra.mxu0 0
    %244 = vmatprep.subr.bf16.mxu0 0
    %245 = vmatpush2.bf16.msra.mxu0 0
    %246 = vmatprep.subr.bf16.mxu0 0
    %247 = vmatpush2.bf16.msra.mxu0 0
    %248 = vmatprep.subr.bf16.mxu0 0
    %249 = vmatpush2.bf16.msra.mxu0 0
    %250 = vmatprep.subr.bf16.mxu0 0
    %251 = vmatpush2.bf16.msra.mxu0 0
    %252 = vmatprep.subr.bf16.mxu0 0
    %253 = vmatpush2.bf16.msra.mxu0 0
    %254 = vmatprep.subr.bf16.mxu0 0
    %255 = vmatpush2.bf16.msra.mxu0 0
    %256 = vmatprep.subr.bf16.mxu0 0
    %257 = vmatpush2.bf16.msra.mxu0 0
    %258 = vmatprep.mubr.bf16.mxu0 0
    %259 = vmatmul.mubr.bf16.gmra.mxu0 %v154
    %v260 = vpop.f32.mrf.mxu0
    %v261 = vadd.f32 %v176, %v260
    %v262 = vpop.f32.mrf.mxu0
    %v263 = vpop.f32.mrf.mxu0
    %v264 = vadd.f32 %v176, %v263
    %v265 = vpop.f32.mrf.mxu0
    %266 = vdwg.mxu0
    %v267 = vadd.f32 %v28, %v261
    %v268 = vadd.f32 %v29, %v264
    %269 = vst.msk [vmem:[#allocation2] sm:$0xff] %vm32, %v267
    %270 = vst.msk [vmem:[#allocation2 + $0x8] sm:$0xff] %vm32, %v268
    // Predicated region
    $region30: #{transformer_block.3} parent=1 // pred_check
      _
    $region31: #{transformer_block.3} parent=1 // pred_check_branch
      %272 = sbr.rel (0) target = $region33
    $region32: #{transformer_block.3} parent=1 // pred_region
      %s274 = ssub.s32 256, 256
      %275 = vsyncadd [#allocation3], %s274
      %s276 = sshll.u32 [#allocation2], 4
      %s277 = int_to_ptr.vmem [resolvable:$true] %s276
      %282 = dma.vmem_to_hbm [thread:$0]  %s277, 256, %s7, [#allocation3], 128, 128, 8
    $region33: #{transformer_block.3} parent=1 // pred_fallthru
      _
    // Predicated region
    $region34: #{transformer_block.3} parent=1 // pred_check
      _
    $region35: #{transformer_block.3} parent=1 // pred_check_branch
      %284 = sbr.rel (0) target = $region37
    $region36: #{transformer_block.3} parent=1 // pred_region
      %285 = dma.done [#allocation3], 256
    $region37: #{transformer_block.3} parent=1 // pred_fallthru
      _
    %286 = vsyncpa [#allocation3], 1

// kernel: transformer_block.2
$region0: #{transformer_block.2}
  #allocation0 [shape = 'u32[]', space=smem, size = 0x4, offset = 0x4, fixed_abs, tag = 'smem constant byte address 0x4 - core index']
  #allocation1 [shape = 'u32[144,128]{1,0:T(1,128)}', space=vmem, size = 0x12000, scoped, tag = 'internal scratch']
  %s0 = inlined_call_operand.vmem [shape: f32[2,8,32], index: 0, kind: input, shape index: {}]
  %s1 = inlined_call_operand.vmem [shape: f32[1,32], index: 1, kind: input, shape index: {}]
  %s2 = inlined_call_operand.vmem [shape: f32[1,32], index: 2, kind: input, shape index: {}]
  %s3 = inlined_call_operand.vmem [shape: bf16[32,96], index: 3, kind: input, shape index: {}]
  %s4 = inlined_call_operand.vmem [shape: f32[1,96], index: 4, kind: input, shape index: {}]
  %s5 = inlined_call_operand.vmem [shape: bf16[32,32], index: 5, kind: input, shape index: {}]
  %s6 = inlined_call_operand.vmem [shape: f32[1,32], index: 6, kind: input, shape index: {}]
  %s7 = inlined_call_operand.vmem [shape: f32[2,8,32], index: 7, kind: output, shape index: {}]
  %s8 = sld [smem:[#allocation0]]
  $region61: #{transformer_block.2} parent=0
    _
  %s10 = ssub.s32 1, %s8
  %s11 = scalar_select 0, %s10, %s8
  loop: start=0, step=1, limit=4
  $region2: #{transformer_block.2} parent=0 // loop_pre_header
    _
  $region3: #{transformer_block.2} parent=0 // loop_header
    %s13 = sphi 0, %s17
    %p14 = scmp.ge.s32.totalorder %s13, 4
    %s23 = sphi 0, %s25
    %s26 = sphi 0, %s23
    %s27 = sphi 0, %s26
    %s43 = sphi 0, %s27
    %s47 = sphi 0, %s47
    %s49 = sphi 0, %s47
    %s50 = sphi 0, %s49
    %s64 = sphi 0, %s50
    %s68 = sphi 0, %s68
    %s70 = sphi 0, %s68
    %s71 = sphi 0, %s70
    %s85 = sphi 0, %s71
    %s89 = sphi 0, %s89
    %s91 = sphi 0, %s89
    %s92 = sphi 0, %s91
    %s106 = sphi 0, %s92
    %s110 = sphi 0, %s110
    %s112 = sphi 0, %s110
    %s113 = sphi 0, %s112
    %s127 = sphi 0, %s113
    %s131 = sphi 0, %s131
    %s133 = sphi 0, %s131
    %s134 = sphi 0, %s133
    %s148 = sphi 0, %s134
    %s152 = sphi 0, %s152
    %s154 = sphi 0, %s152
    %s155 = sphi 0, %s154
    %s169 = sphi 0, %s155
    %s175 = sphi 0, %s177
    %s178 = sphi 0, %s175
    %s179 = sphi 0, %s178
    %s195 = sphi 0, %s179
  $region4: #{transformer_block.2} parent=0 // loop_header_branch
    %16 = sbr.rel (%p14) target = $region8
  $region5: #{transformer_block.2} parent=0 // loop_body
    %s18 = ssub.s32 %s13, 1
    %s19 = ssub.s32 %s13, 2
    %s20 = sadd.s32 %s13, 1
    %s21 = ssub.s32 %s13, %s20
    %p22 = scmp.eq.s32.totalorder %s21, 0
    %s24 = sadd.s32 %s23, 1
    %s25 = scalar_select %p22, %s23, %s24
    %p28 = pneg %p22
    %p29 = scmp.eq.s32.totalorder %s13, 1
    %p30 = por %p28, %p29
    %p31 = scmp.ne.s32.totalorder %s23, %s26
    %p32 = scmp.eq.s32.totalorder %s13, 0
    %p33 = por %p31, %p32
    %p34 = scmp.ne.s32.totalorder %s23, %s26
    %p35 = scmp.eq.s32.totalorder %s18, 1
    %p36 = por %p34, %p35
    %p37 = scmp.ne.s32.totalorder %s26, %s27
    %p38 = scmp.eq.s32.totalorder %s18, 0
    %p39 = por %p37, %p38
    %p40 = scmp.ne.s32.totalorder %s26, %s27
    %p41 = scmp.eq.s32.totalorder %s19, 1
    %p42 = por %p40, %p41
    %p44 = scmp.ne.s32.totalorder %s27, %s43
    %p45 = scmp.eq.s32.totalorder %s19, 0
    %p46 = por %p44, %p45
    %s48 = sadd.s32 %s47, 1
    %p51 = scmp.eq.s32.totalorder %s13, 1
    %p52 = scmp.ne.s32.totalorder %s47, %s49
    %p53 = scmp.eq.s32.totalorder %s13, 0
    %p54 = por %p52, %p53
    %p55 = scmp.ne.s32.totalorder %s47, %s49
    %p56 = scmp.eq.s32.totalorder %s18, 1
    %p57 = por %p55, %p56
    %p58 = scmp.ne.s32.totalorder %s49, %s50
    %p59 = scmp.eq.s32.totalorder %s18, 0
    %p60 = por %p58, %p59
    %p61 = scmp.ne.s32.totalorder %s49, %s50
    %p62 = scmp.eq.s32.totalorder %s19, 1
    %p63 = por %p61, %p62
    %p65 = scmp.ne.s32.totalorder %s50, %s64
    %p66 = scmp.eq.s32.totalorder %s19, 0
    %p67 = por %p65, %p66
    %s69 = sadd.s32 %s68, 1
    %p72 = scmp.eq.s32.totalorder %s13, 1
    %p73 = scmp.ne.s32.totalorder %s68, %s70
    %p74 = scmp.eq.s32.totalorder %s13, 0
    %p75 = por %p73, %p74
    %p76 = scmp.ne.s32.totalorder %s68, %s70
    %p77 = scmp.eq.s32.totalorder %s18, 1
    %p78 = por %p76, %p77
    %p79 = scmp.ne.s32.totalorder %s70, %s71
    %p80 = scmp.eq.s32.totalorder %s18, 0
    %p81 = por %p79, %p80
    %p82 = scmp.ne.s32.totalorder %s70, %s71
    %p83 = scmp.eq.s32.totalorder %s19, 1
    %p84 = por %p82, %p83
    %p86 = scmp.ne.s32.totalorder %s71, %s85
    %p87 = scmp.eq.s32.totalorder %s19, 0
    %p88 = por %p86, %p87
    %s90 = sadd.s32 %s89, 1
    %p93 = scmp.eq.s32.totalorder %s13, 1
    %p94 = scmp.ne.s32.totalorder %s89, %s91
    %p95 = scmp.eq.s32.totalorder %s13, 0
    %p96 = por %p94, %p95
    %p97 = scmp.ne.s32.totalorder %s89, %s91
    %p98 = scmp.eq.s32.totalorder %s18, 1
    %p99 = por %p97, %p98
    %p100 = scmp.ne.s32.totalorder %s91, %s92
    %p101 = scmp.eq.s32.totalorder %s18, 0
    %p102 = por %p100, %p101
    %p103 = scmp.ne.s32.totalorder %s91, %s92
    %p104 = scmp.eq.s32.totalorder %s19, 1
    %p105 = por %p103, %p104
    %p107 = scmp.ne.s32.totalorder %s92, %s106
    %p108 = scmp.eq.s32.totalorder %s19, 0
    %p109 = por %p107, %p108
    %s111 = sadd.s32 %s110, 1
    %p114 = scmp.eq.s32.totalorder %s13, 1
    %p115 = scmp.ne.s32.totalorder %s110, %s112
    %p116 = scmp.eq.s32.totalorder %s13, 0
    %p117 = por %p115, %p116
    %p118 = scmp.ne.s32.totalorder %s110, %s112
    %p119 = scmp.eq.s32.totalorder %s18, 1
    %p120 = por %p118, %p119
    %p121 = scmp.ne.s32.totalorder %s112, %s113
    %p122 = scmp.eq.s32.totalorder %s18, 0
    %p123 = por %p121, %p122
    %p124 = scmp.ne.s32.totalorder %s112, %s113
    %p125 = scmp.eq.s32.totalorder %s19, 1
    %p126 = por %p124, %p125
    %p128 = scmp.ne.s32.totalorder %s113, %s127
    %p129 = scmp.eq.s32.totalorder %s19, 0
    %p130 = por %p128, %p129
    %s132 = sadd.s32 %s131, 1
    %p135 = scmp.eq.s32.totalorder %s13, 1
    %p136 = scmp.ne.s32.totalorder %s131, %s133
    %p137 = scmp.eq.s32.totalorder %s13, 0
    %p138 = por %p136, %p137
    %p139 = scmp.ne.s32.totalorder %s131, %s133
    %p140 = scmp.eq.s32.totalorder %s18, 1
    %p141 = por %p139, %p140
    %p142 = scmp.ne.s32.totalorder %s133, %s134
    %p143 = scmp.eq.s32.totalorder %s18, 0
    %p144 = por %p142, %p143
    %p145 = scmp.ne.s32.totalorder %s133, %s134
    %p146 = scmp.eq.s32.totalorder %s19, 1
    %p147 = por %p145, %p146
    %p149 = scmp.ne.s32.totalorder %s134, %s148
    %p150 = scmp.eq.s32.totalorder %s19, 0
    %p151 = por %p149, %p150
    %s153 = sadd.s32 %s152, 1
    %p156 = scmp.eq.s32.totalorder %s13, 1
    %p157 = scmp.ne.s32.totalorder %s152, %s154
    %p158 = scmp.eq.s32.totalorder %s13, 0
    %p159 = por %p157, %p158
    %p160 = scmp.ne.s32.totalorder %s152, %s154
    %p161 = scmp.eq.s32.totalorder %s18, 1
    %p162 = por %p160, %p161
    %p163 = scmp.ne.s32.totalorder %s154, %s155
    %p164 = scmp.eq.s32.totalorder %s18, 0
    %p165 = por %p163, %p164
    %p166 = scmp.ne.s32.totalorder %s154, %s155
    %p167 = scmp.eq.s32.totalorder %s19, 1
    %p168 = por %p166, %p167
    %p170 = scmp.ne.s32.totalorder %s155, %s169
    %p171 = scmp.eq.s32.totalorder %s19, 0
    %p172 = por %p170, %p171
    %s173 = ssub.s32 %s13, %s20
    %p174 = scmp.eq.s32.totalorder %s173, 0
    %s176 = sadd.s32 %s175, 1
    %s177 = scalar_select %p174, %s175, %s176
    %p180 = pneg %p174
    %p181 = scmp.eq.s32.totalorder %s13, 1
    %p182 = por %p180, %p181
    %p183 = scmp.ne.s32.totalorder %s175, %s178
    %p184 = scmp.eq.s32.totalorder %s13, 0
    %p185 = por %p183, %p184
    %p186 = scmp.ne.s32.totalorder %s175, %s178
    %p187 = scmp.eq.s32.totalorder %s18, 1
    %p188 = por %p186, %p187
    %p189 = scmp.ne.s32.totalorder %s178, %s179
    %p190 = scmp.eq.s32.totalorder %s18, 0
    %p191 = por %p189, %p190
    %p192 = scmp.ne.s32.totalorder %s178, %s179
    %p193 = scmp.eq.s32.totalorder %s19, 1
    %p194 = por %p192, %p193
    %p196 = scmp.ne.s32.totalorder %s179, %s195
    %p197 = scmp.eq.s32.totalorder %s19, 0
    %p198 = por %p196, %p197
    %p199 = scmp.le.s32.totalorder 1, %s13
    %p200 = scmp.lt.s32.totalorder %s13, 3
    %p201 = pnand %p199, %p200
    %p202 = pneg %p201
    // Predicated region
    $region9: #{transformer_block.2} parent=5 // pred_check
      _
    $region10: #{transformer_block.2} parent=5 // pred_check_branch
      %204 = sbr.rel (%p201) target = $region12
    $region11: #{transformer_block.2} parent=5 // pred_region
      %s205 = ssub.s32 %s13, 1
      // Predicated region
      $region13: #{transformer_block.2} parent=11 // pred_check
        %p206 = pneg %p60
      $region14: #{transformer_block.2} parent=11 // pred_check_branch
        %208 = sbr.rel (%p206) target = $region16
      $region15: #{transformer_block.2} parent=11 // pred_region
        _
      $region16: #{transformer_block.2} parent=11 // pred_fallthru
        _
      // Predicated region
      $region17: #{transformer_block.2} parent=11 // pred_check
        %p209 = pneg %p81
      $region18: #{transformer_block.2} parent=11 // pred_check_branch
        %211 = sbr.rel (%p209) target = $region20
      $region19: #{transformer_block.2} parent=11 // pred_region
        _
      $region20: #{transformer_block.2} parent=11 // pred_fallthru
        _
      // Predicated region
      $region21: #{transformer_block.2} parent=11 // pred_check
        %p212 = pneg %p102
      $region22: #{transformer_block.2} parent=11 // pred_check_branch
        %214 = sbr.rel (%p212) target = $region24
      $region23: #{transformer_block.2} parent=11 // pred_region
        _
      $region24: #{transformer_block.2} parent=11 // pred_fallthru
        _
      // Predicated region
      $region25: #{transformer_block.2} parent=11 // pred_check
        %p215 = pneg %p123
      $region26: #{transformer_block.2} parent=11 // pred_check_branch
        %217 = sbr.rel (%p215) target = $region28
      $region27: #{transformer_block.2} parent=11 // pred_region
        _
      $region28: #{transformer_block.2} parent=11 // pred_fallthru
        _
      // Predicated region
      $region29: #{transformer_block.2} parent=11 // pred_check
        %p218 = pneg %p144
      $region30: #{transformer_block.2} parent=11 // pred_check_branch
        %220 = sbr.rel (%p218) target = $region32
      $region31: #{transformer_block.2} parent=11 // pred_region
        _
      $region32: #{transformer_block.2} parent=11 // pred_fallthru
        _
      // Predicated region
      $region33: #{transformer_block.2} parent=11 // pred_check
        %p221 = pneg %p165
      $region34: #{transformer_block.2} parent=11 // pred_check_branch
        %223 = sbr.rel (%p221) target = $region36
      $region35: #{transformer_block.2} parent=11 // pred_region
        _
      $region36: #{transformer_block.2} parent=11 // pred_fallthru
        _
    $region12: #{transformer_block.2} parent=5 // pred_fallthru
      _
    %p224 = scmp.lt.s32.totalorder %s13, 2
    // Predicated region
    $region37: #{transformer_block.2} parent=5 // pred_check
      %p225 = pneg %p224
    $region38: #{transformer_block.2} parent=5 // pred_check_branch
      %227 = sbr.rel (%p225) target = $region40
    $region39: #{transformer_block.2} parent=5 // pred_region
      // Predicated region
      $region41: #{transformer_block.2} parent=39 // pred_check
        %p228 = pneg %p33
      $region42: #{transformer_block.2} parent=39 // pred_check_branch
        %230 = sbr.rel (%p228) target = $region44
      $region43: #{transformer_block.2} parent=39 // pred_region
        %p231 = scmp.lt.s32.totalorder %s13, 1
        %s232 = scalar_select %p231, %s13, 1
        %s233 = smul.addr %s232, 8
        %s234 = scalar_lea.vmem %s0, %s233
      $region44: #{transformer_block.2} parent=39 // pred_fallthru
        _
    $region40: #{transformer_block.2} parent=5 // pred_fallthru
      _
    %p235 = scmp.le.s32.totalorder 1, %s13
    %p236 = scmp.lt.s32.totalorder %s13, 3
    %p237 = pnand %p235, %p236
    %p238 = pneg %p237
    // Predicated region
    $region45: #{transformer_block.2} parent=5 // pred_check
      _
    $region46: #{transformer_block.2} parent=5 // pred_check_branch
      %240 = sbr.rel (%p237) target = $region48
    $region47: #{transformer_block.2} parent=5 // pred_region
      %s241 = ssub.s32 %s13, 1
      %p242 = scmp.lt.s32.totalorder %s18, 1
      %s243 = scalar_select %p242, %s18, 1
      %s244 = smul.addr %s243, 8
      %s245 = scalar_lea.vmem %s0, %s244
      %p246 = pneg %p39
      %p247 = pneg %p36
      %p248 = pneg %p60
      %p249 = pneg %p57
      %p250 = pneg %p81
      %p251 = pneg %p78
      %p252 = pneg %p102
      %p253 = pneg %p99
      %p254 = pneg %p123
      %p255 = pneg %p120
      %p256 = pneg %p144
      %p257 = pneg %p141
      %p258 = pneg %p165
      %p259 = pneg %p162
      %p260 = pneg %p191
      %p261 = pneg %p188
      %p262 = scmp.lt.s32.totalorder %s18, 1
      %s263 = scalar_select %p262, %s18, 1
      %s264 = smul.addr %s263, 8
      %s265 = scalar_lea.vmem %s7, %s264
      %p266 = scmp.lt.s32.totalorder %s18, 1
      %s267 = scalar_select %p266, %s18, 1
      %s268 = smul.addr %s267, 8
      %s269 = scalar_lea.vmem %s0, %s268
      %p270 = scmp.lt.s32.totalorder %s18, 1
      %s271 = scalar_select %p270, %s18, 1
      %s272 = smul.addr %s271, 8
      %s273 = scalar_lea.vmem %s7, %s272
      %v275 = vld [vmem:[%s269] sm:$0xff]
      %v276 = vld [vmem:[%s1] sm:$0x1]
      %v277 = vld [vmem:[%s2] sm:$0x1]
      %vm278 = vcmask 261120
      %v279 = vsel %vm278, %v275, 0.0
      %280 = vadd.xlane.f32.xlu0 %v279
      %v281 = vpop.xlane.xlu0 %280
      %v282 = vrcp.pop 32.0
      %v283 = vmul.f32 %v281, %v282
      %v284 = vsub.f32 %v275, %v283
      %v285 = vmul.f32 %v284, %v284
      %v286 = vsel %vm278, %v285, 0.0
      %287 = vadd.xlane.f32.xlu0 %v286
      %v288 = vpop.xlane.xlu0 %287
      %v289 = vmul.f32 %v288, %v282
      %v290 = vadd.f32 %v289, 1e-05
      %v291 = vrsqrt.pop %v290
      %v292 = vmul.f32 %v284, %v291
      %v294 = vlaneseq
      %v295 = vshrl.u32 %v294, 7
      %v296 = vsub.s32 0, %v295
      %v297 = vrot.slane %v276, %v296
      %v299 = vmul.f32 %v292, %v297
      %v301 = vlaneseq
      %v302 = vshrl.u32 %v301, 7
      %v303 = vsub.s32 0, %v302
      %v304 = vrot.slane %v277, %v303
      %v306 = vadd.f32 %v299, %v304
      %v307 = vpack.c.bf16 %v306, %v306
      %v308 = vld [vmem:[%s3] sm:$0xf]
      %v309 = vld [vmem:[%s3 + $0x4] sm:$0xf]
      %v310 = vld [vmem:[%s3 + $0x8] sm:$0xf]
      %v311 = vld [vmem:[%s3 + $0xc] sm:$0xf]
      %v312 = vld [vmem:[%s4] sm:$0x1]
      %v314 = vlaneseq
      %v315 = vshrl.u32 %v314, 7
      %v316 = vsub.s32 0, %v315
      %v317 = vrot.slane %v312, %v316
      %v323 = vunpack.c.l.b16 %v308
      %v324 = vunpack.c.l.b16 %v309
      %v325 = vunpack.c.l.b16 %v310
      %v326 = vunpack.c.l.b16 %v311
      %v327 = vpack.c.b16 %v324, %v323
      %v328 = vpack.c.b16 %v326, %v325
      %v332 = vsel %vm278, %v307, 0
      %334 = vmatprep.subr.bf16.mxu0 0
      %335 = vmatpush1.bf16.msra.mxu0 0
      %336 = vmatprep.subr.bf16.mxu0 0
      %337 = vmatpush1.bf16.msra.mxu0 0
      %338 = vmatprep.subr.bf16.mxu0 0
      %339 = vmatpush1.bf16.msra.mxu0 0
      %340 = vmatprep.subr.bf16.mxu0 0
      %341 = vmatpush1.bf16.msra.mxu0 0
      %342 = vmatprep.subr.bf16.mxu0 0
      %343 = vmatpush1.bf16.msra.mxu0 0
      %344 = vmatprep.subr.bf16.mxu0 0
      %345 = vmatpush1.bf16.msra.mxu0 0
      %346 = vmatprep.subr.bf16.mxu0 0
      %347 = vmatpush1.bf16.msra.mxu0 %v328
      %348 = vmatprep.subr.bf16.mxu0 0
      %349 = vmatpush1.bf16.msra.mxu0 %v327
      %350 = vmatprep.subr.bf16.mxu0 0
      %351 = vmatpush2.bf16.msra.mxu0 0
      %352 = vmatprep.subr.bf16.mxu0 0
      %353 = vmatpush2.bf16.msra.mxu0 0
      %354 = vmatprep.subr.bf16.mxu0 0
      %355 = vmatpush2.bf16.msra.mxu0 0
      %356 = vmatprep.subr.bf16.mxu0 0
      %357 = vmatpush2.bf16.msra.mxu0 0
      %358 = vmatprep.subr.bf16.mxu0 0
      %359 = vmatpush2.bf16.msra.mxu0 0
      %360 = vmatprep.subr.bf16.mxu0 0
      %361 = vmatpush2.bf16.msra.mxu0 0
      %362 = vmatprep.subr.bf16.mxu0 0
      %363 = vmatpush2.bf16.msra.mxu0 0
      %364 = vmatprep.subr.bf16.mxu0 0
      %365 = vmatpush2.bf16.msra.mxu0 0
      %366 = vmatprep.mubr.bf16.mxu0 0
      %367 = vmatmul.mubr.bf16.gmra.mxu0 %v332
      %v368 = vpop.f32.mrf.mxu0
      %v369 = vadd.f32 %v317, %v368
      %v370 = vpop.f32.mrf.mxu0
      %v371 = vpop.f32.mrf.mxu0
      %v372 = vpop.f32.mrf.mxu0
      %373 = vdwg.mxu0
      %375 = vrot.lane.b32.xlu0 %v369, 120
      %v376 = vpop.permute.xlu0 %375
      %378 = vrot.lane.b32.xlu0 %v369, 112
      %v379 = vpop.permute.xlu0 %378
      %381 = vrot.lane.b32.xlu0 %v369, 104
      %v382 = vpop.permute.xlu0 %381
      %v384 = vcombine.low %v369, %v379
      %v385 = vcombine.high %v369, %v379
      %v387 = vunpack.c.l.s4 1983009808
      %v388 = vunpack.c.0.s8 %v387
      %v389 = vlaneseq
      %v390 = vshrl.u32 %v389, 7
      %v391 = vsub.s32 %v388, %v390
      %v392 = vrot.slane %v384, %v391
      %v394 = vunpack.c.l.s4 1983009808
      %v395 = vunpack.c.0.s8 %v394
      %v396 = vlaneseq
      %v397 = vshrl.u32 %v396, 7
      %v398 = vsub.s32 %v395, %v397
      %v399 = vrot.slane %v385, %v398
      %v400 = vcombine.low %v376, %v382
      %v401 = vcombine.high %v376, %v382
      %v403 = vunpack.c.l.s4 1983009808
      %v404 = vunpack.c.0.s8 %v403
      %v405 = vlaneseq
      %v406 = vshrl.u32 %v405, 7
      %v407 = vsub.s32 %v404, %v406
      %v408 = vrot.slane %v400, %v407
      %v410 = vunpack.c.l.s4 1983009808
      %v411 = vunpack.c.0.s8 %v410
      %v412 = vlaneseq
      %v413 = vshrl.u32 %v412, 7
      %v414 = vsub.s32 %v411, %v413
      %v415 = vrot.slane %v401, %v414
      %v416 = vcombine.low %v392, %v408
      %v417 = vcombine.high %v392, %v408
      %v419 = vunpack.c.l.s4 1934713408
      %v420 = vunpack.c.0.s8 %v419
      %v421 = vlaneseq
      %v422 = vshrl.u32 %v421, 7
      %v423 = vsub.s32 %v420, %v422
      %v424 = vrot.slane %v416, %v423
      %v426 = vunpack.c.l.s4 1934713408
      %v427 = vunpack.c.0.s8 %v426
      %v428 = vlaneseq
      %v429 = vshrl.u32 %v428, 7
      %v430 = vsub.s32 %v427, %v429
      %v431 = vrot.slane %v417, %v430
      %v432 = vcombine.low %v399, %v415
      %v433 = vcombine.high %v399, %v415
      %v435 = vunpack.c.l.s4 1934713408
      %v436 = vunpack.c.0.s8 %v435
      %v437 = vlaneseq
      %v438 = vshrl.u32 %v437, 7
      %v439 = vsub.s32 %v436, %v438
      %v440 = vrot.slane %v432, %v439
      %v442 = vunpack.c.l.s4 1934713408
      %v443 = vunpack.c.0.s8 %v442
      %v444 = vlaneseq
      %v445 = vshrl.u32 %v444, 7
      %v446 = vsub.s32 %v443, %v445
      %v447 = vrot.slane %v433, %v446
      %v448 = vcombine.high %v424, 0.0
      %v449 = vcombine.high %v431, 0.0
      %v450 = vcombine.high %v440, 0.0
      %v451 = vcombine.high %v447, 0.0
      %v452 = vcombine.low %v424, %v431
      %v454 = vunpack.c.l.s4 1983009808
      %v455 = vunpack.c.0.s8 %v454
      %v456 = vlaneseq
      %v457 = vshrl.u32 %v456, 7
      %v458 = vsub.s32 %v455, %v457
      %v459 = vrot.slane %v452, %v458
      %v460 = vcombine.low %v448, %v449
      %v462 = vunpack.c.l.s4 1983009808
      %v463 = vunpack.c.0.s8 %v462
      %v464 = vlaneseq
      %v465 = vshrl.u32 %v464, 7
      %v466 = vsub.s32 %v463, %v465
      %v467 = vrot.slane %v460, %v466
      %v468 = vcombine.low %v440, %v447
      %v470 = vunpack.c.l.s4 1983009808
      %v471 = vunpack.c.0.s8 %v470
      %v472 = vlaneseq
      %v473 = vshrl.u32 %v472, 7
      %v474 = vsub.s32 %v471, %v473
      %v475 = vrot.slane %v468, %v474
      %v476 = vcombine.low %v450, %v451
      %v478 = vunpack.c.l.s4 1983009808
      %v479 = vunpack.c.0.s8 %v478
      %v480 = vlaneseq
      %v481 = vshrl.u32 %v480, 7
      %v482 = vsub.s32 %v479, %v481
      %v483 = vrot.slane %v476, %v482
      %v484 = vcombine.low %v459, %v467
      %v485 = vcombine.high %v459, %v467
      %v487 = vunpack.c.l.s4 1934713408
      %v488 = vunpack.c.0.s8 %v487
      %v489 = vlaneseq
      %v490 = vshrl.u32 %v489, 7
      %v491 = vsub.s32 %v488, %v490
      %v492 = vrot.slane %v484, %v491
      %v494 = vunpack.c.l.s4 1934713408
      %v495 = vunpack.c.0.s8 %v494
      %v496 = vlaneseq
      %v497 = vshrl.u32 %v496, 7
      %v498 = vsub.s32 %v495, %v497
      %v499 = vrot.slane %v485, %v498
      %v500 = vcombine.low %v475, %v483
      %v501 = vcombine.high %v475, %v483
      %v503 = vunpack.c.l.s4 1934713408
      %v504 = vunpack.c.0.s8 %v503
      %v505 = vlaneseq
      %v506 = vshrl.u32 %v505, 7
      %v507 = vsub.s32 %v504, %v506
      %v508 = vrot.slane %v500, %v507
      %v510 = vunpack.c.l.s4 1934713408
      %v511 = vunpack.c.0.s8 %v510
      %v512 = vlaneseq
      %v513 = vshrl.u32 %v512, 7
      %v514 = vsub.s32 %v511, %v513
      %v515 = vrot.slane %v501, %v514
      %v516 = vcombine.low %v492, %v508
      %v517 = vcombine.high %v492, %v508
      %v518 = vcombine.low %v499, %v515
      %v519 = vcombine.high %v499, %v515
      %v520 = vpack.c.bf16 %v516, %v516
      %v521 = vpack.c.bf16 %v517, %v517
      %v522 = vpack.c.bf16 %v518, %v518
      %v523 = vpack.c.bf16 %v519, %v519
      %524 = vrot.lane.b32.xlu0 %v369, 96
      %v525 = vpop.permute.xlu0 %524
      %526 = vrot.lane.b32.xlu0 %v376, 96
      %v527 = vpop.permute.xlu0 %526
      %528 = vrot.lane.b32.xlu0 %v379, 96
      %v529 = vpop.permute.xlu0 %528
      %530 = vrot.lane.b32.xlu0 %v382, 96
      %v531 = vpop.permute.xlu0 %530
      %v536 = vcombine.low %v525, %v529
      %v537 = vcombine.high %v525, %v529
      %v539 = vunpack.c.l.s4 1983009808
      %v540 = vunpack.c.0.s8 %v539
      %v541 = vlaneseq
      %v542 = vshrl.u32 %v541, 7
      %v543 = vsub.s32 %v540, %v542
      %v544 = vrot.slane %v536, %v543
      %v546 = vunpack.c.l.s4 1983009808
      %v547 = vunpack.c.0.s8 %v546
      %v548 = vlaneseq
      %v549 = vshrl.u32 %v548, 7
      %v550 = vsub.s32 %v547, %v549
      %v551 = vrot.slane %v537, %v550
      %v552 = vcombine.low %v527, %v531
      %v553 = vcombine.high %v527, %v531
      %v555 = vunpack.c.l.s4 1983009808
      %v556 = vunpack.c.0.s8 %v555
      %v557 = vlaneseq
      %v558 = vshrl.u32 %v557, 7
      %v559 = vsub.s32 %v556, %v558
      %v560 = vrot.slane %v552, %v559
      %v562 = vunpack.c.l.s4 1983009808
      %v563 = vunpack.c.0.s8 %v562
      %v564 = vlaneseq
      %v565 = vshrl.u32 %v564, 7
      %v566 = vsub.s32 %v563, %v565
      %v567 = vrot.slane %v553, %v566
      %v568 = vcombine.low %v544, %v560
      %v569 = vcombine.high %v544, %v560
      %v571 = vunpack.c.l.s4 1934713408
      %v572 = vunpack.c.0.s8 %v571
      %v573 = vlaneseq
      %v574 = vshrl.u32 %v573, 7
      %v575 = vsub.s32 %v572, %v574
      %v576 = vrot.slane %v568, %v575
      %v578 = vunpack.c.l.s4 1934713408
      %v579 = vunpack.c.0.s8 %v578
      %v580 = vlaneseq
      %v581 = vshrl.u32 %v580, 7
      %v582 = vsub.s32 %v579, %v581
      %v583 = vrot.slane %v569, %v582
      %v584 = vcombine.low %v551, %v567
      %v585 = vcombine.high %v551, %v567
      %v587 = vunpack.c.l.s4 1934713408
      %v588 = vunpack.c.0.s8 %v587
      %v589 = vlaneseq
      %v590 = vshrl.u32 %v589, 7
      %v591 = vsub.s32 %v588, %v590
      %v592 = vrot.slane %v584, %v591
      %v594 = vunpack.c.l.s4 1934713408
      %v595 = vunpack.c.0.s8 %v594
      %v596 = vlaneseq
      %v597 = vshrl.u32 %v596, 7
      %v598 = vsub.s32 %v595, %v597
      %v599 = vrot.slane %v585, %v598
      %v600 = vcombine.high %v576, 0.0
      %v601 = vcombine.high %v583, 0.0
      %v602 = vcombine.high %v592, 0.0
      %v603 = vcombine.high %v599, 0.0
      %v604 = vcombine.low %v576, %v583
      %v606 = vunpack.c.l.s4 1983009808
      %v607 = vunpack.c.0.s8 %v606
      %v608 = vlaneseq
      %v609 = vshrl.u32 %v608, 7
      %v610 = vsub.s32 %v607, %v609
      %v611 = vrot.slane %v604, %v610
      %v612 = vcombine.low %v600, %v601
      %v614 = vunpack.c.l.s4 1983009808
      %v615 = vunpack.c.0.s8 %v614
      %v616 = vlaneseq
      %v617 = vshrl.u32 %v616, 7
      %v618 = vsub.s32 %v615, %v617
      %v619 = vrot.slane %v612, %v618
      %v620 = vcombine.low %v592, %v599
      %v622 = vunpack.c.l.s4 1983009808
      %v623 = vunpack.c.0.s8 %v622
      %v624 = vlaneseq
      %v625 = vshrl.u32 %v624, 7
      %v626 = vsub.s32 %v623, %v625
      %v627 = vrot.slane %v620, %v626
      %v628 = vcombine.low %v602, %v603
      %v630 = vunpack.c.l.s4 1983009808
      %v631 = vunpack.c.0.s8 %v630
      %v632 = vlaneseq
      %v633 = vshrl.u32 %v632, 7
      %v634 = vsub.s32 %v631, %v633
      %v635 = vrot.slane %v628, %v634
      %v636 = vcombine.low %v611, %v619
      %v637 = vcombine.high %v611, %v619
      %v639 = vunpack.c.l.s4 1934713408
      %v640 = vunpack.c.0.s8 %v639
      %v641 = vlaneseq
      %v642 = vshrl.u32 %v641, 7
      %v643 = vsub.s32 %v640, %v642
      %v644 = vrot.slane %v636, %v643
      %v646 = vunpack.c.l.s4 1934713408
      %v647 = vunpack.c.0.s8 %v646
      %v648 = vlaneseq
      %v649 = vshrl.u32 %v648, 7
      %v650 = vsub.s32 %v647, %v649
      %v651 = vrot.slane %v637, %v650
      %v652 = vcombine.low %v627, %v635
      %v653 = vcombine.high %v627, %v635
      %v655 = vunpack.c.l.s4 1934713408
      %v656 = vunpack.c.0.s8 %v655
      %v657 = vlaneseq
      %v658 = vshrl.u32 %v657, 7
      %v659 = vsub.s32 %v656, %v658
      %v660 = vrot.slane %v652, %v659
      %v662 = vunpack.c.l.s4 1934713408
      %v663 = vunpack.c.0.s8 %v662
      %v664 = vlaneseq
      %v665 = vshrl.u32 %v664, 7
      %v666 = vsub.s32 %v663, %v665
      %v667 = vrot.slane %v653, %v666
      %v668 = vcombine.low %v644, %v660
      %v669 = vcombine.high %v644, %v660
      %v670 = vcombine.low %v651, %v667
      %v671 = vcombine.high %v651, %v667
      %v672 = vpack.c.bf16 %v668, %v668
      %v673 = vpack.c.bf16 %v669, %v669
      %v674 = vpack.c.bf16 %v670, %v670
      %v675 = vpack.c.bf16 %v671, %v671
      %676 = vrot.lane.b32.xlu0 %v369, 64
      %v677 = vpop.permute.xlu0 %676
      %678 = vrot.lane.b32.xlu0 %v376, 64
      %v679 = vpop.permute.xlu0 %678
      %680 = vrot.lane.b32.xlu0 %v379, 64
      %v681 = vpop.permute.xlu0 %680
      %682 = vrot.lane.b32.xlu0 %v382, 64
      %v683 = vpop.permute.xlu0 %682
      %v688 = vcombine.low %v677, %v681
      %v689 = vcombine.high %v677, %v681
      %v691 = vunpack.c.l.s4 1983009808
      %v692 = vunpack.c.0.s8 %v691
      %v693 = vlaneseq
      %v694 = vshrl.u32 %v693, 7
      %v695 = vsub.s32 %v692, %v694
      %v696 = vrot.slane %v688, %v695
      %v698 = vunpack.c.l.s4 1983009808
      %v699 = vunpack.c.0.s8 %v698
      %v700 = vlaneseq
      %v701 = vshrl.u32 %v700, 7
      %v702 = vsub.s32 %v699, %v701
      %v703 = vrot.slane %v689, %v702
      %v704 = vcombine.low %v679, %v683
      %v705 = vcombine.high %v679, %v683
      %v707 = vunpack.c.l.s4 1983009808
      %v708 = vunpack.c.0.s8 %v707
      %v709 = vlaneseq
      %v710 = vshrl.u32 %v709, 7
      %v711 = vsub.s32 %v708, %v710
      %v712 = vrot.slane %v704, %v711
      %v714 = vunpack.c.l.s4 1983009808
      %v715 = vunpack.c.0.s8 %v714
      %v716 = vlaneseq
      %v717 = vshrl.u32 %v716, 7
      %v718 = vsub.s32 %v715, %v717
      %v719 = vrot.slane %v705, %v718
      %v720 = vcombine.low %v696, %v712
      %v721 = vcombine.high %v696, %v712
      %v723 = vunpack.c.l.s4 1934713408
      %v724 = vunpack.c.0.s8 %v723
      %v725 = vlaneseq
      %v726 = vshrl.u32 %v725, 7
      %v727 = vsub.s32 %v724, %v726
      %v728 = vrot.slane %v720, %v727
      %v730 = vunpack.c.l.s4 1934713408
      %v731 = vunpack.c.0.s8 %v730
      %v732 = vlaneseq
      %v733 = vshrl.u32 %v732, 7
      %v734 = vsub.s32 %v731, %v733
      %v735 = vrot.slane %v721, %v734
      %v736 = vcombine.low %v703, %v719
      %v737 = vcombine.high %v703, %v719
      %v739 = vunpack.c.l.s4 1934713408
      %v740 = vunpack.c.0.s8 %v739
      %v741 = vlaneseq
      %v742 = vshrl.u32 %v741, 7
      %v743 = vsub.s32 %v740, %v742
      %v744 = vrot.slane %v736, %v743
      %v746 = vunpack.c.l.s4 1934713408
      %v747 = vunpack.c.0.s8 %v746
      %v748 = vlaneseq
      %v749 = vshrl.u32 %v748, 7
      %v750 = vsub.s32 %v747, %v749
      %v751 = vrot.slane %v737, %v750
      %v752 = vcombine.high %v728, 0.0
      %v753 = vcombine.high %v735, 0.0
      %v754 = vcombine.high %v744, 0.0
      %v755 = vcombine.high %v751, 0.0
      %v756 = vcombine.low %v728, %v735
      %v758 = vunpack.c.l.s4 1983009808
      %v759 = vunpack.c.0.s8 %v758
      %v760 = vlaneseq
      %v761 = vshrl.u32 %v760, 7
      %v762 = vsub.s32 %v759, %v761
      %v763 = vrot.slane %v756, %v762
      %v764 = vcombine.low %v752, %v753
      %v766 = vunpack.c.l.s4 1983009808
      %v767 = vunpack.c.0.s8 %v766
      %v768 = vlaneseq
      %v769 = vshrl.u32 %v768, 7
      %v770 = vsub.s32 %v767, %v769
      %v771 = vrot.slane %v764, %v770
      %v772 = vcombine.low %v744, %v751
      %v774 = vunpack.c.l.s4 1983009808
      %v775 = vunpack.c.0.s8 %v774
      %v776 = vlaneseq
      %v777 = vshrl.u32 %v776, 7
      %v778 = vsub.s32 %v775, %v777
      %v779 = vrot.slane %v772, %v778
      %v780 = vcombine.low %v754, %v755
      %v782 = vunpack.c.l.s4 1983009808
      %v783 = vunpack.c.0.s8 %v782
      %v784 = vlaneseq
      %v785 = vshrl.u32 %v784, 7
      %v786 = vsub.s32 %v783, %v785
      %v787 = vrot.slane %v780, %v786
      %v788 = vcombine.low %v763, %v771
      %v789 = vcombine.high %v763, %v771
      %v791 = vunpack.c.l.s4 1934713408
      %v792 = vunpack.c.0.s8 %v791
      %v793 = vlaneseq
      %v794 = vshrl.u32 %v793, 7
      %v795 = vsub.s32 %v792, %v794
      %v796 = vrot.slane %v788, %v795
      %v798 = vunpack.c.l.s4 1934713408
      %v799 = vunpack.c.0.s8 %v798
      %v800 = vlaneseq
      %v801 = vshrl.u32 %v800, 7
      %v802 = vsub.s32 %v799, %v801
      %v803 = vrot.slane %v789, %v802
      %v804 = vcombine.low %v779, %v787
      %v805 = vcombine.high %v779, %v787
      %v807 = vunpack.c.l.s4 1934713408
      %v808 = vunpack.c.0.s8 %v807
      %v809 = vlaneseq
      %v810 = vshrl.u32 %v809, 7
      %v811 = vsub.s32 %v808, %v810
      %v812 = vrot.slane %v804, %v811
      %v814 = vunpack.c.l.s4 1934713408
      %v815 = vunpack.c.0.s8 %v814
      %v816 = vlaneseq
      %v817 = vshrl.u32 %v816, 7
      %v818 = vsub.s32 %v815, %v817
      %v819 = vrot.slane %v805, %v818
      %v820 = vcombine.low %v796, %v812
      %v821 = vcombine.high %v796, %v812
      %v822 = vcombine.low %v803, %v819
      %v823 = vcombine.high %v803, %v819
      %v824 = vpack.c.bf16 %v820, %v820
      %v825 = vpack.c.bf16 %v821, %v821
      %v826 = vpack.c.bf16 %v822, %v822
      %v827 = vpack.c.bf16 %v823, %v823
      %vm828 = vcmask 64512
      %v830 = vsel %vm828, %v520, 0
      %v833 = vsel %vm828, %v672, 0
      %835 = vmatprep.subr.bf16.mxu0 0
      %836 = vmatpush1.bf16.xpose.msra.mxu0 0
      %837 = vmatprep.subr.bf16.mxu0 0
      %838 = vmatpush1.bf16.xpose.msra.mxu0 0
      %839 = vmatprep.subr.bf16.mxu0 0
      %840 = vmatpush1.bf16.xpose.msra.mxu0 0
      %841 = vmatprep.subr.bf16.mxu0 0
      %842 = vmatpush1.bf16.xpose.msra.mxu0 0
      %843 = vmatprep.subr.bf16.mxu0 0
      %844 = vmatpush1.bf16.xpose.msra.mxu0 0
      %845 = vmatprep.subr.bf16.mxu0 0
      %846 = vmatpush1.bf16.xpose.msra.mxu0 0
      %847 = vmatprep.subr.bf16.mxu0 0
      %848 = vmatpush1.bf16.xpose.msra.mxu0 0
      %849 = vmatprep.subr.bf16.mxu0 0
      %850 = vmatpush1.bf16.xpose.msra.mxu0 %v833
      %851 = vmatprep.subr.bf16.mxu0 0
      %852 = vmatpush2.bf16.xpose.msra.mxu0 0
      %853 = vmatprep.subr.bf16.mxu0 0
      %854 = vmatpush2.bf16.xpose.msra.mxu0 0
      %855 = vmatprep.subr.bf16.mxu0 0
      %856 = vmatpush2.bf16.xpose.msra.mxu0 0
      %857 = vmatprep.subr.bf16.mxu0 0
      %858 = vmatpush2.bf16.xpose.msra.mxu0 0
      %859 = vmatprep.subr.bf16.mxu0 0
      %860 = vmatpush2.bf16.xpose.msra.mxu0 0
      %861 = vmatprep.subr.bf16.mxu0 0
      %862 = vmatpush2.bf16.xpose.msra.mxu0 0
      %863 = vmatprep.subr.bf16.mxu0 0
      %864 = vmatpush2.bf16.xpose.msra.mxu0 0
      %865 = vmatprep.subr.bf16.mxu0 0
      %866 = vmatpush2.bf16.xpose.msra.mxu0 0
      %867 = vmatprep.mubr.bf16.mxu0 0
      %868 = vmatmul.mubr.bf16.gmra.mxu0 %v830
      %v869 = vpop.f32.mrf.mxu0
      %v870 = vadd.f32 0.0, %v869
      %v871 = vpop.f32.mrf.mxu0
      %v872 = vpop.f32.mrf.mxu0
      %v873 = vpop.f32.mrf.mxu0
      %874 = vdwg.mxu0
      %v876 = vsel %vm828, %v521, 0
      %v879 = vsel %vm828, %v673, 0
      %881 = vmatprep.subr.bf16.mxu0 0
      %882 = vmatpush1.bf16.xpose.msra.mxu0 0
      %883 = vmatprep.subr.bf16.mxu0 0
      %884 = vmatpush1.bf16.xpose.msra.mxu0 0
      %885 = vmatprep.subr.bf16.mxu0 0
      %886 = vmatpush1.bf16.xpose.msra.mxu0 0
      %887 = vmatprep.subr.bf16.mxu0 0
      %888 = vmatpush1.bf16.xpose.msra.mxu0 0
      %889 = vmatprep.subr.bf16.mxu0 0
      %890 = vmatpush1.bf16.xpose.msra.mxu0 0
      %891 = vmatprep.subr.bf16.mxu0 0
      %892 = vmatpush1.bf16.xpose.msra.mxu0 0
      %893 = vmatprep.subr.bf16.mxu0 0
      %894 = vmatpush1.bf16.xpose.msra.mxu0 0
      %895 = vmatprep.subr.bf16.mxu0 0
      %896 = vmatpush1.bf16.xpose.msra.mxu0 %v879
      %897 = vmatprep.subr.bf16.mxu0 0
      %898 = vmatpush2.bf16.xpose.msra.mxu0 0
      %899 = vmatprep.subr.bf16.mxu0 0
      %900 = vmatpush2.bf16.xpose.msra.mxu0 0
      %901 = vmatprep.subr.bf16.mxu0 0
      %902 = vmatpush2.bf16.xpose.msra.mxu0 0
      %903 = vmatprep.subr.bf16.mxu0 0
      %904 = vmatpush2.bf16.xpose.msra.mxu0 0
      %905 = vmatprep.subr.bf16.mxu0 0
      %906 = vmatpush2.bf16.xpose.msra.mxu0 0
      %907 = vmatprep.subr.bf16.mxu0 0
      %908 = vmatpush2.bf16.xpose.msra.mxu0 0
      %909 = vmatprep.subr.bf16.mxu0 0
      %910 = vmatpush2.bf16.xpose.msra.mxu0 0
      %911 = vmatprep.subr.bf16.mxu0 0
      %912 = vmatpush2.bf16.xpose.msra.mxu0 0
      %913 = vmatprep.mubr.bf16.mxu0 0
      %914 = vmatmul.mubr.bf16.gmra.mxu0 %v876
      %v915 = vpop.f32.mrf.mxu0
      %v916 = vadd.f32 0.0, %v915
      %v917 = vpop.f32.mrf.mxu0
      %v918 = vpop.f32.mrf.mxu0
      %v919 = vpop.f32.mrf.mxu0
      %920 = vdwg.mxu0
      %v922 = vsel %vm828, %v522, 0
      %v925 = vsel %vm828, %v674, 0
      %927 = vmatprep.subr.bf16.mxu0 0
      %928 = vmatpush1.bf16.xpose.msra.mxu0 0
      %929 = vmatprep.subr.bf16.mxu0 0
      %930 = vmatpush1.bf16.xpose.msra.mxu0 0
      %931 = vmatprep.subr.bf16.mxu0 0
      %932 = vmatpush1.bf16.xpose.msra.mxu0 0
      %933 = vmatprep.subr.bf16.mxu0 0
      %934 = vmatpush1.bf16.xpose.msra.mxu0 0
      %935 = vmatprep.subr.bf16.mxu0 0
      %936 = vmatpush1.bf16.xpose.msra.mxu0 0
      %937 = vmatprep.subr.bf16.mxu0 0
      %938 = vmatpush1.bf16.xpose.msra.mxu0 0
      %939 = vmatprep.subr.bf16.mxu0 0
      %940 = vmatpush1.bf16.xpose.msra.mxu0 0
      %941 = vmatprep.subr.bf16.mxu0 0
      %942 = vmatpush1.bf16.xpose.msra.mxu0 %v925
      %943 = vmatprep.subr.bf16.mxu0 0
      %944 = vmatpush2.bf16.xpose.msra.mxu0 0
      %945 = vmatprep.subr.bf16.mxu0 0
      %946 = vmatpush2.bf16.xpose.msra.mxu0 0
      %947 = vmatprep.subr.bf16.mxu0 0
      %948 = vmatpush2.bf16.xpose.msra.mxu0 0
      %949 = vmatprep.subr.bf16.mxu0 0
      %950 = vmatpush2.bf16.xpose.msra.mxu0 0
      %951 = vmatprep.subr.bf16.mxu0 0
      %952 = vmatpush2.bf16.xpose.msra.mxu0 0
      %953 = vmatprep.subr.bf16.mxu0 0
      %954 = vmatpush2.bf16.xpose.msra.mxu0 0
      %955 = vmatprep.subr.bf16.mxu0 0
      %956 = vmatpush2.bf16.xpose.msra.mxu0 0
      %957 = vmatprep.subr.bf16.mxu0 0
      %958 = vmatpush2.bf16.xpose.msra.mxu0 0
      %959 = vmatprep.mubr.bf16.mxu0 0
      %960 = vmatmul.mubr.bf16.gmra.mxu0 %v922
      %v961 = vpop.f32.mrf.mxu0
      %v962 = vadd.f32 0.0, %v961
      %v963 = vpop.f32.mrf.mxu0
      %v964 = vpop.f32.mrf.mxu0
      %v965 = vpop.f32.mrf.mxu0
      %966 = vdwg.mxu0
      %v968 = vsel %vm828, %v523, 0
      %v971 = vsel %vm828, %v675, 0
      %973 = vmatprep.subr.bf16.mxu0 0
      %974 = vmatpush1.bf16.xpose.msra.mxu0 0
      %975 = vmatprep.subr.bf16.mxu0 0
      %976 = vmatpush1.bf16.xpose.msra.mxu0 0
      %977 = vmatprep.subr.bf16.mxu0 0
      %978 = vmatpush1.bf16.xpose.msra.mxu0 0
      %979 = vmatprep.subr.bf16.mxu0 0
      %980 = vmatpush1.bf16.xpose.msra.mxu0 0
      %981 = vmatprep.subr.bf16.mxu0 0
      %982 = vmatpush1.bf16.xpose.msra.mxu0 0
      %983 = vmatprep.subr.bf16.mxu0 0
      %984 = vmatpush1.bf16.xpose.msra.mxu0 0
      %985 = vmatprep.subr.bf16.mxu0 0
      %986 = vmatpush1.bf16.xpose.msra.mxu0 0
      %987 = vmatprep.subr.bf16.mxu0 0
      %988 = vmatpush1.bf16.xpose.msra.mxu0 %v971
      %989 = vmatprep.subr.bf16.mxu0 0
      %990 = vmatpush2.bf16.xpose.msra.mxu0 0
      %991 = vmatprep.subr.bf16.mxu0 0
      %992 = vmatpush2.bf16.xpose.msra.mxu0 0
      %993 = vmatprep.subr.bf16.mxu0 0
      %994 = vmatpush2.bf16.xpose.msra.mxu0 0
      %995 = vmatprep.subr.bf16.mxu0 0
      %996 = vmatpush2.bf16.xpose.msra.mxu0 0
      %997 = vmatprep.subr.bf16.mxu0 0
      %998 = vmatpush2.bf16.xpose.msra.mxu0 0
      %999 = vmatprep.subr.bf16.mxu0 0
      %1000 = vmatpush2.bf16.xpose.msra.mxu0 0
      %1001 = vmatprep.subr.bf16.mxu0 0
      %1002 = vmatpush2.bf16.xpose.msra.mxu0 0
      %1003 = vmatprep.subr.bf16.mxu0 0
      %1004 = vmatpush2.bf16.xpose.msra.mxu0 0
      %1005 = vmatprep.mubr.bf16.mxu0 0
      %1006 = vmatmul.mubr.bf16.gmra.mxu0 %v968
      %v1007 = vpop.f32.mrf.mxu0
      %v1008 = vadd.f32 0.0, %v1007
      %v1009 = vpop.f32.mrf.mxu0
      %v1010 = vpop.f32.mrf.mxu0
      %v1011 = vpop.f32.mrf.mxu0
      %1012 = vdwg.mxu0
      %v1013 = vsel %vm828, %v870, -inf
      %1014 = vmax.xlane.f32.xlu0 %v1013
      %v1015 = vpop.xlane.xlu0 %1014
      %v1016 = vsel %vm828, %v916, -inf
      %1017 = vmax.xlane.f32.xlu0 %v1016
      %v1018 = vpop.xlane.xlu0 %1017
      %v1019 = vsel %vm828, %v962, -inf
      %1020 = vmax.xlane.f32.xlu0 %v1019
      %v1021 = vpop.xlane.xlu0 %1020
      %v1022 = vsel %vm828, %v1008, -inf
      %1023 = vmax.xlane.f32.xlu0 %v1022
      %v1024 = vpop.xlane.xlu0 %1023
      %v1025 = vsub.f32 %v870, %v1015
      %v1026 = vsub.f32 %v916, %v1018
      %v1027 = vsub.f32 %v962, %v1021
      %v1028 = vsub.f32 %v1008, %v1024
      %v1029 = vmul.f32 %v1025, 1.442695
      %v1030 = vpow.pop %v1029
      %v1031 = vmul.f32 %v1026, 1.442695
      %v1032 = vpow.pop %v1031
      %v1033 = vmul.f32 %v1027, 1.442695
      %v1034 = vpow.pop %v1033
      %v1035 = vmul.f32 %v1028, 1.442695
      %v1036 = vpow.pop %v1035
      %v1037 = vsel %vm828, %v1030, 0.0
      %1038 = vadd.xlane.f32.xlu0 %v1037
      %v1039 = vpop.xlane.xlu0 %1038
      %v1040 = vsel %vm828, %v1032, 0.0
      %1041 = vadd.xlane.f32.xlu0 %v1040
      %v1042 = vpop.xlane.xlu0 %1041
      %v1043 = vsel %vm828, %v1034, 0.0
      %1044 = vadd.xlane.f32.xlu0 %v1043
      %v1045 = vpop.xlane.xlu0 %1044
      %v1046 = vsel %vm828, %v1036, 0.0
      %1047 = vadd.xlane.f32.xlu0 %v1046
      %v1048 = vpop.xlane.xlu0 %1047
      %v1049 = vrcp.pop %v1039
      %v1050 = vmul.f32 %v1030, %v1049
      %v1051 = vrcp.pop %v1042
      %v1052 = vmul.f32 %v1032, %v1051
      %v1053 = vrcp.pop %v1045
      %v1054 = vmul.f32 %v1034, %v1053
      %v1055 = vrcp.pop %v1048
      %v1056 = vmul.f32 %v1036, %v1055
      %v1057 = vpack.c.bf16 %v1050, %v1050
      %v1058 = vpack.c.bf16 %v1052, %v1052
      %v1059 = vpack.c.bf16 %v1054, %v1054
      %v1060 = vpack.c.bf16 %v1056, %v1056
      %v1062 = vsel %vm828, %v1057, 0
      %vm1064 = vcmask 1043456
      %v1066 = vsel %vm1064, %v824, 0
      %1068 = vmatprep.subr.bf16.mxu0 0
      %1069 = vmatpush1.bf16.msra.mxu0 0
      %1070 = vmatprep.subr.bf16.mxu0 0
      %1071 = vmatpush1.bf16.msra.mxu0 0
      %1072 = vmatprep.subr.bf16.mxu0 0
      %1073 = vmatpush1.bf16.msra.mxu0 0
      %1074 = vmatprep.subr.bf16.mxu0 0
      %1075 = vmatpush1.bf16.msra.mxu0 0
      %1076 = vmatprep.subr.bf16.mxu0 0
      %1077 = vmatpush1.bf16.msra.mxu0 0
      %1078 = vmatprep.subr.bf16.mxu0 0
      %1079 = vmatpush1.bf16.msra.mxu0 0
      %1080 = vmatprep.subr.bf16.mxu0 0
      %1081 = vmatpush1.bf16.msra.mxu0 0
      %1082 = vmatprep.subr.bf16.mxu0 0
      %1083 = vmatpush1.bf16.msra.mxu0 %v1066
      %1084 = vmatprep.subr.bf16.mxu0 0
      %1085 = vmatpush2.bf16.msra.mxu0 0
      %1086 = vmatprep.subr.bf16.mxu0 0
      %1087 = vmatpush2.bf16.msra.mxu0 0
      %1088 = vmatprep.subr.bf16.mxu0 0
      %1089 = vmatpush2.bf16.msra.mxu0 0
      %1090 = vmatprep.subr.bf16.mxu0 0
      %1091 = vmatpush2.bf16.msra.mxu0 0
      %1092 = vmatprep.subr.bf16.mxu0 0
      %1093 = vmatpush2.bf16.msra.mxu0 0
      %1094 = vmatprep.subr.bf16.mxu0 0
      %1095 = vmatpush2.bf16.msra.mxu0 0
      %1096 = vmatprep.subr.bf16.mxu0 0
      %1097 = vmatpush2.bf16.msra.mxu0 0
      %1098 = vmatprep.subr.bf16.mxu0 0
      %1099 = vmatpush2.bf16.msra.mxu0 0
      %1100 = vmatprep.mubr.bf16.mxu0 0
      %1101 = vmatmul.mubr.bf16.gmra.mxu0 %v1062
      %v1102 = vpop.f32.mrf.mxu0
      %v1103 = vadd.f32 0.0, %v1102
      %v1104 = vpop.f32.mrf.mxu0
      %v1105 = vpop.f32.mrf.mxu0
      %v1106 = vpop.f32.mrf.mxu0
      %1107 = vdwg.mxu0
      %v1109 = vsel %vm828, %v1058, 0
      %v1112 = vsel %vm1064, %v825, 0
      %1114 = vmatprep.subr.bf16.mxu0 0
      %1115 = vmatpush1.bf16.msra.mxu0 0
      %1116 = vmatprep.subr.bf16.mxu0 0
      %1117 = vmatpush1.bf16.msra.mxu0 0
      %1118 = vmatprep.subr.bf16.mxu0 0
      %1119 = vmatpush1.bf16.msra.mxu0 0
      %1120 = vmatprep.subr.bf16.mxu0 0
      %1121 = vmatpush1.bf16.msra.mxu0 0
      %1122 = vmatprep.subr.bf16.mxu0 0
      %1123 = vmatpush1.bf16.msra.mxu0 0
      %1124 = vmatprep.subr.bf16.mxu0 0
      %1125 = vmatpush1.bf16.msra.mxu0 0
      %1126 = vmatprep.subr.bf16.mxu0 0
      %1127 = vmatpush1.bf16.msra.mxu0 0
      %1128 = vmatprep.subr.bf16.mxu0 0
      %1129 = vmatpush1.bf16.msra.mxu0 %v1112
      %1130 = vmatprep.subr.bf16.mxu0 0
      %1131 = vmatpush2.bf16.msra.mxu0 0
      %1132 = vmatprep.subr.bf16.mxu0 0
      %1133 = vmatpush2.bf16.msra.mxu0 0
      %1134 = vmatprep.subr.bf16.mxu0 0
      %1135 = vmatpush2.bf16.msra.mxu0 0
      %1136 = vmatprep.subr.bf16.mxu0 0
      %1137 = vmatpush2.bf16.msra.mxu0 0
      %1138 = vmatprep.subr.bf16.mxu0 0
      %1139 = vmatpush2.bf16.msra.mxu0 0
      %1140 = vmatprep.subr.bf16.mxu0 0
      %1141 = vmatpush2.bf16.msra.mxu0 0
      %1142 = vmatprep.subr.bf16.mxu0 0
      %1143 = vmatpush2.bf16.msra.mxu0 0
      %1144 = vmatprep.subr.bf16.mxu0 0
      %1145 = vmatpush2.bf16.msra.mxu0 0
      %1146 = vmatprep.mubr.bf16.mxu0 0
      %1147 = vmatmul.mubr.bf16.gmra.mxu0 %v1109
      %v1148 = vpop.f32.mrf.mxu0
      %v1149 = vadd.f32 0.0, %v1148
      %v1150 = vpop.f32.mrf.mxu0
      %v1151 = vpop.f32.mrf.mxu0
      %v1152 = vpop.f32.mrf.mxu0
      %1153 = vdwg.mxu0
      %v1155 = vsel %vm828, %v1059, 0
      %v1158 = vsel %vm1064, %v826, 0
      %1160 = vmatprep.subr.bf16.mxu0 0
      %1161 = vmatpush1.bf16.msra.mxu0 0
      %1162 = vmatprep.subr.bf16.mxu0 0
      %1163 = vmatpush1.bf16.msra.mxu0 0
      %1164 = vmatprep.subr.bf16.mxu0 0
      %1165 = vmatpush1.bf16.msra.mxu0 0
      %1166 = vmatprep.subr.bf16.mxu0 0
      %1167 = vmatpush1.bf16.msra.mxu0 0
      %1168 = vmatprep.subr.bf16.mxu0 0
      %1169 = vmatpush1.bf16.msra.mxu0 0
      %1170 = vmatprep.subr.bf16.mxu0 0
      %1171 = vmatpush1.bf16.msra.mxu0 0
      %1172 = vmatprep.subr.bf16.mxu0 0
      %1173 = vmatpush1.bf16.msra.mxu0 0
      %1174 = vmatprep.subr.bf16.mxu0 0
      %1175 = vmatpush1.bf16.msra.mxu0 %v1158
      %1176 = vmatprep.subr.bf16.mxu0 0
      %1177 = vmatpush2.bf16.msra.mxu0 0
      %1178 = vmatprep.subr.bf16.mxu0 0
      %1179 = vmatpush2.bf16.msra.mxu0 0
      %1180 = vmatprep.subr.bf16.mxu0 0
      %1181 = vmatpush2.bf16.msra.mxu0 0
      %1182 = vmatprep.subr.bf16.mxu0 0
      %1183 = vmatpush2.bf16.msra.mxu0 0
      %1184 = vmatprep.subr.bf16.mxu0 0
      %1185 = vmatpush2.bf16.msra.mxu0 0
      %1186 = vmatprep.subr.bf16.mxu0 0
      %1187 = vmatpush2.bf16.msra.mxu0 0
      %1188 = vmatprep.subr.bf16.mxu0 0
      %1189 = vmatpush2.bf16.msra.mxu0 0
      %1190 = vmatprep.subr.bf16.mxu0 0
      %1191 = vmatpush2.bf16.msra.mxu0 0
      %1192 = vmatprep.mubr.bf16.mxu0 0
      %1193 = vmatmul.mubr.bf16.gmra.mxu0 %v1155
      %v1194 = vpop.f32.mrf.mxu0
      %v1195 = vadd.f32 0.0, %v1194
      %v1196 = vpop.f32.mrf.mxu0
      %v1197 = vpop.f32.mrf.mxu0
      %v1198 = vpop.f32.mrf.mxu0
      %1199 = vdwg.mxu0
      %v1201 = vsel %vm828, %v1060, 0
      %v1204 = vsel %vm1064, %v827, 0
      %1206 = vmatprep.subr.bf16.mxu0 0
      %1207 = vmatpush1.bf16.msra.mxu0 0
      %1208 = vmatprep.subr.bf16.mxu0 0
      %1209 = vmatpush1.bf16.msra.mxu0 0
      %1210 = vmatprep.subr.bf16.mxu0 0
      %1211 = vmatpush1.bf16.msra.mxu0 0
      %1212 = vmatprep.subr.bf16.mxu0 0
      %1213 = vmatpush1.bf16.msra.mxu0 0
      %1214 = vmatprep.subr.bf16.mxu0 0
      %1215 = vmatpush1.bf16.msra.mxu0 0
      %1216 = vmatprep.subr.bf16.mxu0 0
      %1217 = vmatpush1.bf16.msra.mxu0 0
      %1218 = vmatprep.subr.bf16.mxu0 0
      %1219 = vmatpush1.bf16.msra.mxu0 0
      %1220 = vmatprep.subr.bf16.mxu0 0
      %1221 = vmatpush1.bf16.msra.mxu0 %v1204
      %1222 = vmatprep.subr.bf16.mxu0 0
      %1223 = vmatpush2.bf16.msra.mxu0 0
      %1224 = vmatprep.subr.bf16.mxu0 0
      %1225 = vmatpush2.bf16.msra.mxu0 0
      %1226 = vmatprep.subr.bf16.mxu0 0
      %1227 = vmatpush2.bf16.msra.mxu0 0
      %1228 = vmatprep.subr.bf16.mxu0 0
      %1229 = vmatpush2.bf16.msra.mxu0 0
      %1230 = vmatprep.subr.bf16.mxu0 0
      %1231 = vmatpush2.bf16.msra.mxu0 0
      %1232 = vmatprep.subr.bf16.mxu0 0
      %1233 = vmatpush2.bf16.msra.mxu0 0
      %1234 = vmatprep.subr.bf16.mxu0 0
      %1235 = vmatpush2.bf16.msra.mxu0 0
      %1236 = vmatprep.subr.bf16.mxu0 0
      %1237 = vmatpush2.bf16.msra.mxu0 0
      %1238 = vmatprep.mubr.bf16.mxu0 0
      %1239 = vmatmul.mubr.bf16.gmra.mxu0 %v1201
      %v1240 = vpop.f32.mrf.mxu0
      %v1241 = vadd.f32 0.0, %v1240
      %v1242 = vpop.f32.mrf.mxu0
      %v1243 = vpop.f32.mrf.mxu0
      %v1244 = vpop.f32.mrf.mxu0
      %1245 = vdwg.mxu0
      %v1246 = vcombine.low %v1103, %v1195
      %v1247 = vcombine.high %v1103, %v1195
      %v1249 = vunpack.c.l.s4 1983009808
      %v1250 = vunpack.c.0.s8 %v1249
      %v1251 = vlaneseq
      %v1252 = vshrl.u32 %v1251, 7
      %v1253 = vsub.s32 %v1250, %v1252
      %v1254 = vrot.slane %v1246, %v1253
      %v1256 = vunpack.c.l.s4 1983009808
      %v1257 = vunpack.c.0.s8 %v1256
      %v1258 = vlaneseq
      %v1259 = vshrl.u32 %v1258, 7
      %v1260 = vsub.s32 %v1257, %v1259
      %v1261 = vrot.slane %v1247, %v1260
      %v1262 = vcombine.low %v1149, %v1241
      %v1263 = vcombine.high %v1149, %v1241
      %v1265 = vunpack.c.l.s4 1983009808
      %v1266 = vunpack.c.0.s8 %v1265
      %v1267 = vlaneseq
      %v1268 = vshrl.u32 %v1267, 7
      %v1269 = vsub.s32 %v1266, %v1268
      %v1270 = vrot.slane %v1262, %v1269
      %v1272 = vunpack.c.l.s4 1983009808
      %v1273 = vunpack.c.0.s8 %v1272
      %v1274 = vlaneseq
      %v1275 = vshrl.u32 %v1274, 7
      %v1276 = vsub.s32 %v1273, %v1275
      %v1277 = vrot.slane %v1263, %v1276
      %v1278 = vcombine.low %v1254, %v1270
      %v1279 = vcombine.high %v1254, %v1270
      %v1281 = vunpack.c.l.s4 1934713408
      %v1282 = vunpack.c.0.s8 %v1281
      %v1283 = vlaneseq
      %v1284 = vshrl.u32 %v1283, 7
      %v1285 = vsub.s32 %v1282, %v1284
      %v1286 = vrot.slane %v1278, %v1285
      %v1288 = vunpack.c.l.s4 1934713408
      %v1289 = vunpack.c.0.s8 %v1288
      %v1290 = vlaneseq
      %v1291 = vshrl.u32 %v1290, 7
      %v1292 = vsub.s32 %v1289, %v1291
      %v1293 = vrot.slane %v1279, %v1292
      %v1294 = vcombine.low %v1261, %v1277
      %v1295 = vcombine.high %v1261, %v1277
      %v1297 = vunpack.c.l.s4 1934713408
      %v1298 = vunpack.c.0.s8 %v1297
      %v1299 = vlaneseq
      %v1300 = vshrl.u32 %v1299, 7
      %v1301 = vsub.s32 %v1298, %v1300
      %v1302 = vrot.slane %v1294, %v1301
      %v1304 = vunpack.c.l.s4 1934713408
      %v1305 = vunpack.c.0.s8 %v1304
      %v1306 = vlaneseq
      %v1307 = vshrl.u32 %v1306, 7
      %v1308 = vsub.s32 %v1305, %v1307
      %v1309 = vrot.slane %v1295, %v1308
      %v1310 = vcombine.high %v1286, 0.0
      %v1311 = vcombine.high %v1293, 0.0
      %v1312 = vcombine.high %v1302, 0.0
      %v1313 = vcombine.high %v1309, 0.0
      %v1314 = vcombine.low %v1286, %v1293
      %v1316 = vunpack.c.l.s4 1983009808
      %v1317 = vunpack.c.0.s8 %v1316
      %v1318 = vlaneseq
      %v1319 = vshrl.u32 %v1318, 7
      %v1320 = vsub.s32 %v1317, %v1319
      %v1321 = vrot.slane %v1314, %v1320
      %v1322 = vcombine.low %v1310, %v1311
      %v1324 = vunpack.c.l.s4 1983009808
      %v1325 = vunpack.c.0.s8 %v1324
      %v1326 = vlaneseq
      %v1327 = vshrl.u32 %v1326, 7
      %v1328 = vsub.s32 %v1325, %v1327
      %v1329 = vrot.slane %v1322, %v1328
      %v1330 = vcombine.low %v1302, %v1309
      %v1332 = vunpack.c.l.s4 1983009808
      %v1333 = vunpack.c.0.s8 %v1332
      %v1334 = vlaneseq
      %v1335 = vshrl.u32 %v1334, 7
      %v1336 = vsub.s32 %v1333, %v1335
      %v1337 = vrot.slane %v1330, %v1336
      %v1338 = vcombine.low %v1312, %v1313
      %v1340 = vunpack.c.l.s4 1983009808
      %v1341 = vunpack.c.0.s8 %v1340
      %v1342 = vlaneseq
      %v1343 = vshrl.u32 %v1342, 7
      %v1344 = vsub.s32 %v1341, %v1343
      %v1345 = vrot.slane %v1338, %v1344
      %v1346 = vcombine.low %v1321, %v1329
      %v1347 = vcombine.high %v1321, %v1329
      %v1349 = vunpack.c.l.s4 1934713408
      %v1350 = vunpack.c.0.s8 %v1349
      %v1351 = vlaneseq
      %v1352 = vshrl.u32 %v1351, 7
      %v1353 = vsub.s32 %v1350, %v1352
      %v1354 = vrot.slane %v1346, %v1353
      %v1356 = vunpack.c.l.s4 1934713408
      %v1357 = vunpack.c.0.s8 %v1356
      %v1358 = vlaneseq
      %v1359 = vshrl.u32 %v1358, 7
      %v1360 = vsub.s32 %v1357, %v1359
      %v1361 = vrot.slane %v1347, %v1360
      %v1362 = vcombine.low %v1337, %v1345
      %v1363 = vcombine.high %v1337, %v1345
      %v1365 = vunpack.c.l.s4 1934713408
      %v1366 = vunpack.c.0.s8 %v1365
      %v1367 = vlaneseq
      %v1368 = vshrl.u32 %v1367, 7
      %v1369 = vsub.s32 %v1366, %v1368
      %v1370 = vrot.slane %v1362, %v1369
      %v1372 = vunpack.c.l.s4 1934713408
      %v1373 = vunpack.c.0.s8 %v1372
      %v1374 = vlaneseq
      %v1375 = vshrl.u32 %v1374, 7
      %v1376 = vsub.s32 %v1373, %v1375
      %v1377 = vrot.slane %v1363, %v1376
      %v1378 = vcombine.low %v1354, %v1370
      %v1379 = vcombine.high %v1354, %v1370
      %v1380 = vcombine.low %v1361, %v1377
      %v1381 = vcombine.high %v1361, %v1377
      %1383 = vrot.lane.b32.xlu0 %v1379, 8
      %v1384 = vpop.permute.xlu0 %1383
      %1387 = vrot.lane.b32.xlu0 %v1380, 16
      %v1388 = vpop.permute.xlu0 %1387
      %1391 = vrot.lane.b32.xlu0 %v1381, 24
      %v1392 = vpop.permute.xlu0 %1391
      %v1394 = vsel %vm828, %v1378, %v1384
      %vm1395 = vcmask 130048
      %v1396 = vsel %vm1395, %v1394, %v1388
      %vm1397 = vcmask 195584
      %v1398 = vsel %vm1397, %v1396, %v1392
      %v1399 = vpack.c.bf16 %v1398, %v1398
      %v1400 = vld [vmem:[%s5] sm:$0xf]
      %v1401 = vld [vmem:[%s5 + $0x4] sm:$0xf]
      %v1402 = vld [vmem:[%s5 + $0x8] sm:$0xf]
      %v1403 = vld [vmem:[%s5 + $0xc] sm:$0xf]
      %v1404 = vld [vmem:[%s6] sm:$0x1]
      %v1406 = vlaneseq
      %v1407 = vshrl.u32 %v1406, 7
      %v1408 = vsub.s32 0, %v1407
      %v1409 = vrot.slane %v1404, %v1408
      %v1415 = vunpack.c.l.b16 %v1400
      %v1416 = vunpack.c.l.b16 %v1401
      %v1417 = vunpack.c.l.b16 %v1402
      %v1418 = vunpack.c.l.b16 %v1403
      %v1419 = vpack.c.b16 %v1416, %v1415
      %v1420 = vpack.c.b16 %v1418, %v1417
      %v1424 = vsel %vm278, %v1399, 0
      %1426 = vmatprep.subr.bf16.mxu0 0
      %1427 = vmatpush1.bf16.msra.mxu0 0
      %1428 = vmatprep.subr.bf16.mxu0 0
      %1429 = vmatpush1.bf16.msra.mxu0 0
      %1430 = vmatprep.subr.bf16.mxu0 0
      %1431 = vmatpush1.bf16.msra.mxu0 0
      %1432 = vmatprep.subr.bf16.mxu0 0
      %1433 = vmatpush1.bf16.msra.mxu0 0
      %1434 = vmatprep.subr.bf16.mxu0 0
      %1435 = vmatpush1.bf16.msra.mxu0 0
      %1436 = vmatprep.subr.bf16.mxu0 0
      %1437 = vmatpush1.bf16.msra.mxu0 0
      %1438 = vmatprep.subr.bf16.mxu0 0
      %1439 = vmatpush1.bf16.msra.mxu0 %v1420
      %1440 = vmatprep.subr.bf16.mxu0 0
      %1441 = vmatpush1.bf16.msra.mxu0 %v1419
      %1442 = vmatprep.subr.bf16.mxu0 0
      %1443 = vmatpush2.bf16.msra.mxu0 0
      %1444 = vmatprep.subr.bf16.mxu0 0
      %1445 = vmatpush2.bf16.msra.mxu0 0
      %1446 = vmatprep.subr.bf16.mxu0 0
      %1447 = vmatpush2.bf16.msra.mxu0 0
      %1448 = vmatprep.subr.bf16.mxu0 0
      %1449 = vmatpush2.bf16.msra.mxu0 0
      %1450 = vmatprep.subr.bf16.mxu0 0
      %1451 = vmatpush2.bf16.msra.mxu0 0
      %1452 = vmatprep.subr.bf16.mxu0 0
      %1453 = vmatpush2.bf16.msra.mxu0 0
      %1454 = vmatprep.subr.bf16.mxu0 0
      %1455 = vmatpush2.bf16.msra.mxu0 0
      %1456 = vmatprep.subr.bf16.mxu0 0
      %1457 = vmatpush2.bf16.msra.mxu0 0
      %1458 = vmatprep.mubr.bf16.mxu0 0
      %1459 = vmatmul.mubr.bf16.gmra.mxu0 %v1424
      %v1460 = vpop.f32.mrf.mxu0
      %v1461 = vadd.f32 %v1409, %v1460
      %v1462 = vpop.f32.mrf.mxu0
      %v1463 = vpop.f32.mrf.mxu0
      %v1464 = vpop.f32.mrf.mxu0
      %1465 = vdwg.mxu0
      %v1466 = vadd.f32 %v275, %v1461
      %1467 = vst.msk [vmem:[%s273] sm:$0xff] %vm278, %v1466
      %p1468 = scmp.lt.s32.totalorder %s18, 1
      %s1469 = scalar_select %p1468, %s18, 1
      %s1470 = smul.addr %s1469, 8
      %s1471 = scalar_lea.vmem %s7, %s1470
      // Predicated region
      $region49: #{transformer_block.2} parent=47 // pred_check
        %p1472 = pneg %p188
      $region50: #{transformer_block.2} parent=47 // pred_check_branch
        %1474 = sbr.rel (%p1472) target = $region52
      $region51: #{transformer_block.2} parent=47 // pred_region
        _
      $region52: #{transformer_block.2} parent=47 // pred_fallthru
        _
    $region48: #{transformer_block.2} parent=5 // pred_fallthru
      _
    %p1475 = scmp.le.s32.totalorder 2, %s13
    // Predicated region
    $region53: #{transformer_block.2} parent=5 // pred_check
      %p1476 = pneg %p1475
    $region54: #{transformer_block.2} parent=5 // pred_check_branch
      %1478 = sbr.rel (%p1476) target = $region56
    $region55: #{transformer_block.2} parent=5 // pred_region
      %s1479 = ssub.s32 %s13, 2
      // Predicated region
      $region57: #{transformer_block.2} parent=55 // pred_check
        %p1480 = pneg %p194
      $region58: #{transformer_block.2} parent=55 // pred_check_branch
        %1482 = sbr.rel (%p1480) target = $region60
      $region59: #{transformer_block.2} parent=55 // pred_region
        %p1483 = scmp.lt.s32.totalorder %s19, 1
        %s1484 = scalar_select %p1483, %s19, 1
        %s1485 = smul.addr %s1484, 8
        %s1486 = scalar_lea.vmem %s7, %s1485
      $region60: #{transformer_block.2} parent=55 // pred_fallthru
        _
    $region56: #{transformer_block.2} parent=5 // pred_fallthru
      _
  $region6: #{transformer_block.2} parent=0 // loop_footer
    %s17 = sadd.s32 1, %s13
  $region7: #{transformer_block.2} parent=0 // loop_footer_branch
    %12 = sbr.rel target = $region3
  $region8: #{transformer_block.2} parent=0 // loop_exit
    _

</llo_original>
